<compile_context>
chip_gen: v6e
topology: v6e:2x2x1
jax: 0.10.0
libtpu: 0.0.40
codegen_flags: <defaults>
</compile_context>

<pallas_src>
import jax
import jax.numpy as jnp
import numpy as np
from jax.experimental import pallas as pl
from jax.experimental.pallas import tpu as pltpu

_MiB = 1024 * 1024
_GATE_PERM = (0, 1, 3, 2)  # [i, f, g, o] -> [i, f, o, g]


def _round_up(x, m):
    return (x + m - 1) // m * m


def _prep_gate_cols(w, H, hp):
    """(rows, 4*H) [i|f|g|o] -> (rows, 4*hp) [i|f|o|g], each gate zero-padded H->hp."""
    r = w.shape[0]
    w4 = w.reshape(r, 4, H)[:, jnp.array(_GATE_PERM), :]
    w4 = jnp.pad(w4, ((0, 0), (0, 0), (0, hp - H)))
    return w4.reshape(r, 4 * hp)


def _prep_bias(b, H, hp):
    b4 = b.reshape(4, H)[jnp.array(_GATE_PERM), :]
    b4 = jnp.pad(b4, ((0, 0), (0, hp - H)))
    return b4.reshape(1, 4 * hp).astype(jnp.float32)


def _pad_rows(w, rows_to):
    return jnp.pad(w, ((0, rows_to - w.shape[0]), (0, 0)))


def _fused_lstm_kernel(x_ref, wx0_ref, wxl_ref, wh_ref, b_ref,
                       out_ref, h_out_ref, c_out_ref,
                       gx_ref, buf_ref, h_state, c_state):
    """All layers of the LSTM over one sequence chunk. h/c per-layer state lives in
    the h_state/c_state scratch and is carried across grid steps (chunks)."""
    num_layers, bp, hp = h_state.shape
    tc = gx_ref.shape[0] // bp            # timesteps per chunk (static)
    mx = wh_ref.dtype                     # MXU operand dtype (f32 or bf16)

    # First chunk: zero-init the recurrent state (init_states=None -> zeros).
    @pl.when(pl.program_id(0) == 0)
    def _():
        h_state[...] = jnp.zeros_like(h_state)
        c_state[...] = jnp.zeros_like(c_state)

    bias = b_ref[...]                     # (1, 4*hp), f32

    if tc <= 8:
        unroll = True
    else:
        unroll = max(u for u in (8, 4, 2, 1) if tc % u == 0)

    for l in range(num_layers):           # static layer loop: all layers in one call
        # Phase 0 (off the serial path): input-to-hidden matmul for the whole chunk.
        if l == 0:
            inp, wx = x_ref[...], wx0_ref[...]
        else:
            inp, wx = buf_ref[...].astype(mx), wxl_ref[...]
        gx_ref[...] = jnp.dot(inp, wx, preferred_element_type=jnp.float32) + bias

        # Final layer streams straight into the HBM-backed output block; intermediate
        # layers stay entirely in VMEM (no HBM round trip between layers).
        dst_ref = out_ref if l == num_layers - 1 else buf_ref

        def step(t, carry, dst_ref=dst_ref):
            h, c = carry
            row = pl.multiple_of(t * bp, bp)              # sublane-aligned slice
            # Only h @ W_h is on the serial critical path; RHS streams from VMEM.
            gates = gx_ref[pl.ds(row, bp), :] + jnp.dot(
                h.astype(mx), wh_ref[...], preferred_element_type=jnp.float32)
            # Gate layout [i|f|o|g]: one tanh-form sigmoid over a (bp, 3*hp) slab
            # (EUP tanh, no divide) + one tanh for g. hp % 128 == 0 -> lane-aligned.
            sg = 0.5 * (jnp.tanh(0.5 * gates[:, :3 * hp]) + 1.0)
            i_t = sg[:, 0 * hp:1 * hp]
            f_t = sg[:, 1 * hp:2 * hp]
            o_t = sg[:, 2 * hp:3 * hp]
            g_t = jnp.tanh(gates[:, 3 * hp:])
            c_new = f_t * c + i_t * g_t
            h_new = o_t * jnp.tanh(c_new)
            dst_ref[pl.ds(row, bp), :] = h_new.astype(dst_ref.dtype)   # lane-dense store
            return h_new, c_new

        h_T, c_T = jax.lax.fori_loop(0, tc, step, (h_state[l], c_state[l]),
                                     unroll=unroll)
        h_state[l] = h_T
        c_state[l] = c_T

    h_out_ref[...] = h_state[num_layers - 1].astype(h_out_ref.dtype)
    c_out_ref[...] = c_state[num_layers - 1].astype(c_out_ref.dtype)


def _footprint_bytes(tc, bp, hp, d_in, num_layers, mx_bytes):
    io_blocks = tc * bp * (d_in * mx_bytes + hp * 4) * 2       # x + hidden_seq blocks, double-buffered
    scratch = tc * bp * hp * 4 * 5                             # gx (4*hp) + inter-layer buf (hp), f32
    weights = ((d_in + 2 * hp) * 4 * hp * mx_bytes + 4 * hp * 4) * 2
    states = (2 * num_layers + 4) * bp * hp * 4                # h/c scratch + h_T/c_T buffers
    return io_blocks + scratch + weights + states


def _vmem_capacity_bytes():
    try:
        return int(pltpu.get_tpu_info().vmem_capacity_bytes)
    except Exception:
        return 64 * _MiB       # v7x-safe fallback


def _choose_chunk(seq_sz, bp, hp, d_in, num_layers, mx_bytes, budget):
    best = 1
    for d in range(1, seq_sz + 1):
        if seq_sz % d == 0 and _footprint_bytes(d, bp, hp, d_in, num_layers, mx_bytes) <= budget:
            best = d
    return best


def optimized_lstm_forward(x, W_ii0, W_ii, W_hi, bias, num_layers, *,
                           compute_dtype=jnp.float32, chunk_size=None):
    """Pallas equivalent of OptimizedLSTM.forward(x, init_states=None).

    compute_dtype: MXU operand dtype for x / W_x / W_h (bf16 = 3-4x MXU throughput,
      reduced precision). Gates, c/h state and outputs stay float32 either way.
    chunk_size: optional override of the per-grid-step sequence chunk (must divide
      seq); mainly for testing the cross-chunk state carry.
    """
    seq_sz, bs, d_in = x.shape
    H = W_hi.shape[0]
    hp = _round_up(H, 128)    # lane-align each gate block / the hidden dim
    bp = _round_up(bs, 8)     # sublane-align batch (f32)
    mx = jnp.dtype(compute_dtype)

    # Zero-padded, gate-reordered weights: padded hidden lanes see gates == 0,
    # so padded h/c lanes stay exactly 0 and never contaminate real lanes.
    wx0 = _prep_gate_cols(W_ii0, H, hp).astype(mx)                  # (d_in, 4*hp)
    wxl = _pad_rows(_prep_gate_cols(W_ii, H, hp), hp).astype(mx)    # (hp,   4*hp)
    wh = _pad_rows(_prep_gate_cols(W_hi, H, hp), hp).astype(mx)     # (hp,   4*hp)
    b2 = _prep_bias(bias, H, hp)                                    # (1, 4*hp) f32

    xp = jnp.pad(x, ((0, 0), (0, bp - bs), (0, 0))).astype(mx)      # (seq, bp, d_in)
    x2d = xp.reshape(seq_sz * bp, d_in)

    cap = _vmem_capacity_bytes()
    budget = min(int(cap * 0.55), 96 * _MiB)       # ~35 MiB on v7x, ~70 MiB on v5e/v6e
    if chunk_size is None:
        tc = _choose_chunk(seq_sz, bp, hp, d_in, num_layers, mx.itemsize, budget)
    else:
        assert seq_sz % chunk_size == 0, "chunk_size must divide seq length"
        tc = chunk_size
    num_chunks = seq_sz // tc

    fp = _footprint_bytes(tc, bp, hp, d_in, num_layers, mx.itemsize)
    vmem_limit = min(int(cap * 0.9), max(32 * _MiB, int(fp * 1.3) + 4 * _MiB))

    out_shapes = (
        jax.ShapeDtypeStruct((seq_sz * bp, hp), jnp.float32),   # hidden_seq (final layer)
        jax.ShapeDtypeStruct((bp, hp), jnp.float32),            # h_T
        jax.ShapeDtypeStruct((bp, hp), jnp.float32),            # c_T
    )

    grid_spec = pltpu.PrefetchScalarGridSpec(
        num_scalar_prefetch=0,
        grid=(num_chunks,),
        in_specs=[
            pl.BlockSpec((tc * bp, d_in), lambda k: (k, 0)),    # x chunk (pipelined)
            pl.BlockSpec((d_in, 4 * hp), lambda k: (0, 0)),     # W_x, layer 0 (resident)
            pl.BlockSpec((hp, 4 * hp), lambda k: (0, 0)),       # W_x, layers >= 1 (resident)
            pl.BlockSpec((hp, 4 * hp), lambda k: (0, 0)),       # W_h (resident)
            pl.BlockSpec((1, 4 * hp), lambda k: (0, 0)),        # bias
        ],
        out_specs=[
            pl.BlockSpec((tc * bp, hp), lambda k: (k, 0)),      # hidden_seq chunk (pipelined)
            pl.BlockSpec((bp, hp), lambda k: (0, 0)),           # h_T (resident)
            pl.BlockSpec((bp, hp), lambda k: (0, 0)),           # c_T (resident)
        ],
        scratch_shapes=[
            pltpu.VMEM((tc * bp, 4 * hp), jnp.float32),         # per-chunk x @ W_x + b
            pltpu.VMEM((tc * bp, hp), jnp.float32),             # inter-layer hidden chunk (VMEM only)
            pltpu.VMEM((num_layers, bp, hp), jnp.float32),      # h state, carried across chunks
            pltpu.VMEM((num_layers, bp, hp), jnp.float32),      # c state, carried across chunks
        ],
    )

    out2d, h_T, c_T = pl.pallas_call(
        _fused_lstm_kernel,
        out_shape=out_shapes,
        grid_spec=grid_spec,
        compiler_params=pltpu.CompilerParams(
            dimension_semantics=("arbitrary",),                 # state carried chunk -> chunk
            vmem_limit_bytes=vmem_limit),
    )(x2d, wx0, wxl, wh, b2)

    hidden_seq = out2d.reshape(seq_sz, bp, hp)[:, :bs, :H]
    return hidden_seq, (h_T[:bs, :H], c_T[:bs, :H])


# ----- pure-JAX reference (mirrors the PyTorch loop) -----
def _reference_forward(x, W_ii0, W_ii, W_hi, bias, num_layers):
    seq_sz, bs, _ = x.shape
    H = W_hi.shape[0]
    for l in range(num_layers):
        h_t = jnp.zeros((bs, H), x.dtype)
        c_t = jnp.zeros((bs, H), x.dtype)
        outs = []
        W_x = W_ii0 if l == 0 else W_ii
        for t in range(seq_sz):
            gates = x[t] @ W_x + h_t @ W_hi + bias
            i_t = jax.nn.sigmoid(gates[:, :H])
            f_t = jax.nn.sigmoid(gates[:, H:2 * H])
            g_t = jnp.tanh(gates[:, 2 * H:3 * H])
            o_t = jax.nn.sigmoid(gates[:, 3 * H:])
            c_t = f_t * c_t + i_t * g_t
            h_t = o_t * jnp.tanh(c_t)
            outs.append(h_t)
        x = jnp.stack(outs, axis=0)
    return x, (h_t, c_t)


def _xavier_uniform(key, shape):
    fan_out, fan_in = shape[0], shape[1]
    bound = float(np.sqrt(6.0 / (fan_in + fan_out)))
    return jax.random.uniform(key, shape, jnp.float32, -bound, bound)


if __name__ == "__main__":
    # Module config (small shapes consistent with the module)
    input_size, hidden_size, num_layers = 16, 32, 2
    seq_sz, bs = 8, 4

    key = jax.random.PRNGKey(0)
    k0, k1, k2, k3, k4 = jax.random.split(key, 5)

    # Deterministic synthetic parameters (nonzero bias to exercise the gate permutation)
    W_ii0 = _xavier_uniform(k0, (input_size, hidden_size * 4))
    W_ii = _xavier_uniform(k1, (hidden_size, hidden_size * 4))
    W_hi = _xavier_uniform(k2, (hidden_size, hidden_size * 4))
    bias = 0.1 * jax.random.normal(k4, (hidden_size * 4,), jnp.float32)

    # Input: (seq, batch, feature)
    x = jax.random.normal(k3, (seq_sz, bs, input_size), jnp.float32)

    ref_seq, (ref_h, ref_c) = _reference_forward(x, W_ii0, W_ii, W_hi, bias, num_layers)

    # 1) f32 MXU operands, auto-chosen chunk (single chunk at this toy size)
    hidden_seq, (h_t, c_t) = optimized_lstm_forward(
        x, W_ii0, W_ii, W_hi, bias, num_layers)
    jax.block_until_ready((hidden_seq, h_t, c_t))
    np.testing.assert_allclose(np.asarray(hidden_seq), np.asarray(ref_seq),
                               rtol=1e-5, atol=1e-5)
    np.testing.assert_allclose(np.asarray(h_t), np.asarray(ref_h), rtol=1e-5, atol=1e-5)
    np.testing.assert_allclose(np.asarray(c_t), np.asarray(ref_c), rtol=1e-5, atol=1e-5)
    assert hidden_seq.shape == (seq_sz, bs, hidden_size)
    assert h_t.shape == (bs, hidden_size) and c_t.shape == (bs, hidden_size)

    # 2) forced multi-chunk grid (exercises the cross-chunk h/c state carry)
    hidden_seq2, (h_t2, c_t2) = optimized_lstm_forward(
        x, W_ii0, W_ii, W_hi, bias, num_layers, chunk_size=2)
    jax.block_until_ready((hidden_seq2, h_t2, c_t2))
    np.testing.assert_allclose(np.asarray(hidden_seq2), np.asarray(ref_seq),
                               rtol=1e-5, atol=1e-5)
    np.testing.assert_allclose(np.asarray(h_t2), np.asarray(ref_h), rtol=1e-5, atol=1e-5)
    np.testing.assert_allclose(np.asarray(c_t2), np.asarray(ref_c), rtol=1e-5, atol=1e-5)

    # 3) bf16 MXU operands (perf mode) — looser tolerance vs. the f32 reference
    hidden_seq3, (h_t3, c_t3) = optimized_lstm_forward(
        x, W_ii0, W_ii, W_hi, bias, num_layers, compute_dtype=jnp.bfloat16)
    jax.block_until_ready((hidden_seq3, h_t3, c_t3))
    np.testing.assert_allclose(np.asarray(hidden_seq3), np.asarray(ref_seq),
                               rtol=5e-2, atol=5e-2)

    print("KERNEL_OK")
</pallas_src>

<mosaic_0001>
module attributes {stable_mosaic.version = 11 : i64} {
  func.func @_fused_lstm_kernel(%arg0: i32, %arg1: memref<64x16xf32, #tpu.memory_space<vmem>>, %arg2: memref<16x512xf32, #tpu.memory_space<vmem>>, %arg3: memref<128x512xf32, #tpu.memory_space<vmem>>, %arg4: memref<128x512xf32, #tpu.memory_space<vmem>>, %arg5: memref<1x512xf32, #tpu.memory_space<vmem>>, %arg6: memref<64x128xf32, #tpu.memory_space<vmem>>, %arg7: memref<8x128xf32, #tpu.memory_space<vmem>>, %arg8: memref<8x128xf32, #tpu.memory_space<vmem>>, %arg9: memref<64x512xf32, #tpu.memory_space<vmem>>, %arg10: memref<64x128xf32, #tpu.memory_space<vmem>>, %arg11: memref<2x8x128xf32, #tpu.memory_space<vmem>>, %arg12: memref<2x8x128xf32, #tpu.memory_space<vmem>>) attributes {dimension_semantics = [#tpu.dimension_semantics<arbitrary>], iteration_bounds = array<i64: 1>, scalar_prefetch = 0 : i64, scratch_operands = 4 : i64, tpu.core_type = #tpu.core_type<tc>, window_params = [{transform_indices = @transform_0, window_bounds = array<i64: 64, 16>}, {pipeline_mode = #tpu.pipeline_mode<synchronous>, transform_indices = @transform_1, window_bounds = array<i64: 16, 512>}, {pipeline_mode = #tpu.pipeline_mode<synchronous>, transform_indices = @transform_2, window_bounds = array<i64: 128, 512>}, {pipeline_mode = #tpu.pipeline_mode<synchronous>, transform_indices = @transform_3, window_bounds = array<i64: 128, 512>}, {pipeline_mode = #tpu.pipeline_mode<synchronous>, transform_indices = @transform_4, window_bounds = array<i64: 1, 512>}, {transform_indices = @transform_5, window_bounds = array<i64: 64, 128>}, {pipeline_mode = #tpu.pipeline_mode<synchronous>, transform_indices = @transform_6, window_bounds = array<i64: 8, 128>}, {pipeline_mode = #tpu.pipeline_mode<synchronous>, transform_indices = @transform_7, window_bounds = array<i64: 8, 128>}]} {
    %c0_i32 = arith.constant 0 : i32
    %0 = arith.cmpi eq, %arg0, %c0_i32 : i32
    %1 = arith.extui %0 : i1 to i32
    %c0_i32_0 = arith.constant 0 : i32
    %2 = arith.cmpi ne, %1, %c0_i32_0 : i32
    scf.if %2 {
      %cst_202 = arith.constant 0.000000e+00 : f32
      %474 = vector.broadcast %cst_202 : f32 to vector<2x8x128xf32>
      %c0_203 = arith.constant 0 : index
      %c0_204 = arith.constant 0 : index
      %c0_205 = arith.constant 0 : index
      %475 = vector.load %arg11[%c0_203, %c0_204, %c0_205] : memref<2x8x128xf32, #tpu.memory_space<vmem>>, vector<2x8x128xf32>
      tpu.vector_store %arg11[%c0_203, %c0_204, %c0_205], %474 {strides = array<i32>} : memref<2x8x128xf32, #tpu.memory_space<vmem>>, vector<2x8x128xf32>,
      %cst_206 = arith.constant 0.000000e+00 : f32
      %476 = vector.broadcast %cst_206 : f32 to vector<2x8x128xf32>
      %c0_207 = arith.constant 0 : index
      %c0_208 = arith.constant 0 : index
      %c0_209 = arith.constant 0 : index
      %477 = vector.load %arg12[%c0_207, %c0_208, %c0_209] : memref<2x8x128xf32, #tpu.memory_space<vmem>>, vector<2x8x128xf32>
      tpu.vector_store %arg12[%c0_207, %c0_208, %c0_209], %476 {strides = array<i32>} : memref<2x8x128xf32, #tpu.memory_space<vmem>>, vector<2x8x128xf32>,
    } else {
    }
    %c0 = arith.constant 0 : index
    %c0_1 = arith.constant 0 : index
    %3 = vector.load %arg5[%c0, %c0_1] : memref<1x512xf32, #tpu.memory_space<vmem>>, vector<1x512xf32>
    %c0_2 = arith.constant 0 : index
    %c0_3 = arith.constant 0 : index
    %4 = vector.load %arg1[%c0_2, %c0_3] : memref<64x16xf32, #tpu.memory_space<vmem>>, vector<64x16xf32>
    %c0_4 = arith.constant 0 : index
    %c0_5 = arith.constant 0 : index
    %5 = vector.load %arg2[%c0_4, %c0_5] : memref<16x512xf32, #tpu.memory_space<vmem>>, vector<16x512xf32>
    %cst = arith.constant dense<0.000000e+00> : vector<64x512xf32>
    %6 = tpu.matmul %4, %5, %cst {dimension_numbers = #tpu.dot_dimension_numbers<[1], [0], [0], [1], [0, 0, 1, 1], [], []>} : vector<64x16xf32>, vector<16x512xf32>, vector<64x512xf32> -> vector<64x512xf32>
    %7 = vector.broadcast %3 : vector<1x512xf32> to vector<64x512xf32>
    %8 = arith.addf %6, %7 : vector<64x512xf32>
    %c0_6 = arith.constant 0 : index
    %c0_7 = arith.constant 0 : index
    %9 = vector.load %arg9[%c0_6, %c0_7] : memref<64x512xf32, #tpu.memory_space<vmem>>, vector<64x512xf32>
    tpu.vector_store %arg9[%c0_6, %c0_7], %8 {strides = array<i32>} : memref<64x512xf32, #tpu.memory_space<vmem>>, vector<64x512xf32>,
    %c0_8 = arith.constant 0 : index
    %c0_9 = arith.constant 0 : index
    %c0_10 = arith.constant 0 : index
    %10 = vector.load %arg11[%c0_8, %c0_9, %c0_10] : memref<2x8x128xf32, #tpu.memory_space<vmem>>, vector<1x8x128xf32>
    %11 = vector.shape_cast %10 : vector<1x8x128xf32> to vector<8x128xf32>
    %c0_11 = arith.constant 0 : index
    %c0_12 = arith.constant 0 : index
    %c0_13 = arith.constant 0 : index
    %12 = vector.load %arg12[%c0_11, %c0_12, %c0_13] : memref<2x8x128xf32, #tpu.memory_space<vmem>>, vector<1x8x128xf32>
    %13 = vector.shape_cast %12 : vector<1x8x128xf32> to vector<8x128xf32>
    %c0_i32_14 = arith.constant 0 : i32
    %c8_i32 = arith.constant 8 : i32
    %14 = arith.muli %c0_i32_14, %c8_i32 : i32
    %15 = tpu.assume_multiple %14, 8 : i32
    %16 = arith.index_cast %15 : i32 to index
    %c0_15 = arith.constant 0 : index
    %17 = vector.load %arg9[%16, %c0_15] : memref<64x512xf32, #tpu.memory_space<vmem>>, vector<8x512xf32>
    %c0_16 = arith.constant 0 : index
    %c0_17 = arith.constant 0 : index
    %18 = vector.load %arg4[%c0_16, %c0_17] : memref<128x512xf32, #tpu.memory_space<vmem>>, vector<128x512xf32>
    %cst_18 = arith.constant dense<0.000000e+00> : vector<8x512xf32>
    %19 = tpu.matmul %11, %18, %cst_18 {dimension_numbers = #tpu.dot_dimension_numbers<[1], [0], [0], [1], [0, 0, 1, 1], [], []>} : vector<8x128xf32>, vector<128x512xf32>, vector<8x512xf32> -> vector<8x512xf32>
    %20 = arith.addf %17, %19 : vector<8x512xf32>
    %21 = vector.extract_strided_slice %20 {offsets = [0, 0], sizes = [8, 384], strides = [1, 1]} : vector<8x512xf32> to vector<8x384xf32>
    %cst_19 = arith.constant 5.000000e-01 : f32
    %22 = vector.broadcast %cst_19 : f32 to vector<8x384xf32>
    %23 = arith.mulf %22, %21 : vector<8x384xf32>
    %24 = math.tanh %23 : vector<8x384xf32>
    %cst_20 = arith.constant 1.000000e+00 : f32
    %25 = vector.broadcast %cst_20 : f32 to vector<8x384xf32>
    %26 = arith.addf %24, %25 : vector<8x384xf32>
    %cst_21 = arith.constant 5.000000e-01 : f32
    %27 = vector.broadcast %cst_21 : f32 to vector<8x384xf32>
    %28 = arith.mulf %27, %26 : vector<8x384xf32>
    %29 = vector.extract_strided_slice %28 {offsets = [0, 0], sizes = [8, 128], strides = [1, 1]} : vector<8x384xf32> to vector<8x128xf32>
    %30 = vector.extract_strided_slice %28 {offsets = [0, 128], sizes = [8, 128], strides = [1, 1]} : vector<8x384xf32> to vector<8x128xf32>
    %31 = vector.extract_strided_slice %28 {offsets = [0, 256], sizes = [8, 128], strides = [1, 1]} : vector<8x384xf32> to vector<8x128xf32>
    %32 = vector.extract_strided_slice %20 {offsets = [0, 384], sizes = [8, 128], strides = [1, 1]} : vector<8x512xf32> to vector<8x128xf32>
    %33 = math.tanh %32 : vector<8x128xf32>
    %34 = arith.mulf %30, %13 : vector<8x128xf32>
    %35 = arith.mulf %29, %33 : vector<8x128xf32>
    %36 = arith.addf %34, %35 : vector<8x128xf32>
    %37 = math.tanh %36 : vector<8x128xf32>
    %38 = arith.mulf %31, %37 : vector<8x128xf32>
    %39 = arith.index_cast %15 : i32 to index
    %c0_22 = arith.constant 0 : index
    %40 = vector.load %arg10[%39, %c0_22] : memref<64x128xf32, #tpu.memory_space<vmem>>, vector<8x128xf32>
    tpu.vector_store %arg10[%39, %c0_22], %38 {strides = array<i32>} : memref<64x128xf32, #tpu.memory_space<vmem>>, vector<8x128xf32>,
    %c1_i32 = arith.constant 1 : i32
    %c8_i32_23 = arith.constant 8 : i32
    %41 = arith.muli %c1_i32, %c8_i32_23 : i32
    %42 = tpu.assume_multiple %41, 8 : i32
    %43 = arith.index_cast %42 : i32 to index
    %c0_24 = arith.constant 0 : index
    %44 = vector.load %arg9[%43, %c0_24] : memref<64x512xf32, #tpu.memory_space<vmem>>, vector<8x512xf32>
    %c0_25 = arith.constant 0 : index
    %c0_26 = arith.constant 0 : index
    %45 = vector.load %arg4[%c0_25, %c0_26] : memref<128x512xf32, #tpu.memory_space<vmem>>, vector<128x512xf32>
    %cst_27 = arith.constant dense<0.000000e+00> : vector<8x512xf32>
    %46 = tpu.matmul %38, %45, %cst_27 {dimension_numbers = #tpu.dot_dimension_numbers<[1], [0], [0], [1], [0, 0, 1, 1], [], []>} : vector<8x128xf32>, vector<128x512xf32>, vector<8x512xf32> -> vector<8x512xf32>
    %47 = arith.addf %44, %46 : vector<8x512xf32>
    %48 = vector.extract_strided_slice %47 {offsets = [0, 0], sizes = [8, 384], strides = [1, 1]} : vector<8x512xf32> to vector<8x384xf32>
    %cst_28 = arith.constant 5.000000e-01 : f32
    %49 = vector.broadcast %cst_28 : f32 to vector<8x384xf32>
    %50 = arith.mulf %49, %48 : vector<8x384xf32>
    %51 = math.tanh %50 : vector<8x384xf32>
    %cst_29 = arith.constant 1.000000e+00 : f32
    %52 = vector.broadcast %cst_29 : f32 to vector<8x384xf32>
    %53 = arith.addf %51, %52 : vector<8x384xf32>
    %cst_30 = arith.constant 5.000000e-01 : f32
    %54 = vector.broadcast %cst_30 : f32 to vector<8x384xf32>
    %55 = arith.mulf %54, %53 : vector<8x384xf32>
    %56 = vector.extract_strided_slice %55 {offsets = [0, 0], sizes = [8, 128], strides = [1, 1]} : vector<8x384xf32> to vector<8x128xf32>
    %57 = vector.extract_strided_slice %55 {offsets = [0, 128], sizes = [8, 128], strides = [1, 1]} : vector<8x384xf32> to vector<8x128xf32>
    %58 = vector.extract_strided_slice %55 {offsets = [0, 256], sizes = [8, 128], strides = [1, 1]} : vector<8x384xf32> to vector<8x128xf32>
    %59 = vector.extract_strided_slice %47 {offsets = [0, 384], sizes = [8, 128], strides = [1, 1]} : vector<8x512xf32> to vector<8x128xf32>
    %60 = math.tanh %59 : vector<8x128xf32>
    %61 = arith.mulf %57, %36 : vector<8x128xf32>
    %62 = arith.mulf %56, %60 : vector<8x128xf32>
    %63 = arith.addf %61, %62 : vector<8x128xf32>
    %64 = math.tanh %63 : vector<8x128xf32>
    %65 = arith.mulf %58, %64 : vector<8x128xf32>
    %66 = arith.index_cast %42 : i32 to index
    %c0_31 = arith.constant 0 : index
    %67 = vector.load %arg10[%66, %c0_31] : memref<64x128xf32, #tpu.memory_space<vmem>>, vector<8x128xf32>
    tpu.vector_store %arg10[%66, %c0_31], %65 {strides = array<i32>} : memref<64x128xf32, #tpu.memory_space<vmem>>, vector<8x128xf32>,
    %c2_i32 = arith.constant 2 : i32
    %c8_i32_32 = arith.constant 8 : i32
    %68 = arith.muli %c2_i32, %c8_i32_32 : i32
    %69 = tpu.assume_multiple %68, 8 : i32
    %70 = arith.index_cast %69 : i32 to index
    %c0_33 = arith.constant 0 : index
    %71 = vector.load %arg9[%70, %c0_33] : memref<64x512xf32, #tpu.memory_space<vmem>>, vector<8x512xf32>
    %c0_34 = arith.constant 0 : index
    %c0_35 = arith.constant 0 : index
    %72 = vector.load %arg4[%c0_34, %c0_35] : memref<128x512xf32, #tpu.memory_space<vmem>>, vector<128x512xf32>
    %cst_36 = arith.constant dense<0.000000e+00> : vector<8x512xf32>
    %73 = tpu.matmul %65, %72, %cst_36 {dimension_numbers = #tpu.dot_dimension_numbers<[1], [0], [0], [1], [0, 0, 1, 1], [], []>} : vector<8x128xf32>, vector<128x512xf32>, vector<8x512xf32> -> vector<8x512xf32>
    %74 = arith.addf %71, %73 : vector<8x512xf32>
    %75 = vector.extract_strided_slice %74 {offsets = [0, 0], sizes = [8, 384], strides = [1, 1]} : vector<8x512xf32> to vector<8x384xf32>
    %cst_37 = arith.constant 5.000000e-01 : f32
    %76 = vector.broadcast %cst_37 : f32 to vector<8x384xf32>
    %77 = arith.mulf %76, %75 : vector<8x384xf32>
    %78 = math.tanh %77 : vector<8x384xf32>
    %cst_38 = arith.constant 1.000000e+00 : f32
    %79 = vector.broadcast %cst_38 : f32 to vector<8x384xf32>
    %80 = arith.addf %78, %79 : vector<8x384xf32>
    %cst_39 = arith.constant 5.000000e-01 : f32
    %81 = vector.broadcast %cst_39 : f32 to vector<8x384xf32>
    %82 = arith.mulf %81, %80 : vector<8x384xf32>
    %83 = vector.extract_strided_slice %82 {offsets = [0, 0], sizes = [8, 128], strides = [1, 1]} : vector<8x384xf32> to vector<8x128xf32>
    %84 = vector.extract_strided_slice %82 {offsets = [0, 128], sizes = [8, 128], strides = [1, 1]} : vector<8x384xf32> to vector<8x128xf32>
    %85 = vector.extract_strided_slice %82 {offsets = [0, 256], sizes = [8, 128], strides = [1, 1]} : vector<8x384xf32> to vector<8x128xf32>
    %86 = vector.extract_strided_slice %74 {offsets = [0, 384], sizes = [8, 128], strides = [1, 1]} : vector<8x512xf32> to vector<8x128xf32>
    %87 = math.tanh %86 : vector<8x128xf32>
    %88 = arith.mulf %84, %63 : vector<8x128xf32>
    %89 = arith.mulf %83, %87 : vector<8x128xf32>
    %90 = arith.addf %88, %89 : vector<8x128xf32>
    %91 = math.tanh %90 : vector<8x128xf32>
    %92 = arith.mulf %85, %91 : vector<8x128xf32>
    %93 = arith.index_cast %69 : i32 to index
    %c0_40 = arith.constant 0 : index
    %94 = vector.load %arg10[%93, %c0_40] : memref<64x128xf32, #tpu.memory_space<vmem>>, vector<8x128xf32>
    tpu.vector_store %arg10[%93, %c0_40], %92 {strides = array<i32>} : memref<64x128xf32, #tpu.memory_space<vmem>>, vector<8x128xf32>,
    %c3_i32 = arith.constant 3 : i32
    %c8_i32_41 = arith.constant 8 : i32
    %95 = arith.muli %c3_i32, %c8_i32_41 : i32
    %96 = tpu.assume_multiple %95, 8 : i32
    %97 = arith.index_cast %96 : i32 to index
    %c0_42 = arith.constant 0 : index
    %98 = vector.load %arg9[%97, %c0_42] : memref<64x512xf32, #tpu.memory_space<vmem>>, vector<8x512xf32>
    %c0_43 = arith.constant 0 : index
    %c0_44 = arith.constant 0 : index
    %99 = vector.load %arg4[%c0_43, %c0_44] : memref<128x512xf32, #tpu.memory_space<vmem>>, vector<128x512xf32>
    %cst_45 = arith.constant dense<0.000000e+00> : vector<8x512xf32>
    %100 = tpu.matmul %92, %99, %cst_45 {dimension_numbers = #tpu.dot_dimension_numbers<[1], [0], [0], [1], [0, 0, 1, 1], [], []>} : vector<8x128xf32>, vector<128x512xf32>, vector<8x512xf32> -> vector<8x512xf32>
    %101 = arith.addf %98, %100 : vector<8x512xf32>
    %102 = vector.extract_strided_slice %101 {offsets = [0, 0], sizes = [8, 384], strides = [1, 1]} : vector<8x512xf32> to vector<8x384xf32>
    %cst_46 = arith.constant 5.000000e-01 : f32
    %103 = vector.broadcast %cst_46 : f32 to vector<8x384xf32>
    %104 = arith.mulf %103, %102 : vector<8x384xf32>
    %105 = math.tanh %104 : vector<8x384xf32>
    %cst_47 = arith.constant 1.000000e+00 : f32
    %106 = vector.broadcast %cst_47 : f32 to vector<8x384xf32>
    %107 = arith.addf %105, %106 : vector<8x384xf32>
    %cst_48 = arith.constant 5.000000e-01 : f32
    %108 = vector.broadcast %cst_48 : f32 to vector<8x384xf32>
    %109 = arith.mulf %108, %107 : vector<8x384xf32>
    %110 = vector.extract_strided_slice %109 {offsets = [0, 0], sizes = [8, 128], strides = [1, 1]} : vector<8x384xf32> to vector<8x128xf32>
    %111 = vector.extract_strided_slice %109 {offsets = [0, 128], sizes = [8, 128], strides = [1, 1]} : vector<8x384xf32> to vector<8x128xf32>
    %112 = vector.extract_strided_slice %109 {offsets = [0, 256], sizes = [8, 128], strides = [1, 1]} : vector<8x384xf32> to vector<8x128xf32>
    %113 = vector.extract_strided_slice %101 {offsets = [0, 384], sizes = [8, 128], strides = [1, 1]} : vector<8x512xf32> to vector<8x128xf32>
    %114 = math.tanh %113 : vector<8x128xf32>
    %115 = arith.mulf %111, %90 : vector<8x128xf32>
    %116 = arith.mulf %110, %114 : vector<8x128xf32>
    %117 = arith.addf %115, %116 : vector<8x128xf32>
    %118 = math.tanh %117 : vector<8x128xf32>
    %119 = arith.mulf %112, %118 : vector<8x128xf32>
    %120 = arith.index_cast %96 : i32 to index
    %c0_49 = arith.constant 0 : index
    %121 = vector.load %arg10[%120, %c0_49] : memref<64x128xf32, #tpu.memory_space<vmem>>, vector<8x128xf32>
    tpu.vector_store %arg10[%120, %c0_49], %119 {strides = array<i32>} : memref<64x128xf32, #tpu.memory_space<vmem>>, vector<8x128xf32>,
    %c4_i32 = arith.constant 4 : i32
    %c8_i32_50 = arith.constant 8 : i32
    %122 = arith.muli %c4_i32, %c8_i32_50 : i32
    %123 = tpu.assume_multiple %122, 8 : i32
    %124 = arith.index_cast %123 : i32 to index
    %c0_51 = arith.constant 0 : index
    %125 = vector.load %arg9[%124, %c0_51] : memref<64x512xf32, #tpu.memory_space<vmem>>, vector<8x512xf32>
    %c0_52 = arith.constant 0 : index
    %c0_53 = arith.constant 0 : index
    %126 = vector.load %arg4[%c0_52, %c0_53] : memref<128x512xf32, #tpu.memory_space<vmem>>, vector<128x512xf32>
    %cst_54 = arith.constant dense<0.000000e+00> : vector<8x512xf32>
    %127 = tpu.matmul %119, %126, %cst_54 {dimension_numbers = #tpu.dot_dimension_numbers<[1], [0], [0], [1], [0, 0, 1, 1], [], []>} : vector<8x128xf32>, vector<128x512xf32>, vector<8x512xf32> -> vector<8x512xf32>
    %128 = arith.addf %125, %127 : vector<8x512xf32>
    %129 = vector.extract_strided_slice %128 {offsets = [0, 0], sizes = [8, 384], strides = [1, 1]} : vector<8x512xf32> to vector<8x384xf32>
    %cst_55 = arith.constant 5.000000e-01 : f32
    %130 = vector.broadcast %cst_55 : f32 to vector<8x384xf32>
    %131 = arith.mulf %130, %129 : vector<8x384xf32>
    %132 = math.tanh %131 : vector<8x384xf32>
    %cst_56 = arith.constant 1.000000e+00 : f32
    %133 = vector.broadcast %cst_56 : f32 to vector<8x384xf32>
    %134 = arith.addf %132, %133 : vector<8x384xf32>
    %cst_57 = arith.constant 5.000000e-01 : f32
    %135 = vector.broadcast %cst_57 : f32 to vector<8x384xf32>
    %136 = arith.mulf %135, %134 : vector<8x384xf32>
    %137 = vector.extract_strided_slice %136 {offsets = [0, 0], sizes = [8, 128], strides = [1, 1]} : vector<8x384xf32> to vector<8x128xf32>
    %138 = vector.extract_strided_slice %136 {offsets = [0, 128], sizes = [8, 128], strides = [1, 1]} : vector<8x384xf32> to vector<8x128xf32>
    %139 = vector.extract_strided_slice %136 {offsets = [0, 256], sizes = [8, 128], strides = [1, 1]} : vector<8x384xf32> to vector<8x128xf32>
    %140 = vector.extract_strided_slice %128 {offsets = [0, 384], sizes = [8, 128], strides = [1, 1]} : vector<8x512xf32> to vector<8x128xf32>
    %141 = math.tanh %140 : vector<8x128xf32>
    %142 = arith.mulf %138, %117 : vector<8x128xf32>
    %143 = arith.mulf %137, %141 : vector<8x128xf32>
    %144 = arith.addf %142, %143 : vector<8x128xf32>
    %145 = math.tanh %144 : vector<8x128xf32>
    %146 = arith.mulf %139, %145 : vector<8x128xf32>
    %147 = arith.index_cast %123 : i32 to index
    %c0_58 = arith.constant 0 : index
    %148 = vector.load %arg10[%147, %c0_58] : memref<64x128xf32, #tpu.memory_space<vmem>>, vector<8x128xf32>
    tpu.vector_store %arg10[%147, %c0_58], %146 {strides = array<i32>} : memref<64x128xf32, #tpu.memory_space<vmem>>, vector<8x128xf32>,
    %c5_i32 = arith.constant 5 : i32
    %c8_i32_59 = arith.constant 8 : i32
    %149 = arith.muli %c5_i32, %c8_i32_59 : i32
    %150 = tpu.assume_multiple %149, 8 : i32
    %151 = arith.index_cast %150 : i32 to index
    %c0_60 = arith.constant 0 : index
    %152 = vector.load %arg9[%151, %c0_60] : memref<64x512xf32, #tpu.memory_space<vmem>>, vector<8x512xf32>
    %c0_61 = arith.constant 0 : index
    %c0_62 = arith.constant 0 : index
    %153 = vector.load %arg4[%c0_61, %c0_62] : memref<128x512xf32, #tpu.memory_space<vmem>>, vector<128x512xf32>
    %cst_63 = arith.constant dense<0.000000e+00> : vector<8x512xf32>
    %154 = tpu.matmul %146, %153, %cst_63 {dimension_numbers = #tpu.dot_dimension_numbers<[1], [0], [0], [1], [0, 0, 1, 1], [], []>} : vector<8x128xf32>, vector<128x512xf32>, vector<8x512xf32> -> vector<8x512xf32>
    %155 = arith.addf %152, %154 : vector<8x512xf32>
    %156 = vector.extract_strided_slice %155 {offsets = [0, 0], sizes = [8, 384], strides = [1, 1]} : vector<8x512xf32> to vector<8x384xf32>
    %cst_64 = arith.constant 5.000000e-01 : f32
    %157 = vector.broadcast %cst_64 : f32 to vector<8x384xf32>
    %158 = arith.mulf %157, %156 : vector<8x384xf32>
    %159 = math.tanh %158 : vector<8x384xf32>
    %cst_65 = arith.constant 1.000000e+00 : f32
    %160 = vector.broadcast %cst_65 : f32 to vector<8x384xf32>
    %161 = arith.addf %159, %160 : vector<8x384xf32>
    %cst_66 = arith.constant 5.000000e-01 : f32
    %162 = vector.broadcast %cst_66 : f32 to vector<8x384xf32>
    %163 = arith.mulf %162, %161 : vector<8x384xf32>
    %164 = vector.extract_strided_slice %163 {offsets = [0, 0], sizes = [8, 128], strides = [1, 1]} : vector<8x384xf32> to vector<8x128xf32>
    %165 = vector.extract_strided_slice %163 {offsets = [0, 128], sizes = [8, 128], strides = [1, 1]} : vector<8x384xf32> to vector<8x128xf32>
    %166 = vector.extract_strided_slice %163 {offsets = [0, 256], sizes = [8, 128], strides = [1, 1]} : vector<8x384xf32> to vector<8x128xf32>
    %167 = vector.extract_strided_slice %155 {offsets = [0, 384], sizes = [8, 128], strides = [1, 1]} : vector<8x512xf32> to vector<8x128xf32>
    %168 = math.tanh %167 : vector<8x128xf32>
    %169 = arith.mulf %165, %144 : vector<8x128xf32>
    %170 = arith.mulf %164, %168 : vector<8x128xf32>
    %171 = arith.addf %169, %170 : vector<8x128xf32>
    %172 = math.tanh %171 : vector<8x128xf32>
    %173 = arith.mulf %166, %172 : vector<8x128xf32>
    %174 = arith.index_cast %150 : i32 to index
    %c0_67 = arith.constant 0 : index
    %175 = vector.load %arg10[%174, %c0_67] : memref<64x128xf32, #tpu.memory_space<vmem>>, vector<8x128xf32>
    tpu.vector_store %arg10[%174, %c0_67], %173 {strides = array<i32>} : memref<64x128xf32, #tpu.memory_space<vmem>>, vector<8x128xf32>,
    %c6_i32 = arith.constant 6 : i32
    %c8_i32_68 = arith.constant 8 : i32
    %176 = arith.muli %c6_i32, %c8_i32_68 : i32
    %177 = tpu.assume_multiple %176, 8 : i32
    %178 = arith.index_cast %177 : i32 to index
    %c0_69 = arith.constant 0 : index
    %179 = vector.load %arg9[%178, %c0_69] : memref<64x512xf32, #tpu.memory_space<vmem>>, vector<8x512xf32>
    %c0_70 = arith.constant 0 : index
    %c0_71 = arith.constant 0 : index
    %180 = vector.load %arg4[%c0_70, %c0_71] : memref<128x512xf32, #tpu.memory_space<vmem>>, vector<128x512xf32>
    %cst_72 = arith.constant dense<0.000000e+00> : vector<8x512xf32>
    %181 = tpu.matmul %173, %180, %cst_72 {dimension_numbers = #tpu.dot_dimension_numbers<[1], [0], [0], [1], [0, 0, 1, 1], [], []>} : vector<8x128xf32>, vector<128x512xf32>, vector<8x512xf32> -> vector<8x512xf32>
    %182 = arith.addf %179, %181 : vector<8x512xf32>
    %183 = vector.extract_strided_slice %182 {offsets = [0, 0], sizes = [8, 384], strides = [1, 1]} : vector<8x512xf32> to vector<8x384xf32>
    %cst_73 = arith.constant 5.000000e-01 : f32
    %184 = vector.broadcast %cst_73 : f32 to vector<8x384xf32>
    %185 = arith.mulf %184, %183 : vector<8x384xf32>
    %186 = math.tanh %185 : vector<8x384xf32>
    %cst_74 = arith.constant 1.000000e+00 : f32
    %187 = vector.broadcast %cst_74 : f32 to vector<8x384xf32>
    %188 = arith.addf %186, %187 : vector<8x384xf32>
    %cst_75 = arith.constant 5.000000e-01 : f32
    %189 = vector.broadcast %cst_75 : f32 to vector<8x384xf32>
    %190 = arith.mulf %189, %188 : vector<8x384xf32>
    %191 = vector.extract_strided_slice %190 {offsets = [0, 0], sizes = [8, 128], strides = [1, 1]} : vector<8x384xf32> to vector<8x128xf32>
    %192 = vector.extract_strided_slice %190 {offsets = [0, 128], sizes = [8, 128], strides = [1, 1]} : vector<8x384xf32> to vector<8x128xf32>
    %193 = vector.extract_strided_slice %190 {offsets = [0, 256], sizes = [8, 128], strides = [1, 1]} : vector<8x384xf32> to vector<8x128xf32>
    %194 = vector.extract_strided_slice %182 {offsets = [0, 384], sizes = [8, 128], strides = [1, 1]} : vector<8x512xf32> to vector<8x128xf32>
    %195 = math.tanh %194 : vector<8x128xf32>
    %196 = arith.mulf %192, %171 : vector<8x128xf32>
    %197 = arith.mulf %191, %195 : vector<8x128xf32>
    %198 = arith.addf %196, %197 : vector<8x128xf32>
    %199 = math.tanh %198 : vector<8x128xf32>
    %200 = arith.mulf %193, %199 : vector<8x128xf32>
    %201 = arith.index_cast %177 : i32 to index
    %c0_76 = arith.constant 0 : index
    %202 = vector.load %arg10[%201, %c0_76] : memref<64x128xf32, #tpu.memory_space<vmem>>, vector<8x128xf32>
    tpu.vector_store %arg10[%201, %c0_76], %200 {strides = array<i32>} : memref<64x128xf32, #tpu.memory_space<vmem>>, vector<8x128xf32>,
    %c7_i32 = arith.constant 7 : i32
    %c8_i32_77 = arith.constant 8 : i32
    %203 = arith.muli %c7_i32, %c8_i32_77 : i32
    %204 = tpu.assume_multiple %203, 8 : i32
    %205 = arith.index_cast %204 : i32 to index
    %c0_78 = arith.constant 0 : index
    %206 = vector.load %arg9[%205, %c0_78] : memref<64x512xf32, #tpu.memory_space<vmem>>, vector<8x512xf32>
    %c0_79 = arith.constant 0 : index
    %c0_80 = arith.constant 0 : index
    %207 = vector.load %arg4[%c0_79, %c0_80] : memref<128x512xf32, #tpu.memory_space<vmem>>, vector<128x512xf32>
    %cst_81 = arith.constant dense<0.000000e+00> : vector<8x512xf32>
    %208 = tpu.matmul %200, %207, %cst_81 {dimension_numbers = #tpu.dot_dimension_numbers<[1], [0], [0], [1], [0, 0, 1, 1], [], []>} : vector<8x128xf32>, vector<128x512xf32>, vector<8x512xf32> -> vector<8x512xf32>
    %209 = arith.addf %206, %208 : vector<8x512xf32>
    %210 = vector.extract_strided_slice %209 {offsets = [0, 0], sizes = [8, 384], strides = [1, 1]} : vector<8x512xf32> to vector<8x384xf32>
    %cst_82 = arith.constant 5.000000e-01 : f32
    %211 = vector.broadcast %cst_82 : f32 to vector<8x384xf32>
    %212 = arith.mulf %211, %210 : vector<8x384xf32>
    %213 = math.tanh %212 : vector<8x384xf32>
    %cst_83 = arith.constant 1.000000e+00 : f32
    %214 = vector.broadcast %cst_83 : f32 to vector<8x384xf32>
    %215 = arith.addf %213, %214 : vector<8x384xf32>
    %cst_84 = arith.constant 5.000000e-01 : f32
    %216 = vector.broadcast %cst_84 : f32 to vector<8x384xf32>
    %217 = arith.mulf %216, %215 : vector<8x384xf32>
    %218 = vector.extract_strided_slice %217 {offsets = [0, 0], sizes = [8, 128], strides = [1, 1]} : vector<8x384xf32> to vector<8x128xf32>
    %219 = vector.extract_strided_slice %217 {offsets = [0, 128], sizes = [8, 128], strides = [1, 1]} : vector<8x384xf32> to vector<8x128xf32>
    %220 = vector.extract_strided_slice %217 {offsets = [0, 256], sizes = [8, 128], strides = [1, 1]} : vector<8x384xf32> to vector<8x128xf32>
    %221 = vector.extract_strided_slice %209 {offsets = [0, 384], sizes = [8, 128], strides = [1, 1]} : vector<8x512xf32> to vector<8x128xf32>
    %222 = math.tanh %221 : vector<8x128xf32>
    %223 = arith.mulf %219, %198 : vector<8x128xf32>
    %224 = arith.mulf %218, %222 : vector<8x128xf32>
    %225 = arith.addf %223, %224 : vector<8x128xf32>
    %226 = math.tanh %225 : vector<8x128xf32>
    %227 = arith.mulf %220, %226 : vector<8x128xf32>
    %228 = arith.index_cast %204 : i32 to index
    %c0_85 = arith.constant 0 : index
    %229 = vector.load %arg10[%228, %c0_85] : memref<64x128xf32, #tpu.memory_space<vmem>>, vector<8x128xf32>
    tpu.vector_store %arg10[%228, %c0_85], %227 {strides = array<i32>} : memref<64x128xf32, #tpu.memory_space<vmem>>, vector<8x128xf32>,
    %c8_i32_86 = arith.constant 8 : i32
    %c0_87 = arith.constant 0 : index
    %c0_88 = arith.constant 0 : index
    %c0_89 = arith.constant 0 : index
    %230 = vector.load %arg11[%c0_87, %c0_88, %c0_89] : memref<2x8x128xf32, #tpu.memory_space<vmem>>, vector<1x8x128xf32>
    %231 = vector.shape_cast %230 : vector<1x8x128xf32> to vector<8x128xf32>
    %232 = vector.shape_cast %227 : vector<8x128xf32> to vector<1x8x128xf32>
    tpu.vector_store %arg11[%c0_87, %c0_88, %c0_89], %232 {strides = array<i32>} : memref<2x8x128xf32, #tpu.memory_space<vmem>>, vector<1x8x128xf32>,
    %c0_90 = arith.constant 0 : index
    %c0_91 = arith.constant 0 : index
    %c0_92 = arith.constant 0 : index
    %233 = vector.load %arg12[%c0_90, %c0_91, %c0_92] : memref<2x8x128xf32, #tpu.memory_space<vmem>>, vector<1x8x128xf32>
    %234 = vector.shape_cast %233 : vector<1x8x128xf32> to vector<8x128xf32>
    %235 = vector.shape_cast %225 : vector<8x128xf32> to vector<1x8x128xf32>
    tpu.vector_store %arg12[%c0_90, %c0_91, %c0_92], %235 {strides = array<i32>} : memref<2x8x128xf32, #tpu.memory_space<vmem>>, vector<1x8x128xf32>,
    %c0_93 = arith.constant 0 : index
    %c0_94 = arith.constant 0 : index
    %236 = vector.load %arg10[%c0_93, %c0_94] : memref<64x128xf32, #tpu.memory_space<vmem>>, vector<64x128xf32>
    %c0_95 = arith.constant 0 : index
    %c0_96 = arith.constant 0 : index
    %237 = vector.load %arg3[%c0_95, %c0_96] : memref<128x512xf32, #tpu.memory_space<vmem>>, vector<128x512xf32>
    %cst_97 = arith.constant dense<0.000000e+00> : vector<64x512xf32>
    %238 = tpu.matmul %236, %237, %cst_97 {dimension_numbers = #tpu.dot_dimension_numbers<[1], [0], [0], [1], [0, 0, 1, 1], [], []>} : vector<64x128xf32>, vector<128x512xf32>, vector<64x512xf32> -> vector<64x512xf32>
    %239 = vector.broadcast %3 : vector<1x512xf32> to vector<64x512xf32>
    %240 = arith.addf %238, %239 : vector<64x512xf32>
    %c0_98 = arith.constant 0 : index
    %c0_99 = arith.constant 0 : index
    %241 = vector.load %arg9[%c0_98, %c0_99] : memref<64x512xf32, #tpu.memory_space<vmem>>, vector<64x512xf32>
    tpu.vector_store %arg9[%c0_98, %c0_99], %240 {strides = array<i32>} : memref<64x512xf32, #tpu.memory_space<vmem>>, vector<64x512xf32>,
    %c1 = arith.constant 1 : index
    %c0_100 = arith.constant 0 : index
    %c0_101 = arith.constant 0 : index
    %242 = vector.load %arg11[%c1, %c0_100, %c0_101] : memref<2x8x128xf32, #tpu.memory_space<vmem>>, vector<1x8x128xf32>
    %243 = vector.shape_cast %242 : vector<1x8x128xf32> to vector<8x128xf32>
    %c1_102 = arith.constant 1 : index
    %c0_103 = arith.constant 0 : index
    %c0_104 = arith.constant 0 : index
    %244 = vector.load %arg12[%c1_102, %c0_103, %c0_104] : memref<2x8x128xf32, #tpu.memory_space<vmem>>, vector<1x8x128xf32>
    %245 = vector.shape_cast %244 : vector<1x8x128xf32> to vector<8x128xf32>
    %c0_i32_105 = arith.constant 0 : i32
    %c8_i32_106 = arith.constant 8 : i32
    %246 = arith.muli %c0_i32_105, %c8_i32_106 : i32
    %247 = tpu.assume_multiple %246, 8 : i32
    %248 = arith.index_cast %247 : i32 to index
    %c0_107 = arith.constant 0 : index
    %249 = vector.load %arg9[%248, %c0_107] : memref<64x512xf32, #tpu.memory_space<vmem>>, vector<8x512xf32>
    %c0_108 = arith.constant 0 : index
    %c0_109 = arith.constant 0 : index
    %250 = vector.load %arg4[%c0_108, %c0_109] : memref<128x512xf32, #tpu.memory_space<vmem>>, vector<128x512xf32>
    %cst_110 = arith.constant dense<0.000000e+00> : vector<8x512xf32>
    %251 = tpu.matmul %243, %250, %cst_110 {dimension_numbers = #tpu.dot_dimension_numbers<[1], [0], [0], [1], [0, 0, 1, 1], [], []>} : vector<8x128xf32>, vector<128x512xf32>, vector<8x512xf32> -> vector<8x512xf32>
    %252 = arith.addf %249, %251 : vector<8x512xf32>
    %253 = vector.extract_strided_slice %252 {offsets = [0, 0], sizes = [8, 384], strides = [1, 1]} : vector<8x512xf32> to vector<8x384xf32>
    %cst_111 = arith.constant 5.000000e-01 : f32
    %254 = vector.broadcast %cst_111 : f32 to vector<8x384xf32>
    %255 = arith.mulf %254, %253 : vector<8x384xf32>
    %256 = math.tanh %255 : vector<8x384xf32>
    %cst_112 = arith.constant 1.000000e+00 : f32
    %257 = vector.broadcast %cst_112 : f32 to vector<8x384xf32>
    %258 = arith.addf %256, %257 : vector<8x384xf32>
    %cst_113 = arith.constant 5.000000e-01 : f32
    %259 = vector.broadcast %cst_113 : f32 to vector<8x384xf32>
    %260 = arith.mulf %259, %258 : vector<8x384xf32>
    %261 = vector.extract_strided_slice %260 {offsets = [0, 0], sizes = [8, 128], strides = [1, 1]} : vector<8x384xf32> to vector<8x128xf32>
    %262 = vector.extract_strided_slice %260 {offsets = [0, 128], sizes = [8, 128], strides = [1, 1]} : vector<8x384xf32> to vector<8x128xf32>
    %263 = vector.extract_strided_slice %260 {offsets = [0, 256], sizes = [8, 128], strides = [1, 1]} : vector<8x384xf32> to vector<8x128xf32>
    %264 = vector.extract_strided_slice %252 {offsets = [0, 384], sizes = [8, 128], strides = [1, 1]} : vector<8x512xf32> to vector<8x128xf32>
    %265 = math.tanh %264 : vector<8x128xf32>
    %266 = arith.mulf %262, %245 : vector<8x128xf32>
    %267 = arith.mulf %261, %265 : vector<8x128xf32>
    %268 = arith.addf %266, %267 : vector<8x128xf32>
    %269 = math.tanh %268 : vector<8x128xf32>
    %270 = arith.mulf %263, %269 : vector<8x128xf32>
    %271 = arith.index_cast %247 : i32 to index
    %c0_114 = arith.constant 0 : index
    %272 = vector.load %arg6[%271, %c0_114] : memref<64x128xf32, #tpu.memory_space<vmem>>, vector<8x128xf32>
    tpu.vector_store %arg6[%271, %c0_114], %270 {strides = array<i32>} : memref<64x128xf32, #tpu.memory_space<vmem>>, vector<8x128xf32>,
    %c1_i32_115 = arith.constant 1 : i32
    %c8_i32_116 = arith.constant 8 : i32
    %273 = arith.muli %c1_i32_115, %c8_i32_116 : i32
    %274 = tpu.assume_multiple %273, 8 : i32
    %275 = arith.index_cast %274 : i32 to index
    %c0_117 = arith.constant 0 : index
    %276 = vector.load %arg9[%275, %c0_117] : memref<64x512xf32, #tpu.memory_space<vmem>>, vector<8x512xf32>
    %c0_118 = arith.constant 0 : index
    %c0_119 = arith.constant 0 : index
    %277 = vector.load %arg4[%c0_118, %c0_119] : memref<128x512xf32, #tpu.memory_space<vmem>>, vector<128x512xf32>
    %cst_120 = arith.constant dense<0.000000e+00> : vector<8x512xf32>
    %278 = tpu.matmul %270, %277, %cst_120 {dimension_numbers = #tpu.dot_dimension_numbers<[1], [0], [0], [1], [0, 0, 1, 1], [], []>} : vector<8x128xf32>, vector<128x512xf32>, vector<8x512xf32> -> vector<8x512xf32>
    %279 = arith.addf %276, %278 : vector<8x512xf32>
    %280 = vector.extract_strided_slice %279 {offsets = [0, 0], sizes = [8, 384], strides = [1, 1]} : vector<8x512xf32> to vector<8x384xf32>
    %cst_121 = arith.constant 5.000000e-01 : f32
    %281 = vector.broadcast %cst_121 : f32 to vector<8x384xf32>
    %282 = arith.mulf %281, %280 : vector<8x384xf32>
    %283 = math.tanh %282 : vector<8x384xf32>
    %cst_122 = arith.constant 1.000000e+00 : f32
    %284 = vector.broadcast %cst_122 : f32 to vector<8x384xf32>
    %285 = arith.addf %283, %284 : vector<8x384xf32>
    %cst_123 = arith.constant 5.000000e-01 : f32
    %286 = vector.broadcast %cst_123 : f32 to vector<8x384xf32>
    %287 = arith.mulf %286, %285 : vector<8x384xf32>
    %288 = vector.extract_strided_slice %287 {offsets = [0, 0], sizes = [8, 128], strides = [1, 1]} : vector<8x384xf32> to vector<8x128xf32>
    %289 = vector.extract_strided_slice %287 {offsets = [0, 128], sizes = [8, 128], strides = [1, 1]} : vector<8x384xf32> to vector<8x128xf32>
    %290 = vector.extract_strided_slice %287 {offsets = [0, 256], sizes = [8, 128], strides = [1, 1]} : vector<8x384xf32> to vector<8x128xf32>
    %291 = vector.extract_strided_slice %279 {offsets = [0, 384], sizes = [8, 128], strides = [1, 1]} : vector<8x512xf32> to vector<8x128xf32>
    %292 = math.tanh %291 : vector<8x128xf32>
    %293 = arith.mulf %289, %268 : vector<8x128xf32>
    %294 = arith.mulf %288, %292 : vector<8x128xf32>
    %295 = arith.addf %293, %294 : vector<8x128xf32>
    %296 = math.tanh %295 : vector<8x128xf32>
    %297 = arith.mulf %290, %296 : vector<8x128xf32>
    %298 = arith.index_cast %274 : i32 to index
    %c0_124 = arith.constant 0 : index
    %299 = vector.load %arg6[%298, %c0_124] : memref<64x128xf32, #tpu.memory_space<vmem>>, vector<8x128xf32>
    tpu.vector_store %arg6[%298, %c0_124], %297 {strides = array<i32>} : memref<64x128xf32, #tpu.memory_space<vmem>>, vector<8x128xf32>,
    %c2_i32_125 = arith.constant 2 : i32
    %c8_i32_126 = arith.constant 8 : i32
    %300 = arith.muli %c2_i32_125, %c8_i32_126 : i32
    %301 = tpu.assume_multiple %300, 8 : i32
    %302 = arith.index_cast %301 : i32 to index
    %c0_127 = arith.constant 0 : index
    %303 = vector.load %arg9[%302, %c0_127] : memref<64x512xf32, #tpu.memory_space<vmem>>, vector<8x512xf32>
    %c0_128 = arith.constant 0 : index
    %c0_129 = arith.constant 0 : index
    %304 = vector.load %arg4[%c0_128, %c0_129] : memref<128x512xf32, #tpu.memory_space<vmem>>, vector<128x512xf32>
    %cst_130 = arith.constant dense<0.000000e+00> : vector<8x512xf32>
    %305 = tpu.matmul %297, %304, %cst_130 {dimension_numbers = #tpu.dot_dimension_numbers<[1], [0], [0], [1], [0, 0, 1, 1], [], []>} : vector<8x128xf32>, vector<128x512xf32>, vector<8x512xf32> -> vector<8x512xf32>
    %306 = arith.addf %303, %305 : vector<8x512xf32>
    %307 = vector.extract_strided_slice %306 {offsets = [0, 0], sizes = [8, 384], strides = [1, 1]} : vector<8x512xf32> to vector<8x384xf32>
    %cst_131 = arith.constant 5.000000e-01 : f32
    %308 = vector.broadcast %cst_131 : f32 to vector<8x384xf32>
    %309 = arith.mulf %308, %307 : vector<8x384xf32>
    %310 = math.tanh %309 : vector<8x384xf32>
    %cst_132 = arith.constant 1.000000e+00 : f32
    %311 = vector.broadcast %cst_132 : f32 to vector<8x384xf32>
    %312 = arith.addf %310, %311 : vector<8x384xf32>
    %cst_133 = arith.constant 5.000000e-01 : f32
    %313 = vector.broadcast %cst_133 : f32 to vector<8x384xf32>
    %314 = arith.mulf %313, %312 : vector<8x384xf32>
    %315 = vector.extract_strided_slice %314 {offsets = [0, 0], sizes = [8, 128], strides = [1, 1]} : vector<8x384xf32> to vector<8x128xf32>
    %316 = vector.extract_strided_slice %314 {offsets = [0, 128], sizes = [8, 128], strides = [1, 1]} : vector<8x384xf32> to vector<8x128xf32>
    %317 = vector.extract_strided_slice %314 {offsets = [0, 256], sizes = [8, 128], strides = [1, 1]} : vector<8x384xf32> to vector<8x128xf32>
    %318 = vector.extract_strided_slice %306 {offsets = [0, 384], sizes = [8, 128], strides = [1, 1]} : vector<8x512xf32> to vector<8x128xf32>
    %319 = math.tanh %318 : vector<8x128xf32>
    %320 = arith.mulf %316, %295 : vector<8x128xf32>
    %321 = arith.mulf %315, %319 : vector<8x128xf32>
    %322 = arith.addf %320, %321 : vector<8x128xf32>
    %323 = math.tanh %322 : vector<8x128xf32>
    %324 = arith.mulf %317, %323 : vector<8x128xf32>
    %325 = arith.index_cast %301 : i32 to index
    %c0_134 = arith.constant 0 : index
    %326 = vector.load %arg6[%325, %c0_134] : memref<64x128xf32, #tpu.memory_space<vmem>>, vector<8x128xf32>
    tpu.vector_store %arg6[%325, %c0_134], %324 {strides = array<i32>} : memref<64x128xf32, #tpu.memory_space<vmem>>, vector<8x128xf32>,
    %c3_i32_135 = arith.constant 3 : i32
    %c8_i32_136 = arith.constant 8 : i32
    %327 = arith.muli %c3_i32_135, %c8_i32_136 : i32
    %328 = tpu.assume_multiple %327, 8 : i32
    %329 = arith.index_cast %328 : i32 to index
    %c0_137 = arith.constant 0 : index
    %330 = vector.load %arg9[%329, %c0_137] : memref<64x512xf32, #tpu.memory_space<vmem>>, vector<8x512xf32>
    %c0_138 = arith.constant 0 : index
    %c0_139 = arith.constant 0 : index
    %331 = vector.load %arg4[%c0_138, %c0_139] : memref<128x512xf32, #tpu.memory_space<vmem>>, vector<128x512xf32>
    %cst_140 = arith.constant dense<0.000000e+00> : vector<8x512xf32>
    %332 = tpu.matmul %324, %331, %cst_140 {dimension_numbers = #tpu.dot_dimension_numbers<[1], [0], [0], [1], [0, 0, 1, 1], [], []>} : vector<8x128xf32>, vector<128x512xf32>, vector<8x512xf32> -> vector<8x512xf32>
    %333 = arith.addf %330, %332 : vector<8x512xf32>
    %334 = vector.extract_strided_slice %333 {offsets = [0, 0], sizes = [8, 384], strides = [1, 1]} : vector<8x512xf32> to vector<8x384xf32>
    %cst_141 = arith.constant 5.000000e-01 : f32
    %335 = vector.broadcast %cst_141 : f32 to vector<8x384xf32>
    %336 = arith.mulf %335, %334 : vector<8x384xf32>
    %337 = math.tanh %336 : vector<8x384xf32>
    %cst_142 = arith.constant 1.000000e+00 : f32
    %338 = vector.broadcast %cst_142 : f32 to vector<8x384xf32>
    %339 = arith.addf %337, %338 : vector<8x384xf32>
    %cst_143 = arith.constant 5.000000e-01 : f32
    %340 = vector.broadcast %cst_143 : f32 to vector<8x384xf32>
    %341 = arith.mulf %340, %339 : vector<8x384xf32>
    %342 = vector.extract_strided_slice %341 {offsets = [0, 0], sizes = [8, 128], strides = [1, 1]} : vector<8x384xf32> to vector<8x128xf32>
    %343 = vector.extract_strided_slice %341 {offsets = [0, 128], sizes = [8, 128], strides = [1, 1]} : vector<8x384xf32> to vector<8x128xf32>
    %344 = vector.extract_strided_slice %341 {offsets = [0, 256], sizes = [8, 128], strides = [1, 1]} : vector<8x384xf32> to vector<8x128xf32>
    %345 = vector.extract_strided_slice %333 {offsets = [0, 384], sizes = [8, 128], strides = [1, 1]} : vector<8x512xf32> to vector<8x128xf32>
    %346 = math.tanh %345 : vector<8x128xf32>
    %347 = arith.mulf %343, %322 : vector<8x128xf32>
    %348 = arith.mulf %342, %346 : vector<8x128xf32>
    %349 = arith.addf %347, %348 : vector<8x128xf32>
    %350 = math.tanh %349 : vector<8x128xf32>
    %351 = arith.mulf %344, %350 : vector<8x128xf32>
    %352 = arith.index_cast %328 : i32 to index
    %c0_144 = arith.constant 0 : index
    %353 = vector.load %arg6[%352, %c0_144] : memref<64x128xf32, #tpu.memory_space<vmem>>, vector<8x128xf32>
    tpu.vector_store %arg6[%352, %c0_144], %351 {strides = array<i32>} : memref<64x128xf32, #tpu.memory_space<vmem>>, vector<8x128xf32>,
    %c4_i32_145 = arith.constant 4 : i32
    %c8_i32_146 = arith.constant 8 : i32
    %354 = arith.muli %c4_i32_145, %c8_i32_146 : i32
    %355 = tpu.assume_multiple %354, 8 : i32
    %356 = arith.index_cast %355 : i32 to index
    %c0_147 = arith.constant 0 : index
    %357 = vector.load %arg9[%356, %c0_147] : memref<64x512xf32, #tpu.memory_space<vmem>>, vector<8x512xf32>
    %c0_148 = arith.constant 0 : index
    %c0_149 = arith.constant 0 : index
    %358 = vector.load %arg4[%c0_148, %c0_149] : memref<128x512xf32, #tpu.memory_space<vmem>>, vector<128x512xf32>
    %cst_150 = arith.constant dense<0.000000e+00> : vector<8x512xf32>
    %359 = tpu.matmul %351, %358, %cst_150 {dimension_numbers = #tpu.dot_dimension_numbers<[1], [0], [0], [1], [0, 0, 1, 1], [], []>} : vector<8x128xf32>, vector<128x512xf32>, vector<8x512xf32> -> vector<8x512xf32>
    %360 = arith.addf %357, %359 : vector<8x512xf32>
    %361 = vector.extract_strided_slice %360 {offsets = [0, 0], sizes = [8, 384], strides = [1, 1]} : vector<8x512xf32> to vector<8x384xf32>
    %cst_151 = arith.constant 5.000000e-01 : f32
    %362 = vector.broadcast %cst_151 : f32 to vector<8x384xf32>
    %363 = arith.mulf %362, %361 : vector<8x384xf32>
    %364 = math.tanh %363 : vector<8x384xf32>
    %cst_152 = arith.constant 1.000000e+00 : f32
    %365 = vector.broadcast %cst_152 : f32 to vector<8x384xf32>
    %366 = arith.addf %364, %365 : vector<8x384xf32>
    %cst_153 = arith.constant 5.000000e-01 : f32
    %367 = vector.broadcast %cst_153 : f32 to vector<8x384xf32>
    %368 = arith.mulf %367, %366 : vector<8x384xf32>
    %369 = vector.extract_strided_slice %368 {offsets = [0, 0], sizes = [8, 128], strides = [1, 1]} : vector<8x384xf32> to vector<8x128xf32>
    %370 = vector.extract_strided_slice %368 {offsets = [0, 128], sizes = [8, 128], strides = [1, 1]} : vector<8x384xf32> to vector<8x128xf32>
    %371 = vector.extract_strided_slice %368 {offsets = [0, 256], sizes = [8, 128], strides = [1, 1]} : vector<8x384xf32> to vector<8x128xf32>
    %372 = vector.extract_strided_slice %360 {offsets = [0, 384], sizes = [8, 128], strides = [1, 1]} : vector<8x512xf32> to vector<8x128xf32>
    %373 = math.tanh %372 : vector<8x128xf32>
    %374 = arith.mulf %370, %349 : vector<8x128xf32>
    %375 = arith.mulf %369, %373 : vector<8x128xf32>
    %376 = arith.addf %374, %375 : vector<8x128xf32>
    %377 = math.tanh %376 : vector<8x128xf32>
    %378 = arith.mulf %371, %377 : vector<8x128xf32>
    %379 = arith.index_cast %355 : i32 to index
    %c0_154 = arith.constant 0 : index
    %380 = vector.load %arg6[%379, %c0_154] : memref<64x128xf32, #tpu.memory_space<vmem>>, vector<8x128xf32>
    tpu.vector_store %arg6[%379, %c0_154], %378 {strides = array<i32>} : memref<64x128xf32, #tpu.memory_space<vmem>>, vector<8x128xf32>,
    %c5_i32_155 = arith.constant 5 : i32
    %c8_i32_156 = arith.constant 8 : i32
    %381 = arith.muli %c5_i32_155, %c8_i32_156 : i32
    %382 = tpu.assume_multiple %381, 8 : i32
    %383 = arith.index_cast %382 : i32 to index
    %c0_157 = arith.constant 0 : index
    %384 = vector.load %arg9[%383, %c0_157] : memref<64x512xf32, #tpu.memory_space<vmem>>, vector<8x512xf32>
    %c0_158 = arith.constant 0 : index
    %c0_159 = arith.constant 0 : index
    %385 = vector.load %arg4[%c0_158, %c0_159] : memref<128x512xf32, #tpu.memory_space<vmem>>, vector<128x512xf32>
    %cst_160 = arith.constant dense<0.000000e+00> : vector<8x512xf32>
    %386 = tpu.matmul %378, %385, %cst_160 {dimension_numbers = #tpu.dot_dimension_numbers<[1], [0], [0], [1], [0, 0, 1, 1], [], []>} : vector<8x128xf32>, vector<128x512xf32>, vector<8x512xf32> -> vector<8x512xf32>
    %387 = arith.addf %384, %386 : vector<8x512xf32>
    %388 = vector.extract_strided_slice %387 {offsets = [0, 0], sizes = [8, 384], strides = [1, 1]} : vector<8x512xf32> to vector<8x384xf32>
    %cst_161 = arith.constant 5.000000e-01 : f32
    %389 = vector.broadcast %cst_161 : f32 to vector<8x384xf32>
    %390 = arith.mulf %389, %388 : vector<8x384xf32>
    %391 = math.tanh %390 : vector<8x384xf32>
    %cst_162 = arith.constant 1.000000e+00 : f32
    %392 = vector.broadcast %cst_162 : f32 to vector<8x384xf32>
    %393 = arith.addf %391, %392 : vector<8x384xf32>
    %cst_163 = arith.constant 5.000000e-01 : f32
    %394 = vector.broadcast %cst_163 : f32 to vector<8x384xf32>
    %395 = arith.mulf %394, %393 : vector<8x384xf32>
    %396 = vector.extract_strided_slice %395 {offsets = [0, 0], sizes = [8, 128], strides = [1, 1]} : vector<8x384xf32> to vector<8x128xf32>
    %397 = vector.extract_strided_slice %395 {offsets = [0, 128], sizes = [8, 128], strides = [1, 1]} : vector<8x384xf32> to vector<8x128xf32>
    %398 = vector.extract_strided_slice %395 {offsets = [0, 256], sizes = [8, 128], strides = [1, 1]} : vector<8x384xf32> to vector<8x128xf32>
    %399 = vector.extract_strided_slice %387 {offsets = [0, 384], sizes = [8, 128], strides = [1, 1]} : vector<8x512xf32> to vector<8x128xf32>
    %400 = math.tanh %399 : vector<8x128xf32>
    %401 = arith.mulf %397, %376 : vector<8x128xf32>
    %402 = arith.mulf %396, %400 : vector<8x128xf32>
    %403 = arith.addf %401, %402 : vector<8x128xf32>
    %404 = math.tanh %403 : vector<8x128xf32>
    %405 = arith.mulf %398, %404 : vector<8x128xf32>
    %406 = arith.index_cast %382 : i32 to index
    %c0_164 = arith.constant 0 : index
    %407 = vector.load %arg6[%406, %c0_164] : memref<64x128xf32, #tpu.memory_space<vmem>>, vector<8x128xf32>
    tpu.vector_store %arg6[%406, %c0_164], %405 {strides = array<i32>} : memref<64x128xf32, #tpu.memory_space<vmem>>, vector<8x128xf32>,
    %c6_i32_165 = arith.constant 6 : i32
    %c8_i32_166 = arith.constant 8 : i32
    %408 = arith.muli %c6_i32_165, %c8_i32_166 : i32
    %409 = tpu.assume_multiple %408, 8 : i32
    %410 = arith.index_cast %409 : i32 to index
    %c0_167 = arith.constant 0 : index
    %411 = vector.load %arg9[%410, %c0_167] : memref<64x512xf32, #tpu.memory_space<vmem>>, vector<8x512xf32>
    %c0_168 = arith.constant 0 : index
    %c0_169 = arith.constant 0 : index
    %412 = vector.load %arg4[%c0_168, %c0_169] : memref<128x512xf32, #tpu.memory_space<vmem>>, vector<128x512xf32>
    %cst_170 = arith.constant dense<0.000000e+00> : vector<8x512xf32>
    %413 = tpu.matmul %405, %412, %cst_170 {dimension_numbers = #tpu.dot_dimension_numbers<[1], [0], [0], [1], [0, 0, 1, 1], [], []>} : vector<8x128xf32>, vector<128x512xf32>, vector<8x512xf32> -> vector<8x512xf32>
    %414 = arith.addf %411, %413 : vector<8x512xf32>
    %415 = vector.extract_strided_slice %414 {offsets = [0, 0], sizes = [8, 384], strides = [1, 1]} : vector<8x512xf32> to vector<8x384xf32>
    %cst_171 = arith.constant 5.000000e-01 : f32
    %416 = vector.broadcast %cst_171 : f32 to vector<8x384xf32>
    %417 = arith.mulf %416, %415 : vector<8x384xf32>
    %418 = math.tanh %417 : vector<8x384xf32>
    %cst_172 = arith.constant 1.000000e+00 : f32
    %419 = vector.broadcast %cst_172 : f32 to vector<8x384xf32>
    %420 = arith.addf %418, %419 : vector<8x384xf32>
    %cst_173 = arith.constant 5.000000e-01 : f32
    %421 = vector.broadcast %cst_173 : f32 to vector<8x384xf32>
    %422 = arith.mulf %421, %420 : vector<8x384xf32>
    %423 = vector.extract_strided_slice %422 {offsets = [0, 0], sizes = [8, 128], strides = [1, 1]} : vector<8x384xf32> to vector<8x128xf32>
    %424 = vector.extract_strided_slice %422 {offsets = [0, 128], sizes = [8, 128], strides = [1, 1]} : vector<8x384xf32> to vector<8x128xf32>
    %425 = vector.extract_strided_slice %422 {offsets = [0, 256], sizes = [8, 128], strides = [1, 1]} : vector<8x384xf32> to vector<8x128xf32>
    %426 = vector.extract_strided_slice %414 {offsets = [0, 384], sizes = [8, 128], strides = [1, 1]} : vector<8x512xf32> to vector<8x128xf32>
    %427 = math.tanh %426 : vector<8x128xf32>
    %428 = arith.mulf %424, %403 : vector<8x128xf32>
    %429 = arith.mulf %423, %427 : vector<8x128xf32>
    %430 = arith.addf %428, %429 : vector<8x128xf32>
    %431 = math.tanh %430 : vector<8x128xf32>
    %432 = arith.mulf %425, %431 : vector<8x128xf32>
    %433 = arith.index_cast %409 : i32 to index
    %c0_174 = arith.constant 0 : index
    %434 = vector.load %arg6[%433, %c0_174] : memref<64x128xf32, #tpu.memory_space<vmem>>, vector<8x128xf32>
    tpu.vector_store %arg6[%433, %c0_174], %432 {strides = array<i32>} : memref<64x128xf32, #tpu.memory_space<vmem>>, vector<8x128xf32>,
    %c7_i32_175 = arith.constant 7 : i32
    %c8_i32_176 = arith.constant 8 : i32
    %435 = arith.muli %c7_i32_175, %c8_i32_176 : i32
    %436 = tpu.assume_multiple %435, 8 : i32
    %437 = arith.index_cast %436 : i32 to index
    %c0_177 = arith.constant 0 : index
    %438 = vector.load %arg9[%437, %c0_177] : memref<64x512xf32, #tpu.memory_space<vmem>>, vector<8x512xf32>
    %c0_178 = arith.constant 0 : index
    %c0_179 = arith.constant 0 : index
    %439 = vector.load %arg4[%c0_178, %c0_179] : memref<128x512xf32, #tpu.memory_space<vmem>>, vector<128x512xf32>
    %cst_180 = arith.constant dense<0.000000e+00> : vector<8x512xf32>
    %440 = tpu.matmul %432, %439, %cst_180 {dimension_numbers = #tpu.dot_dimension_numbers<[1], [0], [0], [1], [0, 0, 1, 1], [], []>} : vector<8x128xf32>, vector<128x512xf32>, vector<8x512xf32> -> vector<8x512xf32>
    %441 = arith.addf %438, %440 : vector<8x512xf32>
    %442 = vector.extract_strided_slice %441 {offsets = [0, 0], sizes = [8, 384], strides = [1, 1]} : vector<8x512xf32> to vector<8x384xf32>
    %cst_181 = arith.constant 5.000000e-01 : f32
    %443 = vector.broadcast %cst_181 : f32 to vector<8x384xf32>
    %444 = arith.mulf %443, %442 : vector<8x384xf32>
    %445 = math.tanh %444 : vector<8x384xf32>
    %cst_182 = arith.constant 1.000000e+00 : f32
    %446 = vector.broadcast %cst_182 : f32 to vector<8x384xf32>
    %447 = arith.addf %445, %446 : vector<8x384xf32>
    %cst_183 = arith.constant 5.000000e-01 : f32
    %448 = vector.broadcast %cst_183 : f32 to vector<8x384xf32>
    %449 = arith.mulf %448, %447 : vector<8x384xf32>
    %450 = vector.extract_strided_slice %449 {offsets = [0, 0], sizes = [8, 128], strides = [1, 1]} : vector<8x384xf32> to vector<8x128xf32>
    %451 = vector.extract_strided_slice %449 {offsets = [0, 128], sizes = [8, 128], strides = [1, 1]} : vector<8x384xf32> to vector<8x128xf32>
    %452 = vector.extract_strided_slice %449 {offsets = [0, 256], sizes = [8, 128], strides = [1, 1]} : vector<8x384xf32> to vector<8x128xf32>
    %453 = vector.extract_strided_slice %441 {offsets = [0, 384], sizes = [8, 128], strides = [1, 1]} : vector<8x512xf32> to vector<8x128xf32>
    %454 = math.tanh %453 : vector<8x128xf32>
    %455 = arith.mulf %451, %430 : vector<8x128xf32>
    %456 = arith.mulf %450, %454 : vector<8x128xf32>
    %457 = arith.addf %455, %456 : vector<8x128xf32>
    %458 = math.tanh %457 : vector<8x128xf32>
    %459 = arith.mulf %452, %458 : vector<8x128xf32>
    %460 = arith.index_cast %436 : i32 to index
    %c0_184 = arith.constant 0 : index
    %461 = vector.load %arg6[%460, %c0_184] : memref<64x128xf32, #tpu.memory_space<vmem>>, vector<8x128xf32>
    tpu.vector_store %arg6[%460, %c0_184], %459 {strides = array<i32>} : memref<64x128xf32, #tpu.memory_space<vmem>>, vector<8x128xf32>,
    %c8_i32_185 = arith.constant 8 : i32
    %c1_186 = arith.constant 1 : index
    %c0_187 = arith.constant 0 : index
    %c0_188 = arith.constant 0 : index
    %462 = vector.load %arg11[%c1_186, %c0_187, %c0_188] : memref<2x8x128xf32, #tpu.memory_space<vmem>>, vector<1x8x128xf32>
    %463 = vector.shape_cast %462 : vector<1x8x128xf32> to vector<8x128xf32>
    %464 = vector.shape_cast %459 : vector<8x128xf32> to vector<1x8x128xf32>
    tpu.vector_store %arg11[%c1_186, %c0_187, %c0_188], %464 {strides = array<i32>} : memref<2x8x128xf32, #tpu.memory_space<vmem>>, vector<1x8x128xf32>,
    %c1_189 = arith.constant 1 : index
    %c0_190 = arith.constant 0 : index
    %c0_191 = arith.constant 0 : index
    %465 = vector.load %arg12[%c1_189, %c0_190, %c0_191] : memref<2x8x128xf32, #tpu.memory_space<vmem>>, vector<1x8x128xf32>
    %466 = vector.shape_cast %465 : vector<1x8x128xf32> to vector<8x128xf32>
    %467 = vector.shape_cast %457 : vector<8x128xf32> to vector<1x8x128xf32>
    tpu.vector_store %arg12[%c1_189, %c0_190, %c0_191], %467 {strides = array<i32>} : memref<2x8x128xf32, #tpu.memory_space<vmem>>, vector<1x8x128xf32>,
    %c1_192 = arith.constant 1 : index
    %c0_193 = arith.constant 0 : index
    %c0_194 = arith.constant 0 : index
    %468 = vector.load %arg11[%c1_192, %c0_193, %c0_194] : memref<2x8x128xf32, #tpu.memory_space<vmem>>, vector<1x8x128xf32>
    %469 = vector.shape_cast %468 : vector<1x8x128xf32> to vector<8x128xf32>
    %c0_195 = arith.constant 0 : index
    %c0_196 = arith.constant 0 : index
    %470 = vector.load %arg7[%c0_195, %c0_196] : memref<8x128xf32, #tpu.memory_space<vmem>>, vector<8x128xf32>
    tpu.vector_store %arg7[%c0_195, %c0_196], %469 {strides = array<i32>} : memref<8x128xf32, #tpu.memory_space<vmem>>, vector<8x128xf32>,
    %c1_197 = arith.constant 1 : index
    %c0_198 = arith.constant 0 : index
    %c0_199 = arith.constant 0 : index
    %471 = vector.load %arg12[%c1_197, %c0_198, %c0_199] : memref<2x8x128xf32, #tpu.memory_space<vmem>>, vector<1x8x128xf32>
    %472 = vector.shape_cast %471 : vector<1x8x128xf32> to vector<8x128xf32>
    %c0_200 = arith.constant 0 : index
    %c0_201 = arith.constant 0 : index
    %473 = vector.load %arg8[%c0_200, %c0_201] : memref<8x128xf32, #tpu.memory_space<vmem>>, vector<8x128xf32>
    tpu.vector_store %arg8[%c0_200, %c0_201], %472 {strides = array<i32>} : memref<8x128xf32, #tpu.memory_space<vmem>>, vector<8x128xf32>,
    return
  }
  func.func @transform_0(%arg0: i32) -> (i32, i32) {
    %c0_i32 = arith.constant 0 : i32
    %c0_i32_0 = arith.constant 0 : i32
    return %arg0, %c0_i32 : i32, i32
  }
  func.func @transform_1(%arg0: i32) -> (i32, i32) {
    %c0_i32 = arith.constant 0 : i32
    %c0_i32_0 = arith.constant 0 : i32
    %c0_i32_1 = arith.constant 0 : i32
    return %c0_i32, %c0_i32_0 : i32, i32
  }
  func.func @transform_2(%arg0: i32) -> (i32, i32) {
    %c0_i32 = arith.constant 0 : i32
    %c0_i32_0 = arith.constant 0 : i32
    %c0_i32_1 = arith.constant 0 : i32
    return %c0_i32, %c0_i32_0 : i32, i32
  }
  func.func @transform_3(%arg0: i32) -> (i32, i32) {
    %c0_i32 = arith.constant 0 : i32
    %c0_i32_0 = arith.constant 0 : i32
    %c0_i32_1 = arith.constant 0 : i32
    return %c0_i32, %c0_i32_0 : i32, i32
  }
  func.func @transform_4(%arg0: i32) -> (i32, i32) {
    %c0_i32 = arith.constant 0 : i32
    %c0_i32_0 = arith.constant 0 : i32
    %c0_i32_1 = arith.constant 0 : i32
    return %c0_i32, %c0_i32_0 : i32, i32
  }
  func.func @transform_5(%arg0: i32) -> (i32, i32) {
    %c0_i32 = arith.constant 0 : i32
    %c0_i32_0 = arith.constant 0 : i32
    return %arg0, %c0_i32 : i32, i32
  }
  func.func @transform_6(%arg0: i32) -> (i32, i32) {
    %c0_i32 = arith.constant 0 : i32
    %c0_i32_0 = arith.constant 0 : i32
    %c0_i32_1 = arith.constant 0 : i32
    return %c0_i32, %c0_i32_0 : i32, i32
  }
  func.func @transform_7(%arg0: i32) -> (i32, i32) {
    %c0_i32 = arith.constant 0 : i32
    %c0_i32_0 = arith.constant 0 : i32
    %c0_i32_1 = arith.constant 0 : i32
    return %c0_i32, %c0_i32_0 : i32, i32
  }
}

</mosaic_0001>

<llo_original>
// kernel: tpu_custom_call.1
$region0: #{tpu_custom_call.1}
  #allocation0 [shape = 'u32[]', space=smem, size = 0x4, offset = 0x4, fixed_abs, tag = 'smem constant byte address 0x4 - core index']
  #allocation1 [shape = 'u32[144,128]{1,0:T(1,128)}', space=vmem, size = 0x12000, scoped, tag = 'internal scratch']
  #allocation2 [shape = 'f32[64,512]{1,0:T(8,128)}', space=vmem, size = 0x20000, scoped, tag = 'scratch operand']
  #allocation3 [shape = 'f32[64,128]{1,0:T(8,128)}', space=vmem, size = 0x8000, scoped, tag = 'scratch operand']
  #allocation4 [shape = 'f32[2,8,128]{2,1,0:T(8,128)}', space=vmem, size = 0x2000, scoped, tag = 'scratch operand']
  #allocation5 [shape = 'f32[2,8,128]{2,1,0:T(8,128)}', space=vmem, size = 0x2000, scoped, tag = 'scratch operand']
  %s0 = inlined_call_operand.vmem [shape: f32[64,16], index: 0, kind: input, shape index: {}]
  %s1 = inlined_call_operand.vmem [shape: f32[16,512], index: 1, kind: input, shape index: {}]
  %s2 = inlined_call_operand.hbm [shape: f32[128,512], index: 2, kind: input, shape index: {}]
  %s3 = inlined_call_operand.hbm [shape: f32[128,512], index: 3, kind: input, shape index: {}]
  %s4 = inlined_call_operand.vmem [shape: f32[1,512], index: 4, kind: input, shape index: {}]
  %s5 = inlined_call_operand.hbm [shape: f32[64,128], index: 5, kind: output, shape index: {0}]
  %s6 = inlined_call_operand.hbm [shape: f32[8,128], index: 6, kind: output, shape index: {1}]
  %s7 = inlined_call_operand.hbm [shape: f32[8,128], index: 7, kind: output, shape index: {2}]
  %8 = xla_tuple %s5, %s6, %s7
  %s9 = sld [smem:[#allocation0]]
  $region58: #{tpu_custom_call.1} parent=0
    _
  %s11 = ssub.s32 1, %s9
  %s12 = scalar_select 0, %s11, %s9
  $region1: #{tpu_custom_call.1} parent=0
    #allocation6 [shape = 'u8[262144]{0}', space=vmem, size = 0x40000, scoped, tag = 'input window, operand 2, single buffered']
    #allocation7 [shape = 's32[1]{0}', space=sflag, size = 0x4, scoped, tag = 'scoped memory for tpu_custom_call.1']
    #allocation8 [shape = 's32[1]{0}', space=sflag, size = 0x4, scoped, tag = 'scoped memory for tpu_custom_call.1']
    #allocation9 [shape = 'u8[262144]{0}', space=vmem, size = 0x40000, scoped, tag = 'input window, operand 3, single buffered']
    #allocation10 [shape = 's32[1]{0}', space=sflag, size = 0x4, scoped, tag = 'scoped memory for tpu_custom_call.1']
    #allocation11 [shape = 'u8[32768]{0}', space=vmem, size = 0x8000, scoped, tag = 'output window, operand 0, single buffered']
    #allocation12 [shape = 'u8[4096]{0}', space=vmem, size = 0x1000, scoped, tag = 'output window, operand 1, single buffered']
    #allocation13 [shape = 's32[1]{0}', space=sflag, size = 0x4, scoped, tag = 'scoped memory for tpu_custom_call.1']
    #allocation14 [shape = 'u8[4096]{0}', space=vmem, size = 0x1000, scoped, tag = 'output window, operand 2, single buffered']
    %13 = vsyncpa [#allocation7], 0
    %14 = vsyncpa [#allocation10], 0
    %15 = vsyncpa [#allocation8], 0
    %16 = vsyncpa [#allocation13], 0
    // Predicated region
    $region2: #{tpu_custom_call.1} parent=1 // pred_check
      _
    $region3: #{tpu_custom_call.1} parent=1 // pred_check_branch
      %18 = sbr.rel (0) target = $region5
    $region4: #{tpu_custom_call.1} parent=1 // pred_region
      _
    $region5: #{tpu_custom_call.1} parent=1 // pred_fallthru
      _
    // Predicated region
    $region6: #{tpu_custom_call.1} parent=1 // pred_check
      _
    $region7: #{tpu_custom_call.1} parent=1 // pred_check_branch
      %20 = sbr.rel (0) target = $region9
    $region8: #{tpu_custom_call.1} parent=1 // pred_region
      _
    $region9: #{tpu_custom_call.1} parent=1 // pred_fallthru
      _
    // Predicated region
    $region10: #{tpu_custom_call.1} parent=1 // pred_check
      _
    $region11: #{tpu_custom_call.1} parent=1 // pred_check_branch
      %22 = sbr.rel (0) target = $region13
    $region12: #{tpu_custom_call.1} parent=1 // pred_region
      %s24 = ssub.s32 8192, 8192
      %25 = vsyncadd [#allocation7], %s24
      %s26 = sshll.u32 [#allocation6], 4
      %s27 = int_to_ptr.vmem [resolvable:$true] %s26
      %32 = dma.hbm_to_vmem [thread:$0]  %s2, 8192, %s27, [#allocation7], 512, 512, 32
    $region13: #{tpu_custom_call.1} parent=1 // pred_fallthru
      _
    // Predicated region
    $region14: #{tpu_custom_call.1} parent=1 // pred_check
      _
    $region15: #{tpu_custom_call.1} parent=1 // pred_check_branch
      %34 = sbr.rel (0) target = $region17
    $region16: #{tpu_custom_call.1} parent=1 // pred_region
      %s36 = ssub.s32 8192, 8192
      %37 = vsyncadd [#allocation10], %s36
      %s38 = sshll.u32 [#allocation9], 4
      %s39 = int_to_ptr.vmem [resolvable:$true] %s38
      %44 = dma.hbm_to_vmem [thread:$0]  %s3, 8192, %s39, [#allocation10], 512, 512, 32
    $region17: #{tpu_custom_call.1} parent=1 // pred_fallthru
      _
    // Predicated region
    $region18: #{tpu_custom_call.1} parent=1 // pred_check
      _
    $region19: #{tpu_custom_call.1} parent=1 // pred_check_branch
      %46 = sbr.rel (0) target = $region21
    $region20: #{tpu_custom_call.1} parent=1 // pred_region
      _
    $region21: #{tpu_custom_call.1} parent=1 // pred_fallthru
      _
    // Predicated region
    $region22: #{tpu_custom_call.1} parent=1 // pred_check
      _
    $region23: #{tpu_custom_call.1} parent=1 // pred_check_branch
      %48 = sbr.rel (0) target = $region25
    $region24: #{tpu_custom_call.1} parent=1 // pred_region
      %49 = dma.done [#allocation7], 8192
    $region25: #{tpu_custom_call.1} parent=1 // pred_fallthru
      _
    // Predicated region
    $region26: #{tpu_custom_call.1} parent=1 // pred_check
      _
    $region27: #{tpu_custom_call.1} parent=1 // pred_check_branch
      %51 = sbr.rel (0) target = $region29
    $region28: #{tpu_custom_call.1} parent=1 // pred_region
      %52 = dma.done [#allocation10], 8192
    $region29: #{tpu_custom_call.1} parent=1 // pred_fallthru
      _
    %p53 = scmp.eq.s32.totalorder 0, 0
    // Predicated region
    $region30: #{tpu_custom_call.1} parent=1 // pred_check
      %p54 = pneg %p53
    $region31: #{tpu_custom_call.1} parent=1 // pred_check_branch
      %56 = sbr.rel (%p54) target = $region33
    $region32: #{tpu_custom_call.1} parent=1 // pred_region
      %57 = vst [vmem:[#allocation4] sm:$0xff] 0.0
      %58 = vst [vmem:[#allocation4 + $0x8] sm:$0xff] 0.0
      %59 = vst [vmem:[#allocation5] sm:$0xff] 0.0
      %60 = vst [vmem:[#allocation5 + $0x8] sm:$0xff] 0.0
    $region33: #{tpu_custom_call.1} parent=1 // pred_fallthru
      _
    %v61 = vld [vmem:[%s4] sm:$0xf]
    %v62 = vld [vmem:[%s0] sm:$0xff]
    %v63 = vld [vmem:[%s0 + $0x8] sm:$0xff]
    %v64 = vld [vmem:[%s0 + $0x10] sm:$0xff]
    %v65 = vld [vmem:[%s0 + $0x18] sm:$0xff]
    %v66 = vld [vmem:[%s0 + $0x20] sm:$0xff]
    %v67 = vld [vmem:[%s0 + $0x28] sm:$0xff]
    %v68 = vld [vmem:[%s0 + $0x30] sm:$0xff]
    %v69 = vld [vmem:[%s0 + $0x38] sm:$0xff]
    %v70 = vld [vmem:[%s1] sm:$0xff]
    %v71 = vld [vmem:[%s1 + $0x8] sm:$0xff]
    %v72 = vld [vmem:[%s1 + $0x10] sm:$0xff]
    %v73 = vld [vmem:[%s1 + $0x18] sm:$0xff]
    %v74 = vld [vmem:[%s1 + $0x20] sm:$0xff]
    %v75 = vld [vmem:[%s1 + $0x28] sm:$0xff]
    %v76 = vld [vmem:[%s1 + $0x30] sm:$0xff]
    %v77 = vld [vmem:[%s1 + $0x38] sm:$0xff]
    %v79 = vlaneseq
    %v80 = vshrl.u32 %v79, 7
    %v81 = vsub.s32 0, %v80
    %v82 = vrot.slane %v61, %v81
    %v83 = vlaneseq
    %v84 = vshrl.u32 %v83, 7
    %v85 = vsub.s32 1, %v84
    %v86 = vrot.slane %v61, %v85
    %v87 = vlaneseq
    %v88 = vshrl.u32 %v87, 7
    %v89 = vsub.s32 2, %v88
    %v90 = vrot.slane %v61, %v89
    %v91 = vlaneseq
    %v92 = vshrl.u32 %v91, 7
    %v93 = vsub.s32 3, %v92
    %v94 = vrot.slane %v61, %v93
    %vm99 = vcmask 130048
    %v101 = vsel %vm99, %v62, 0
    %v104 = vsel %vm99, %v63, 0
    %v107 = vsel %vm99, %v64, 0
    %v110 = vsel %vm99, %v65, 0
    %v113 = vsel %vm99, %v66, 0
    %v116 = vsel %vm99, %v67, 0
    %v119 = vsel %vm99, %v68, 0
    %v122 = vsel %vm99, %v69, 0
    %124 = vmatprep.subr.mxu0 0.0
    %125 = vmatpush1.msra.mxu0 0.0
    %126 = vmatprep.subr.mxu0 0.0
    %127 = vmatpush1.msra.mxu0 0.0
    %128 = vmatprep.subr.mxu0 0.0
    %129 = vmatpush1.msra.mxu0 0.0
    %130 = vmatprep.subr.mxu0 0.0
    %131 = vmatpush1.msra.mxu0 0.0
    %132 = vmatprep.subr.mxu0 0.0
    %133 = vmatpush1.msra.mxu0 0.0
    %134 = vmatprep.subr.mxu0 0.0
    %135 = vmatpush1.msra.mxu0 0.0
    %136 = vmatprep.subr.mxu0 0.0
    %137 = vmatpush1.msra.mxu0 0.0
    %138 = vmatprep.subr.mxu0 0.0
    %139 = vmatpush1.msra.mxu0 0.0
    %140 = vmatprep.subr.mxu0 0.0
    %141 = vmatpush1.msra.mxu0 0.0
    %142 = vmatprep.subr.mxu0 0.0
    %143 = vmatpush1.msra.mxu0 0.0
    %144 = vmatprep.subr.mxu0 0.0
    %145 = vmatpush1.msra.mxu0 0.0
    %146 = vmatprep.subr.mxu0 0.0
    %147 = vmatpush1.msra.mxu0 0.0
    %148 = vmatprep.subr.mxu0 0.0
    %149 = vmatpush1.msra.mxu0 0.0
    %150 = vmatprep.subr.mxu0 0.0
    %151 = vmatpush1.msra.mxu0 0.0
    %152 = vmatprep.subr.mxu0 %v75
    %153 = vmatpush1.msra.mxu0 %v74
    %154 = vmatprep.subr.mxu0 %v71
    %155 = vmatpush1.msra.mxu0 %v70
    %156 = vmatprep.subr.mxu0 0.0
    %157 = vmatpush2.msra.mxu0 0.0
    %158 = vmatprep.subr.mxu0 0.0
    %159 = vmatpush2.msra.mxu0 0.0
    %160 = vmatprep.subr.mxu0 0.0
    %161 = vmatpush2.msra.mxu0 0.0
    %162 = vmatprep.subr.mxu0 0.0
    %163 = vmatpush2.msra.mxu0 0.0
    %164 = vmatprep.subr.mxu0 0.0
    %165 = vmatpush2.msra.mxu0 0.0
    %166 = vmatprep.subr.mxu0 0.0
    %167 = vmatpush2.msra.mxu0 0.0
    %168 = vmatprep.subr.mxu0 0.0
    %169 = vmatpush2.msra.mxu0 0.0
    %170 = vmatprep.subr.mxu0 0.0
    %171 = vmatpush2.msra.mxu0 0.0
    %172 = vmatprep.subr.mxu0 0.0
    %173 = vmatpush2.msra.mxu0 0.0
    %174 = vmatprep.subr.mxu0 0.0
    %175 = vmatpush2.msra.mxu0 0.0
    %176 = vmatprep.subr.mxu0 0.0
    %177 = vmatpush2.msra.mxu0 0.0
    %178 = vmatprep.subr.mxu0 0.0
    %179 = vmatpush2.msra.mxu0 0.0
    %180 = vmatprep.subr.mxu0 0.0
    %181 = vmatpush2.msra.mxu0 0.0
    %182 = vmatprep.subr.mxu0 0.0
    %183 = vmatpush2.msra.mxu0 0.0
    %184 = vmatprep.subr.mxu0 0.0
    %185 = vmatpush2.msra.mxu0 0.0
    %186 = vmatprep.subr.mxu0 0.0
    %187 = vmatpush2.msra.mxu0 0.0
    %188 = vmatprep.mubr.f32.mxu0 0.0
    %189 = vmatmul.mubr.f32.gmra.mxu0 %v101
    %v190 = vpop.f32.mrf.mxu0
    %v191 = vadd.f32 %v82, %v190
    %v192 = vpop.f32.mrf.mxu0
    %v193 = vadd.f32 %v86, %v192
    %194 = vmatprep.mubr.f32.mxu0 0.0
    %195 = vmatmul.mubr.f32.gmra.mxu0 %v104
    %v196 = vpop.f32.mrf.mxu0
    %v197 = vadd.f32 %v82, %v196
    %v198 = vpop.f32.mrf.mxu0
    %v199 = vadd.f32 %v86, %v198
    %200 = vmatprep.mubr.f32.mxu0 0.0
    %201 = vmatmul.mubr.f32.gmra.mxu0 %v107
    %v202 = vpop.f32.mrf.mxu0
    %v203 = vadd.f32 %v82, %v202
    %v204 = vpop.f32.mrf.mxu0
    %v205 = vadd.f32 %v86, %v204
    %206 = vmatprep.mubr.f32.mxu0 0.0
    %207 = vmatmul.mubr.f32.gmra.mxu0 %v110
    %v208 = vpop.f32.mrf.mxu0
    %v209 = vadd.f32 %v82, %v208
    %v210 = vpop.f32.mrf.mxu0
    %v211 = vadd.f32 %v86, %v210
    %212 = vmatprep.mubr.f32.mxu0 0.0
    %213 = vmatmul.mubr.f32.gmra.mxu0 %v113
    %v214 = vpop.f32.mrf.mxu0
    %v215 = vadd.f32 %v82, %v214
    %v216 = vpop.f32.mrf.mxu0
    %v217 = vadd.f32 %v86, %v216
    %218 = vmatprep.mubr.f32.mxu0 0.0
    %219 = vmatmul.mubr.f32.gmra.mxu0 %v116
    %v220 = vpop.f32.mrf.mxu0
    %v221 = vadd.f32 %v82, %v220
    %v222 = vpop.f32.mrf.mxu0
    %v223 = vadd.f32 %v86, %v222
    %224 = vmatprep.mubr.f32.mxu0 0.0
    %225 = vmatmul.mubr.f32.gmra.mxu0 %v119
    %v226 = vpop.f32.mrf.mxu0
    %v227 = vadd.f32 %v82, %v226
    %v228 = vpop.f32.mrf.mxu0
    %v229 = vadd.f32 %v86, %v228
    %230 = vmatprep.mubr.f32.mxu0 0.0
    %231 = vmatmul.mubr.f32.gmra.mxu0 %v122
    %v232 = vpop.f32.mrf.mxu0
    %v233 = vadd.f32 %v82, %v232
    %v234 = vpop.f32.mrf.mxu0
    %v235 = vadd.f32 %v86, %v234
    %236 = vdwg.mxu0
    %237 = vmatprep.subr.mxu0 0.0
    %238 = vmatpush1.msra.mxu0 0.0
    %239 = vmatprep.subr.mxu0 0.0
    %240 = vmatpush1.msra.mxu0 0.0
    %241 = vmatprep.subr.mxu0 0.0
    %242 = vmatpush1.msra.mxu0 0.0
    %243 = vmatprep.subr.mxu0 0.0
    %244 = vmatpush1.msra.mxu0 0.0
    %245 = vmatprep.subr.mxu0 0.0
    %246 = vmatpush1.msra.mxu0 0.0
    %247 = vmatprep.subr.mxu0 0.0
    %248 = vmatpush1.msra.mxu0 0.0
    %249 = vmatprep.subr.mxu0 0.0
    %250 = vmatpush1.msra.mxu0 0.0
    %251 = vmatprep.subr.mxu0 0.0
    %252 = vmatpush1.msra.mxu0 0.0
    %253 = vmatprep.subr.mxu0 0.0
    %254 = vmatpush1.msra.mxu0 0.0
    %255 = vmatprep.subr.mxu0 0.0
    %256 = vmatpush1.msra.mxu0 0.0
    %257 = vmatprep.subr.mxu0 0.0
    %258 = vmatpush1.msra.mxu0 0.0
    %259 = vmatprep.subr.mxu0 0.0
    %260 = vmatpush1.msra.mxu0 0.0
    %261 = vmatprep.subr.mxu0 0.0
    %262 = vmatpush1.msra.mxu0 0.0
    %263 = vmatprep.subr.mxu0 0.0
    %264 = vmatpush1.msra.mxu0 0.0
    %265 = vmatprep.subr.mxu0 %v77
    %266 = vmatpush1.msra.mxu0 %v76
    %267 = vmatprep.subr.mxu0 %v73
    %268 = vmatpush1.msra.mxu0 %v72
    %269 = vmatprep.subr.mxu0 0.0
    %270 = vmatpush2.msra.mxu0 0.0
    %271 = vmatprep.subr.mxu0 0.0
    %272 = vmatpush2.msra.mxu0 0.0
    %273 = vmatprep.subr.mxu0 0.0
    %274 = vmatpush2.msra.mxu0 0.0
    %275 = vmatprep.subr.mxu0 0.0
    %276 = vmatpush2.msra.mxu0 0.0
    %277 = vmatprep.subr.mxu0 0.0
    %278 = vmatpush2.msra.mxu0 0.0
    %279 = vmatprep.subr.mxu0 0.0
    %280 = vmatpush2.msra.mxu0 0.0
    %281 = vmatprep.subr.mxu0 0.0
    %282 = vmatpush2.msra.mxu0 0.0
    %283 = vmatprep.subr.mxu0 0.0
    %284 = vmatpush2.msra.mxu0 0.0
    %285 = vmatprep.subr.mxu0 0.0
    %286 = vmatpush2.msra.mxu0 0.0
    %287 = vmatprep.subr.mxu0 0.0
    %288 = vmatpush2.msra.mxu0 0.0
    %289 = vmatprep.subr.mxu0 0.0
    %290 = vmatpush2.msra.mxu0 0.0
    %291 = vmatprep.subr.mxu0 0.0
    %292 = vmatpush2.msra.mxu0 0.0
    %293 = vmatprep.subr.mxu0 0.0
    %294 = vmatpush2.msra.mxu0 0.0
    %295 = vmatprep.subr.mxu0 0.0
    %296 = vmatpush2.msra.mxu0 0.0
    %297 = vmatprep.subr.mxu0 0.0
    %298 = vmatpush2.msra.mxu0 0.0
    %299 = vmatprep.subr.mxu0 0.0
    %300 = vmatpush2.msra.mxu0 0.0
    %301 = vmatprep.mubr.f32.mxu0 0.0
    %302 = vmatmul.mubr.f32.gmra.mxu0 %v101
    %v303 = vpop.f32.mrf.mxu0
    %v304 = vadd.f32 %v90, %v303
    %v305 = vpop.f32.mrf.mxu0
    %v306 = vadd.f32 %v94, %v305
    %307 = vmatprep.mubr.f32.mxu0 0.0
    %308 = vmatmul.mubr.f32.gmra.mxu0 %v104
    %v309 = vpop.f32.mrf.mxu0
    %v310 = vadd.f32 %v90, %v309
    %v311 = vpop.f32.mrf.mxu0
    %v312 = vadd.f32 %v94, %v311
    %313 = vmatprep.mubr.f32.mxu0 0.0
    %314 = vmatmul.mubr.f32.gmra.mxu0 %v107
    %v315 = vpop.f32.mrf.mxu0
    %v316 = vadd.f32 %v90, %v315
    %v317 = vpop.f32.mrf.mxu0
    %v318 = vadd.f32 %v94, %v317
    %319 = vmatprep.mubr.f32.mxu0 0.0
    %320 = vmatmul.mubr.f32.gmra.mxu0 %v110
    %v321 = vpop.f32.mrf.mxu0
    %v322 = vadd.f32 %v90, %v321
    %v323 = vpop.f32.mrf.mxu0
    %v324 = vadd.f32 %v94, %v323
    %325 = vmatprep.mubr.f32.mxu0 0.0
    %326 = vmatmul.mubr.f32.gmra.mxu0 %v113
    %v327 = vpop.f32.mrf.mxu0
    %v328 = vadd.f32 %v90, %v327
    %v329 = vpop.f32.mrf.mxu0
    %v330 = vadd.f32 %v94, %v329
    %331 = vmatprep.mubr.f32.mxu0 0.0
    %332 = vmatmul.mubr.f32.gmra.mxu0 %v116
    %v333 = vpop.f32.mrf.mxu0
    %v334 = vadd.f32 %v90, %v333
    %v335 = vpop.f32.mrf.mxu0
    %v336 = vadd.f32 %v94, %v335
    %337 = vmatprep.mubr.f32.mxu0 0.0
    %338 = vmatmul.mubr.f32.gmra.mxu0 %v119
    %v339 = vpop.f32.mrf.mxu0
    %v340 = vadd.f32 %v90, %v339
    %v341 = vpop.f32.mrf.mxu0
    %v342 = vadd.f32 %v94, %v341
    %343 = vmatprep.mubr.f32.mxu0 0.0
    %344 = vmatmul.mubr.f32.gmra.mxu0 %v122
    %v345 = vpop.f32.mrf.mxu0
    %v346 = vadd.f32 %v90, %v345
    %v347 = vpop.f32.mrf.mxu0
    %v348 = vadd.f32 %v94, %v347
    %349 = vdwg.mxu0
    %350 = vst [vmem:[#allocation2] sm:$0xff] %v191
    %351 = vst [vmem:[#allocation2 + $0x8] sm:$0xff] %v193
    %352 = vst [vmem:[#allocation2 + $0x10] sm:$0xff] %v304
    %353 = vst [vmem:[#allocation2 + $0x18] sm:$0xff] %v306
    %354 = vst [vmem:[#allocation2 + $0x20] sm:$0xff] %v197
    %355 = vst [vmem:[#allocation2 + $0x28] sm:$0xff] %v199
    %356 = vst [vmem:[#allocation2 + $0x30] sm:$0xff] %v310
    %357 = vst [vmem:[#allocation2 + $0x38] sm:$0xff] %v312
    %358 = vst [vmem:[#allocation2 + $0x40] sm:$0xff] %v203
    %359 = vst [vmem:[#allocation2 + $0x48] sm:$0xff] %v205
    %360 = vst [vmem:[#allocation2 + $0x50] sm:$0xff] %v316
    %361 = vst [vmem:[#allocation2 + $0x58] sm:$0xff] %v318
    %362 = vst [vmem:[#allocation2 + $0x60] sm:$0xff] %v209
    %363 = vst [vmem:[#allocation2 + $0x68] sm:$0xff] %v211
    %364 = vst [vmem:[#allocation2 + $0x70] sm:$0xff] %v322
    %365 = vst [vmem:[#allocation2 + $0x78] sm:$0xff] %v324
    %366 = vst [vmem:[#allocation2 + $0x80] sm:$0xff] %v215
    %367 = vst [vmem:[#allocation2 + $0x88] sm:$0xff] %v217
    %368 = vst [vmem:[#allocation2 + $0x90] sm:$0xff] %v328
    %369 = vst [vmem:[#allocation2 + $0x98] sm:$0xff] %v330
    %370 = vst [vmem:[#allocation2 + $0xa0] sm:$0xff] %v221
    %371 = vst [vmem:[#allocation2 + $0xa8] sm:$0xff] %v223
    %372 = vst [vmem:[#allocation2 + $0xb0] sm:$0xff] %v334
    %373 = vst [vmem:[#allocation2 + $0xb8] sm:$0xff] %v336
    %374 = vst [vmem:[#allocation2 + $0xc0] sm:$0xff] %v227
    %375 = vst [vmem:[#allocation2 + $0xc8] sm:$0xff] %v229
    %376 = vst [vmem:[#allocation2 + $0xd0] sm:$0xff] %v340
    %377 = vst [vmem:[#allocation2 + $0xd8] sm:$0xff] %v342
    %378 = vst [vmem:[#allocation2 + $0xe0] sm:$0xff] %v233
    %379 = vst [vmem:[#allocation2 + $0xe8] sm:$0xff] %v235
    %380 = vst [vmem:[#allocation2 + $0xf0] sm:$0xff] %v346
    %381 = vst [vmem:[#allocation2 + $0xf8] sm:$0xff] %v348
    %v382 = vld [vmem:[#allocation4] sm:$0xff]
    %v383 = vld [vmem:[#allocation5] sm:$0xff]
    %s384 = smul.u32 0, 4
    %s385 = smul.addr %s384, 8
    %s386 = scalar_lea.vmem [#allocation2], %s385
    %v387 = vld [vmem:[%s386] sm:$0xff]
    %v388 = vld [vmem:[%s386 + $0x8] sm:$0xff]
    %v389 = vld [vmem:[%s386 + $0x10] sm:$0xff]
    %v390 = vld [vmem:[%s386 + $0x18] sm:$0xff]
    %v391 = vld [vmem:[#allocation9] sm:$0xff]
    %v392 = vld [vmem:[#allocation9 + $0x8] sm:$0xff]
    %v393 = vld [vmem:[#allocation9 + $0x10] sm:$0xff]
    %v394 = vld [vmem:[#allocation9 + $0x18] sm:$0xff]
    %v395 = vld [vmem:[#allocation9 + $0x20] sm:$0xff]
    %v396 = vld [vmem:[#allocation9 + $0x28] sm:$0xff]
    %v397 = vld [vmem:[#allocation9 + $0x30] sm:$0xff]
    %v398 = vld [vmem:[#allocation9 + $0x38] sm:$0xff]
    %v399 = vld [vmem:[#allocation9 + $0x40] sm:$0xff]
    %v400 = vld [vmem:[#allocation9 + $0x48] sm:$0xff]
    %v401 = vld [vmem:[#allocation9 + $0x50] sm:$0xff]
    %v402 = vld [vmem:[#allocation9 + $0x58] sm:$0xff]
    %v403 = vld [vmem:[#allocation9 + $0x60] sm:$0xff]
    %v404 = vld [vmem:[#allocation9 + $0x68] sm:$0xff]
    %v405 = vld [vmem:[#allocation9 + $0x70] sm:$0xff]
    %v406 = vld [vmem:[#allocation9 + $0x78] sm:$0xff]
    %v407 = vld [vmem:[#allocation9 + $0x80] sm:$0xff]
    %v408 = vld [vmem:[#allocation9 + $0x88] sm:$0xff]
    %v409 = vld [vmem:[#allocation9 + $0x90] sm:$0xff]
    %v410 = vld [vmem:[#allocation9 + $0x98] sm:$0xff]
    %v411 = vld [vmem:[#allocation9 + $0xa0] sm:$0xff]
    %v412 = vld [vmem:[#allocation9 + $0xa8] sm:$0xff]
    %v413 = vld [vmem:[#allocation9 + $0xb0] sm:$0xff]
    %v414 = vld [vmem:[#allocation9 + $0xb8] sm:$0xff]
    %v415 = vld [vmem:[#allocation9 + $0xc0] sm:$0xff]
    %v416 = vld [vmem:[#allocation9 + $0xc8] sm:$0xff]
    %v417 = vld [vmem:[#allocation9 + $0xd0] sm:$0xff]
    %v418 = vld [vmem:[#allocation9 + $0xd8] sm:$0xff]
    %v419 = vld [vmem:[#allocation9 + $0xe0] sm:$0xff]
    %v420 = vld [vmem:[#allocation9 + $0xe8] sm:$0xff]
    %v421 = vld [vmem:[#allocation9 + $0xf0] sm:$0xff]
    %v422 = vld [vmem:[#allocation9 + $0xf8] sm:$0xff]
    %v423 = vld [vmem:[#allocation9 + $0x100] sm:$0xff]
    %v424 = vld [vmem:[#allocation9 + $0x108] sm:$0xff]
    %v425 = vld [vmem:[#allocation9 + $0x110] sm:$0xff]
    %v426 = vld [vmem:[#allocation9 + $0x118] sm:$0xff]
    %v427 = vld [vmem:[#allocation9 + $0x120] sm:$0xff]
    %v428 = vld [vmem:[#allocation9 + $0x128] sm:$0xff]
    %v429 = vld [vmem:[#allocation9 + $0x130] sm:$0xff]
    %v430 = vld [vmem:[#allocation9 + $0x138] sm:$0xff]
    %v431 = vld [vmem:[#allocation9 + $0x140] sm:$0xff]
    %v432 = vld [vmem:[#allocation9 + $0x148] sm:$0xff]
    %v433 = vld [vmem:[#allocation9 + $0x150] sm:$0xff]
    %v434 = vld [vmem:[#allocation9 + $0x158] sm:$0xff]
    %v435 = vld [vmem:[#allocation9 + $0x160] sm:$0xff]
    %v436 = vld [vmem:[#allocation9 + $0x168] sm:$0xff]
    %v437 = vld [vmem:[#allocation9 + $0x170] sm:$0xff]
    %v438 = vld [vmem:[#allocation9 + $0x178] sm:$0xff]
    %v439 = vld [vmem:[#allocation9 + $0x180] sm:$0xff]
    %v440 = vld [vmem:[#allocation9 + $0x188] sm:$0xff]
    %v441 = vld [vmem:[#allocation9 + $0x190] sm:$0xff]
    %v442 = vld [vmem:[#allocation9 + $0x198] sm:$0xff]
    %v443 = vld [vmem:[#allocation9 + $0x1a0] sm:$0xff]
    %v444 = vld [vmem:[#allocation9 + $0x1a8] sm:$0xff]
    %v445 = vld [vmem:[#allocation9 + $0x1b0] sm:$0xff]
    %v446 = vld [vmem:[#allocation9 + $0x1b8] sm:$0xff]
    %v447 = vld [vmem:[#allocation9 + $0x1c0] sm:$0xff]
    %v448 = vld [vmem:[#allocation9 + $0x1c8] sm:$0xff]
    %v449 = vld [vmem:[#allocation9 + $0x1d0] sm:$0xff]
    %v450 = vld [vmem:[#allocation9 + $0x1d8] sm:$0xff]
    %v451 = vld [vmem:[#allocation9 + $0x1e0] sm:$0xff]
    %v452 = vld [vmem:[#allocation9 + $0x1e8] sm:$0xff]
    %v453 = vld [vmem:[#allocation9 + $0x1f0] sm:$0xff]
    %v454 = vld [vmem:[#allocation9 + $0x1f8] sm:$0xff]
    %455 = vmatprep.subr.mxu0 %v452
    %456 = vmatpush1.msra.mxu0 %v451
    %457 = vmatprep.subr.mxu0 %v448
    %458 = vmatpush1.msra.mxu0 %v447
    %459 = vmatprep.subr.mxu0 %v444
    %460 = vmatpush1.msra.mxu0 %v443
    %461 = vmatprep.subr.mxu0 %v440
    %462 = vmatpush1.msra.mxu0 %v439
    %463 = vmatprep.subr.mxu0 %v436
    %464 = vmatpush1.msra.mxu0 %v435
    %465 = vmatprep.subr.mxu0 %v432
    %466 = vmatpush1.msra.mxu0 %v431
    %467 = vmatprep.subr.mxu0 %v428
    %468 = vmatpush1.msra.mxu0 %v427
    %469 = vmatprep.subr.mxu0 %v424
    %470 = vmatpush1.msra.mxu0 %v423
    %471 = vmatprep.subr.mxu0 %v420
    %472 = vmatpush1.msra.mxu0 %v419
    %473 = vmatprep.subr.mxu0 %v416
    %474 = vmatpush1.msra.mxu0 %v415
    %475 = vmatprep.subr.mxu0 %v412
    %476 = vmatpush1.msra.mxu0 %v411
    %477 = vmatprep.subr.mxu0 %v408
    %478 = vmatpush1.msra.mxu0 %v407
    %479 = vmatprep.subr.mxu0 %v404
    %480 = vmatpush1.msra.mxu0 %v403
    %481 = vmatprep.subr.mxu0 %v400
    %482 = vmatpush1.msra.mxu0 %v399
    %483 = vmatprep.subr.mxu0 %v396
    %484 = vmatpush1.msra.mxu0 %v395
    %485 = vmatprep.subr.mxu0 %v392
    %486 = vmatpush1.msra.mxu0 %v391
    %487 = vmatprep.subr.mxu0 0.0
    %488 = vmatpush2.msra.mxu0 0.0
    %489 = vmatprep.subr.mxu0 0.0
    %490 = vmatpush2.msra.mxu0 0.0
    %491 = vmatprep.subr.mxu0 0.0
    %492 = vmatpush2.msra.mxu0 0.0
    %493 = vmatprep.subr.mxu0 0.0
    %494 = vmatpush2.msra.mxu0 0.0
    %495 = vmatprep.subr.mxu0 0.0
    %496 = vmatpush2.msra.mxu0 0.0
    %497 = vmatprep.subr.mxu0 0.0
    %498 = vmatpush2.msra.mxu0 0.0
    %499 = vmatprep.subr.mxu0 0.0
    %500 = vmatpush2.msra.mxu0 0.0
    %501 = vmatprep.subr.mxu0 0.0
    %502 = vmatpush2.msra.mxu0 0.0
    %503 = vmatprep.subr.mxu0 0.0
    %504 = vmatpush2.msra.mxu0 0.0
    %505 = vmatprep.subr.mxu0 0.0
    %506 = vmatpush2.msra.mxu0 0.0
    %507 = vmatprep.subr.mxu0 0.0
    %508 = vmatpush2.msra.mxu0 0.0
    %509 = vmatprep.subr.mxu0 0.0
    %510 = vmatpush2.msra.mxu0 0.0
    %511 = vmatprep.subr.mxu0 0.0
    %512 = vmatpush2.msra.mxu0 0.0
    %513 = vmatprep.subr.mxu0 0.0
    %514 = vmatpush2.msra.mxu0 0.0
    %515 = vmatprep.subr.mxu0 0.0
    %516 = vmatpush2.msra.mxu0 0.0
    %517 = vmatprep.subr.mxu0 0.0
    %518 = vmatpush2.msra.mxu0 0.0
    %519 = vmatprep.mubr.f32.mxu0 0.0
    %520 = vmatmul.mubr.f32.gmra.mxu0 %v382
    %v521 = vpop.f32.mrf.mxu0
    %v522 = vadd.f32 0.0, %v521
    %v523 = vpop.f32.mrf.mxu0
    %v524 = vadd.f32 0.0, %v523
    %525 = vdwg.mxu0
    %526 = vmatprep.subr.mxu0 %v454
    %527 = vmatpush1.msra.mxu0 %v453
    %528 = vmatprep.subr.mxu0 %v450
    %529 = vmatpush1.msra.mxu0 %v449
    %530 = vmatprep.subr.mxu0 %v446
    %531 = vmatpush1.msra.mxu0 %v445
    %532 = vmatprep.subr.mxu0 %v442
    %533 = vmatpush1.msra.mxu0 %v441
    %534 = vmatprep.subr.mxu0 %v438
    %535 = vmatpush1.msra.mxu0 %v437
    %536 = vmatprep.subr.mxu0 %v434
    %537 = vmatpush1.msra.mxu0 %v433
    %538 = vmatprep.subr.mxu0 %v430
    %539 = vmatpush1.msra.mxu0 %v429
    %540 = vmatprep.subr.mxu0 %v426
    %541 = vmatpush1.msra.mxu0 %v425
    %542 = vmatprep.subr.mxu0 %v422
    %543 = vmatpush1.msra.mxu0 %v421
    %544 = vmatprep.subr.mxu0 %v418
    %545 = vmatpush1.msra.mxu0 %v417
    %546 = vmatprep.subr.mxu0 %v414
    %547 = vmatpush1.msra.mxu0 %v413
    %548 = vmatprep.subr.mxu0 %v410
    %549 = vmatpush1.msra.mxu0 %v409
    %550 = vmatprep.subr.mxu0 %v406
    %551 = vmatpush1.msra.mxu0 %v405
    %552 = vmatprep.subr.mxu0 %v402
    %553 = vmatpush1.msra.mxu0 %v401
    %554 = vmatprep.subr.mxu0 %v398
    %555 = vmatpush1.msra.mxu0 %v397
    %556 = vmatprep.subr.mxu0 %v394
    %557 = vmatpush1.msra.mxu0 %v393
    %558 = vmatprep.subr.mxu0 0.0
    %559 = vmatpush2.msra.mxu0 0.0
    %560 = vmatprep.subr.mxu0 0.0
    %561 = vmatpush2.msra.mxu0 0.0
    %562 = vmatprep.subr.mxu0 0.0
    %563 = vmatpush2.msra.mxu0 0.0
    %564 = vmatprep.subr.mxu0 0.0
    %565 = vmatpush2.msra.mxu0 0.0
    %566 = vmatprep.subr.mxu0 0.0
    %567 = vmatpush2.msra.mxu0 0.0
    %568 = vmatprep.subr.mxu0 0.0
    %569 = vmatpush2.msra.mxu0 0.0
    %570 = vmatprep.subr.mxu0 0.0
    %571 = vmatpush2.msra.mxu0 0.0
    %572 = vmatprep.subr.mxu0 0.0
    %573 = vmatpush2.msra.mxu0 0.0
    %574 = vmatprep.subr.mxu0 0.0
    %575 = vmatpush2.msra.mxu0 0.0
    %576 = vmatprep.subr.mxu0 0.0
    %577 = vmatpush2.msra.mxu0 0.0
    %578 = vmatprep.subr.mxu0 0.0
    %579 = vmatpush2.msra.mxu0 0.0
    %580 = vmatprep.subr.mxu0 0.0
    %581 = vmatpush2.msra.mxu0 0.0
    %582 = vmatprep.subr.mxu0 0.0
    %583 = vmatpush2.msra.mxu0 0.0
    %584 = vmatprep.subr.mxu0 0.0
    %585 = vmatpush2.msra.mxu0 0.0
    %586 = vmatprep.subr.mxu0 0.0
    %587 = vmatpush2.msra.mxu0 0.0
    %588 = vmatprep.subr.mxu0 0.0
    %589 = vmatpush2.msra.mxu0 0.0
    %590 = vmatprep.mubr.f32.mxu0 0.0
    %591 = vmatmul.mubr.f32.gmra.mxu0 %v382
    %v592 = vpop.f32.mrf.mxu0
    %v593 = vadd.f32 0.0, %v592
    %v594 = vpop.f32.mrf.mxu0
    %v595 = vadd.f32 0.0, %v594
    %596 = vdwg.mxu0
    %v597 = vadd.f32 %v387, %v522
    %v598 = vadd.f32 %v388, %v524
    %v599 = vadd.f32 %v389, %v593
    %v600 = vadd.f32 %v390, %v595
    %v601 = vmul.f32 %v597, 0.5
    %v602 = vmul.f32 %v598, 0.5
    %v603 = vmul.f32 %v599, 0.5
    %v604 = vtanh.pop %v601
    %v605 = vtanh.pop %v602
    %v606 = vtanh.pop %v603
    %v607 = vadd.f32 %v604, 1.0
    %v608 = vadd.f32 %v605, 1.0
    %v609 = vadd.f32 %v606, 1.0
    %v610 = vmul.f32 %v607, 0.5
    %v611 = vmul.f32 %v608, 0.5
    %v612 = vmul.f32 %v609, 0.5
    %v613 = vtanh.pop %v600
    %v614 = vmul.f32 %v611, %v383
    %v615 = vmul.f32 %v610, %v613
    %v616 = vadd.f32 %v614, %v615
    %v617 = vtanh.pop %v616
    %v618 = vmul.f32 %v612, %v617
    %619 = vst [vmem:[#allocation3] sm:$0xff] %v618
    %s620 = smul.u32 1, 4
    %s621 = smul.addr %s620, 8
    %s622 = scalar_lea.vmem [#allocation2], %s621
    %v623 = vld [vmem:[%s622] sm:$0xff]
    %v624 = vld [vmem:[%s622 + $0x8] sm:$0xff]
    %v625 = vld [vmem:[%s622 + $0x10] sm:$0xff]
    %v626 = vld [vmem:[%s622 + $0x18] sm:$0xff]
    %v627 = vld [vmem:[#allocation9] sm:$0xff]
    %v628 = vld [vmem:[#allocation9 + $0x8] sm:$0xff]
    %v629 = vld [vmem:[#allocation9 + $0x10] sm:$0xff]
    %v630 = vld [vmem:[#allocation9 + $0x18] sm:$0xff]
    %v631 = vld [vmem:[#allocation9 + $0x20] sm:$0xff]
    %v632 = vld [vmem:[#allocation9 + $0x28] sm:$0xff]
    %v633 = vld [vmem:[#allocation9 + $0x30] sm:$0xff]
    %v634 = vld [vmem:[#allocation9 + $0x38] sm:$0xff]
    %v635 = vld [vmem:[#allocation9 + $0x40] sm:$0xff]
    %v636 = vld [vmem:[#allocation9 + $0x48] sm:$0xff]
    %v637 = vld [vmem:[#allocation9 + $0x50] sm:$0xff]
    %v638 = vld [vmem:[#allocation9 + $0x58] sm:$0xff]
    %v639 = vld [vmem:[#allocation9 + $0x60] sm:$0xff]
    %v640 = vld [vmem:[#allocation9 + $0x68] sm:$0xff]
    %v641 = vld [vmem:[#allocation9 + $0x70] sm:$0xff]
    %v642 = vld [vmem:[#allocation9 + $0x78] sm:$0xff]
    %v643 = vld [vmem:[#allocation9 + $0x80] sm:$0xff]
    %v644 = vld [vmem:[#allocation9 + $0x88] sm:$0xff]
    %v645 = vld [vmem:[#allocation9 + $0x90] sm:$0xff]
    %v646 = vld [vmem:[#allocation9 + $0x98] sm:$0xff]
    %v647 = vld [vmem:[#allocation9 + $0xa0] sm:$0xff]
    %v648 = vld [vmem:[#allocation9 + $0xa8] sm:$0xff]
    %v649 = vld [vmem:[#allocation9 + $0xb0] sm:$0xff]
    %v650 = vld [vmem:[#allocation9 + $0xb8] sm:$0xff]
    %v651 = vld [vmem:[#allocation9 + $0xc0] sm:$0xff]
    %v652 = vld [vmem:[#allocation9 + $0xc8] sm:$0xff]
    %v653 = vld [vmem:[#allocation9 + $0xd0] sm:$0xff]
    %v654 = vld [vmem:[#allocation9 + $0xd8] sm:$0xff]
    %v655 = vld [vmem:[#allocation9 + $0xe0] sm:$0xff]
    %v656 = vld [vmem:[#allocation9 + $0xe8] sm:$0xff]
    %v657 = vld [vmem:[#allocation9 + $0xf0] sm:$0xff]
    %v658 = vld [vmem:[#allocation9 + $0xf8] sm:$0xff]
    %v659 = vld [vmem:[#allocation9 + $0x100] sm:$0xff]
    %v660 = vld [vmem:[#allocation9 + $0x108] sm:$0xff]
    %v661 = vld [vmem:[#allocation9 + $0x110] sm:$0xff]
    %v662 = vld [vmem:[#allocation9 + $0x118] sm:$0xff]
    %v663 = vld [vmem:[#allocation9 + $0x120] sm:$0xff]
    %v664 = vld [vmem:[#allocation9 + $0x128] sm:$0xff]
    %v665 = vld [vmem:[#allocation9 + $0x130] sm:$0xff]
    %v666 = vld [vmem:[#allocation9 + $0x138] sm:$0xff]
    %v667 = vld [vmem:[#allocation9 + $0x140] sm:$0xff]
    %v668 = vld [vmem:[#allocation9 + $0x148] sm:$0xff]
    %v669 = vld [vmem:[#allocation9 + $0x150] sm:$0xff]
    %v670 = vld [vmem:[#allocation9 + $0x158] sm:$0xff]
    %v671 = vld [vmem:[#allocation9 + $0x160] sm:$0xff]
    %v672 = vld [vmem:[#allocation9 + $0x168] sm:$0xff]
    %v673 = vld [vmem:[#allocation9 + $0x170] sm:$0xff]
    %v674 = vld [vmem:[#allocation9 + $0x178] sm:$0xff]
    %v675 = vld [vmem:[#allocation9 + $0x180] sm:$0xff]
    %v676 = vld [vmem:[#allocation9 + $0x188] sm:$0xff]
    %v677 = vld [vmem:[#allocation9 + $0x190] sm:$0xff]
    %v678 = vld [vmem:[#allocation9 + $0x198] sm:$0xff]
    %v679 = vld [vmem:[#allocation9 + $0x1a0] sm:$0xff]
    %v680 = vld [vmem:[#allocation9 + $0x1a8] sm:$0xff]
    %v681 = vld [vmem:[#allocation9 + $0x1b0] sm:$0xff]
    %v682 = vld [vmem:[#allocation9 + $0x1b8] sm:$0xff]
    %v683 = vld [vmem:[#allocation9 + $0x1c0] sm:$0xff]
    %v684 = vld [vmem:[#allocation9 + $0x1c8] sm:$0xff]
    %v685 = vld [vmem:[#allocation9 + $0x1d0] sm:$0xff]
    %v686 = vld [vmem:[#allocation9 + $0x1d8] sm:$0xff]
    %v687 = vld [vmem:[#allocation9 + $0x1e0] sm:$0xff]
    %v688 = vld [vmem:[#allocation9 + $0x1e8] sm:$0xff]
    %v689 = vld [vmem:[#allocation9 + $0x1f0] sm:$0xff]
    %v690 = vld [vmem:[#allocation9 + $0x1f8] sm:$0xff]
    %691 = vmatprep.subr.mxu0 %v688
    %692 = vmatpush1.msra.mxu0 %v687
    %693 = vmatprep.subr.mxu0 %v684
    %694 = vmatpush1.msra.mxu0 %v683
    %695 = vmatprep.subr.mxu0 %v680
    %696 = vmatpush1.msra.mxu0 %v679
    %697 = vmatprep.subr.mxu0 %v676
    %698 = vmatpush1.msra.mxu0 %v675
    %699 = vmatprep.subr.mxu0 %v672
    %700 = vmatpush1.msra.mxu0 %v671
    %701 = vmatprep.subr.mxu0 %v668
    %702 = vmatpush1.msra.mxu0 %v667
    %703 = vmatprep.subr.mxu0 %v664
    %704 = vmatpush1.msra.mxu0 %v663
    %705 = vmatprep.subr.mxu0 %v660
    %706 = vmatpush1.msra.mxu0 %v659
    %707 = vmatprep.subr.mxu0 %v656
    %708 = vmatpush1.msra.mxu0 %v655
    %709 = vmatprep.subr.mxu0 %v652
    %710 = vmatpush1.msra.mxu0 %v651
    %711 = vmatprep.subr.mxu0 %v648
    %712 = vmatpush1.msra.mxu0 %v647
    %713 = vmatprep.subr.mxu0 %v644
    %714 = vmatpush1.msra.mxu0 %v643
    %715 = vmatprep.subr.mxu0 %v640
    %716 = vmatpush1.msra.mxu0 %v639
    %717 = vmatprep.subr.mxu0 %v636
    %718 = vmatpush1.msra.mxu0 %v635
    %719 = vmatprep.subr.mxu0 %v632
    %720 = vmatpush1.msra.mxu0 %v631
    %721 = vmatprep.subr.mxu0 %v628
    %722 = vmatpush1.msra.mxu0 %v627
    %723 = vmatprep.subr.mxu0 0.0
    %724 = vmatpush2.msra.mxu0 0.0
    %725 = vmatprep.subr.mxu0 0.0
    %726 = vmatpush2.msra.mxu0 0.0
    %727 = vmatprep.subr.mxu0 0.0
    %728 = vmatpush2.msra.mxu0 0.0
    %729 = vmatprep.subr.mxu0 0.0
    %730 = vmatpush2.msra.mxu0 0.0
    %731 = vmatprep.subr.mxu0 0.0
    %732 = vmatpush2.msra.mxu0 0.0
    %733 = vmatprep.subr.mxu0 0.0
    %734 = vmatpush2.msra.mxu0 0.0
    %735 = vmatprep.subr.mxu0 0.0
    %736 = vmatpush2.msra.mxu0 0.0
    %737 = vmatprep.subr.mxu0 0.0
    %738 = vmatpush2.msra.mxu0 0.0
    %739 = vmatprep.subr.mxu0 0.0
    %740 = vmatpush2.msra.mxu0 0.0
    %741 = vmatprep.subr.mxu0 0.0
    %742 = vmatpush2.msra.mxu0 0.0
    %743 = vmatprep.subr.mxu0 0.0
    %744 = vmatpush2.msra.mxu0 0.0
    %745 = vmatprep.subr.mxu0 0.0
    %746 = vmatpush2.msra.mxu0 0.0
    %747 = vmatprep.subr.mxu0 0.0
    %748 = vmatpush2.msra.mxu0 0.0
    %749 = vmatprep.subr.mxu0 0.0
    %750 = vmatpush2.msra.mxu0 0.0
    %751 = vmatprep.subr.mxu0 0.0
    %752 = vmatpush2.msra.mxu0 0.0
    %753 = vmatprep.subr.mxu0 0.0
    %754 = vmatpush2.msra.mxu0 0.0
    %755 = vmatprep.mubr.f32.mxu0 0.0
    %756 = vmatmul.mubr.f32.gmra.mxu0 %v618
    %v757 = vpop.f32.mrf.mxu0
    %v758 = vadd.f32 0.0, %v757
    %v759 = vpop.f32.mrf.mxu0
    %v760 = vadd.f32 0.0, %v759
    %761 = vdwg.mxu0
    %762 = vmatprep.subr.mxu0 %v690
    %763 = vmatpush1.msra.mxu0 %v689
    %764 = vmatprep.subr.mxu0 %v686
    %765 = vmatpush1.msra.mxu0 %v685
    %766 = vmatprep.subr.mxu0 %v682
    %767 = vmatpush1.msra.mxu0 %v681
    %768 = vmatprep.subr.mxu0 %v678
    %769 = vmatpush1.msra.mxu0 %v677
    %770 = vmatprep.subr.mxu0 %v674
    %771 = vmatpush1.msra.mxu0 %v673
    %772 = vmatprep.subr.mxu0 %v670
    %773 = vmatpush1.msra.mxu0 %v669
    %774 = vmatprep.subr.mxu0 %v666
    %775 = vmatpush1.msra.mxu0 %v665
    %776 = vmatprep.subr.mxu0 %v662
    %777 = vmatpush1.msra.mxu0 %v661
    %778 = vmatprep.subr.mxu0 %v658
    %779 = vmatpush1.msra.mxu0 %v657
    %780 = vmatprep.subr.mxu0 %v654
    %781 = vmatpush1.msra.mxu0 %v653
    %782 = vmatprep.subr.mxu0 %v650
    %783 = vmatpush1.msra.mxu0 %v649
    %784 = vmatprep.subr.mxu0 %v646
    %785 = vmatpush1.msra.mxu0 %v645
    %786 = vmatprep.subr.mxu0 %v642
    %787 = vmatpush1.msra.mxu0 %v641
    %788 = vmatprep.subr.mxu0 %v638
    %789 = vmatpush1.msra.mxu0 %v637
    %790 = vmatprep.subr.mxu0 %v634
    %791 = vmatpush1.msra.mxu0 %v633
    %792 = vmatprep.subr.mxu0 %v630
    %793 = vmatpush1.msra.mxu0 %v629
    %794 = vmatprep.subr.mxu0 0.0
    %795 = vmatpush2.msra.mxu0 0.0
    %796 = vmatprep.subr.mxu0 0.0
    %797 = vmatpush2.msra.mxu0 0.0
    %798 = vmatprep.subr.mxu0 0.0
    %799 = vmatpush2.msra.mxu0 0.0
    %800 = vmatprep.subr.mxu0 0.0
    %801 = vmatpush2.msra.mxu0 0.0
    %802 = vmatprep.subr.mxu0 0.0
    %803 = vmatpush2.msra.mxu0 0.0
    %804 = vmatprep.subr.mxu0 0.0
    %805 = vmatpush2.msra.mxu0 0.0
    %806 = vmatprep.subr.mxu0 0.0
    %807 = vmatpush2.msra.mxu0 0.0
    %808 = vmatprep.subr.mxu0 0.0
    %809 = vmatpush2.msra.mxu0 0.0
    %810 = vmatprep.subr.mxu0 0.0
    %811 = vmatpush2.msra.mxu0 0.0
    %812 = vmatprep.subr.mxu0 0.0
    %813 = vmatpush2.msra.mxu0 0.0
    %814 = vmatprep.subr.mxu0 0.0
    %815 = vmatpush2.msra.mxu0 0.0
    %816 = vmatprep.subr.mxu0 0.0
    %817 = vmatpush2.msra.mxu0 0.0
    %818 = vmatprep.subr.mxu0 0.0
    %819 = vmatpush2.msra.mxu0 0.0
    %820 = vmatprep.subr.mxu0 0.0
    %821 = vmatpush2.msra.mxu0 0.0
    %822 = vmatprep.subr.mxu0 0.0
    %823 = vmatpush2.msra.mxu0 0.0
    %824 = vmatprep.subr.mxu0 0.0
    %825 = vmatpush2.msra.mxu0 0.0
    %826 = vmatprep.mubr.f32.mxu0 0.0
    %827 = vmatmul.mubr.f32.gmra.mxu0 %v618
    %v828 = vpop.f32.mrf.mxu0
    %v829 = vadd.f32 0.0, %v828
    %v830 = vpop.f32.mrf.mxu0
    %v831 = vadd.f32 0.0, %v830
    %832 = vdwg.mxu0
    %v833 = vadd.f32 %v623, %v758
    %v834 = vadd.f32 %v624, %v760
    %v835 = vadd.f32 %v625, %v829
    %v836 = vadd.f32 %v626, %v831
    %v837 = vmul.f32 %v833, 0.5
    %v838 = vmul.f32 %v834, 0.5
    %v839 = vmul.f32 %v835, 0.5
    %v840 = vtanh.pop %v837
    %v841 = vtanh.pop %v838
    %v842 = vtanh.pop %v839
    %v843 = vadd.f32 %v840, 1.0
    %v844 = vadd.f32 %v841, 1.0
    %v845 = vadd.f32 %v842, 1.0
    %v846 = vmul.f32 %v843, 0.5
    %v847 = vmul.f32 %v844, 0.5
    %v848 = vmul.f32 %v845, 0.5
    %v849 = vtanh.pop %v836
    %v850 = vmul.f32 %v847, %v616
    %v851 = vmul.f32 %v846, %v849
    %v852 = vadd.f32 %v850, %v851
    %v853 = vtanh.pop %v852
    %v854 = vmul.f32 %v848, %v853
    %s855 = scalar_lea.vmem [#allocation3], 8
    %856 = vst [vmem:[%s855] sm:$0xff] %v854
    %s857 = smul.u32 2, 4
    %s858 = smul.addr %s857, 8
    %s859 = scalar_lea.vmem [#allocation2], %s858
    %v860 = vld [vmem:[%s859] sm:$0xff]
    %v861 = vld [vmem:[%s859 + $0x8] sm:$0xff]
    %v862 = vld [vmem:[%s859 + $0x10] sm:$0xff]
    %v863 = vld [vmem:[%s859 + $0x18] sm:$0xff]
    %v864 = vld [vmem:[#allocation9] sm:$0xff]
    %v865 = vld [vmem:[#allocation9 + $0x8] sm:$0xff]
    %v866 = vld [vmem:[#allocation9 + $0x10] sm:$0xff]
    %v867 = vld [vmem:[#allocation9 + $0x18] sm:$0xff]
    %v868 = vld [vmem:[#allocation9 + $0x20] sm:$0xff]
    %v869 = vld [vmem:[#allocation9 + $0x28] sm:$0xff]
    %v870 = vld [vmem:[#allocation9 + $0x30] sm:$0xff]
    %v871 = vld [vmem:[#allocation9 + $0x38] sm:$0xff]
    %v872 = vld [vmem:[#allocation9 + $0x40] sm:$0xff]
    %v873 = vld [vmem:[#allocation9 + $0x48] sm:$0xff]
    %v874 = vld [vmem:[#allocation9 + $0x50] sm:$0xff]
    %v875 = vld [vmem:[#allocation9 + $0x58] sm:$0xff]
    %v876 = vld [vmem:[#allocation9 + $0x60] sm:$0xff]
    %v877 = vld [vmem:[#allocation9 + $0x68] sm:$0xff]
    %v878 = vld [vmem:[#allocation9 + $0x70] sm:$0xff]
    %v879 = vld [vmem:[#allocation9 + $0x78] sm:$0xff]
    %v880 = vld [vmem:[#allocation9 + $0x80] sm:$0xff]
    %v881 = vld [vmem:[#allocation9 + $0x88] sm:$0xff]
    %v882 = vld [vmem:[#allocation9 + $0x90] sm:$0xff]
    %v883 = vld [vmem:[#allocation9 + $0x98] sm:$0xff]
    %v884 = vld [vmem:[#allocation9 + $0xa0] sm:$0xff]
    %v885 = vld [vmem:[#allocation9 + $0xa8] sm:$0xff]
    %v886 = vld [vmem:[#allocation9 + $0xb0] sm:$0xff]
    %v887 = vld [vmem:[#allocation9 + $0xb8] sm:$0xff]
    %v888 = vld [vmem:[#allocation9 + $0xc0] sm:$0xff]
    %v889 = vld [vmem:[#allocation9 + $0xc8] sm:$0xff]
    %v890 = vld [vmem:[#allocation9 + $0xd0] sm:$0xff]
    %v891 = vld [vmem:[#allocation9 + $0xd8] sm:$0xff]
    %v892 = vld [vmem:[#allocation9 + $0xe0] sm:$0xff]
    %v893 = vld [vmem:[#allocation9 + $0xe8] sm:$0xff]
    %v894 = vld [vmem:[#allocation9 + $0xf0] sm:$0xff]
    %v895 = vld [vmem:[#allocation9 + $0xf8] sm:$0xff]
    %v896 = vld [vmem:[#allocation9 + $0x100] sm:$0xff]
    %v897 = vld [vmem:[#allocation9 + $0x108] sm:$0xff]
    %v898 = vld [vmem:[#allocation9 + $0x110] sm:$0xff]
    %v899 = vld [vmem:[#allocation9 + $0x118] sm:$0xff]
    %v900 = vld [vmem:[#allocation9 + $0x120] sm:$0xff]
    %v901 = vld [vmem:[#allocation9 + $0x128] sm:$0xff]
    %v902 = vld [vmem:[#allocation9 + $0x130] sm:$0xff]
    %v903 = vld [vmem:[#allocation9 + $0x138] sm:$0xff]
    %v904 = vld [vmem:[#allocation9 + $0x140] sm:$0xff]
    %v905 = vld [vmem:[#allocation9 + $0x148] sm:$0xff]
    %v906 = vld [vmem:[#allocation9 + $0x150] sm:$0xff]
    %v907 = vld [vmem:[#allocation9 + $0x158] sm:$0xff]
    %v908 = vld [vmem:[#allocation9 + $0x160] sm:$0xff]
    %v909 = vld [vmem:[#allocation9 + $0x168] sm:$0xff]
    %v910 = vld [vmem:[#allocation9 + $0x170] sm:$0xff]
    %v911 = vld [vmem:[#allocation9 + $0x178] sm:$0xff]
    %v912 = vld [vmem:[#allocation9 + $0x180] sm:$0xff]
    %v913 = vld [vmem:[#allocation9 + $0x188] sm:$0xff]
    %v914 = vld [vmem:[#allocation9 + $0x190] sm:$0xff]
    %v915 = vld [vmem:[#allocation9 + $0x198] sm:$0xff]
    %v916 = vld [vmem:[#allocation9 + $0x1a0] sm:$0xff]
    %v917 = vld [vmem:[#allocation9 + $0x1a8] sm:$0xff]
    %v918 = vld [vmem:[#allocation9 + $0x1b0] sm:$0xff]
    %v919 = vld [vmem:[#allocation9 + $0x1b8] sm:$0xff]
    %v920 = vld [vmem:[#allocation9 + $0x1c0] sm:$0xff]
    %v921 = vld [vmem:[#allocation9 + $0x1c8] sm:$0xff]
    %v922 = vld [vmem:[#allocation9 + $0x1d0] sm:$0xff]
    %v923 = vld [vmem:[#allocation9 + $0x1d8] sm:$0xff]
    %v924 = vld [vmem:[#allocation9 + $0x1e0] sm:$0xff]
    %v925 = vld [vmem:[#allocation9 + $0x1e8] sm:$0xff]
    %v926 = vld [vmem:[#allocation9 + $0x1f0] sm:$0xff]
    %v927 = vld [vmem:[#allocation9 + $0x1f8] sm:$0xff]
    %928 = vmatprep.subr.mxu0 %v925
    %929 = vmatpush1.msra.mxu0 %v924
    %930 = vmatprep.subr.mxu0 %v921
    %931 = vmatpush1.msra.mxu0 %v920
    %932 = vmatprep.subr.mxu0 %v917
    %933 = vmatpush1.msra.mxu0 %v916
    %934 = vmatprep.subr.mxu0 %v913
    %935 = vmatpush1.msra.mxu0 %v912
    %936 = vmatprep.subr.mxu0 %v909
    %937 = vmatpush1.msra.mxu0 %v908
    %938 = vmatprep.subr.mxu0 %v905
    %939 = vmatpush1.msra.mxu0 %v904
    %940 = vmatprep.subr.mxu0 %v901
    %941 = vmatpush1.msra.mxu0 %v900
    %942 = vmatprep.subr.mxu0 %v897
    %943 = vmatpush1.msra.mxu0 %v896
    %944 = vmatprep.subr.mxu0 %v893
    %945 = vmatpush1.msra.mxu0 %v892
    %946 = vmatprep.subr.mxu0 %v889
    %947 = vmatpush1.msra.mxu0 %v888
    %948 = vmatprep.subr.mxu0 %v885
    %949 = vmatpush1.msra.mxu0 %v884
    %950 = vmatprep.subr.mxu0 %v881
    %951 = vmatpush1.msra.mxu0 %v880
    %952 = vmatprep.subr.mxu0 %v877
    %953 = vmatpush1.msra.mxu0 %v876
    %954 = vmatprep.subr.mxu0 %v873
    %955 = vmatpush1.msra.mxu0 %v872
    %956 = vmatprep.subr.mxu0 %v869
    %957 = vmatpush1.msra.mxu0 %v868
    %958 = vmatprep.subr.mxu0 %v865
    %959 = vmatpush1.msra.mxu0 %v864
    %960 = vmatprep.subr.mxu0 0.0
    %961 = vmatpush2.msra.mxu0 0.0
    %962 = vmatprep.subr.mxu0 0.0
    %963 = vmatpush2.msra.mxu0 0.0
    %964 = vmatprep.subr.mxu0 0.0
    %965 = vmatpush2.msra.mxu0 0.0
    %966 = vmatprep.subr.mxu0 0.0
    %967 = vmatpush2.msra.mxu0 0.0
    %968 = vmatprep.subr.mxu0 0.0
    %969 = vmatpush2.msra.mxu0 0.0
    %970 = vmatprep.subr.mxu0 0.0
    %971 = vmatpush2.msra.mxu0 0.0
    %972 = vmatprep.subr.mxu0 0.0
    %973 = vmatpush2.msra.mxu0 0.0
    %974 = vmatprep.subr.mxu0 0.0
    %975 = vmatpush2.msra.mxu0 0.0
    %976 = vmatprep.subr.mxu0 0.0
    %977 = vmatpush2.msra.mxu0 0.0
    %978 = vmatprep.subr.mxu0 0.0
    %979 = vmatpush2.msra.mxu0 0.0
    %980 = vmatprep.subr.mxu0 0.0
    %981 = vmatpush2.msra.mxu0 0.0
    %982 = vmatprep.subr.mxu0 0.0
    %983 = vmatpush2.msra.mxu0 0.0
    %984 = vmatprep.subr.mxu0 0.0
    %985 = vmatpush2.msra.mxu0 0.0
    %986 = vmatprep.subr.mxu0 0.0
    %987 = vmatpush2.msra.mxu0 0.0
    %988 = vmatprep.subr.mxu0 0.0
    %989 = vmatpush2.msra.mxu0 0.0
    %990 = vmatprep.subr.mxu0 0.0
    %991 = vmatpush2.msra.mxu0 0.0
    %992 = vmatprep.mubr.f32.mxu0 0.0
    %993 = vmatmul.mubr.f32.gmra.mxu0 %v854
    %v994 = vpop.f32.mrf.mxu0
    %v995 = vadd.f32 0.0, %v994
    %v996 = vpop.f32.mrf.mxu0
    %v997 = vadd.f32 0.0, %v996
    %998 = vdwg.mxu0
    %999 = vmatprep.subr.mxu0 %v927
    %1000 = vmatpush1.msra.mxu0 %v926
    %1001 = vmatprep.subr.mxu0 %v923
    %1002 = vmatpush1.msra.mxu0 %v922
    %1003 = vmatprep.subr.mxu0 %v919
    %1004 = vmatpush1.msra.mxu0 %v918
    %1005 = vmatprep.subr.mxu0 %v915
    %1006 = vmatpush1.msra.mxu0 %v914
    %1007 = vmatprep.subr.mxu0 %v911
    %1008 = vmatpush1.msra.mxu0 %v910
    %1009 = vmatprep.subr.mxu0 %v907
    %1010 = vmatpush1.msra.mxu0 %v906
    %1011 = vmatprep.subr.mxu0 %v903
    %1012 = vmatpush1.msra.mxu0 %v902
    %1013 = vmatprep.subr.mxu0 %v899
    %1014 = vmatpush1.msra.mxu0 %v898
    %1015 = vmatprep.subr.mxu0 %v895
    %1016 = vmatpush1.msra.mxu0 %v894
    %1017 = vmatprep.subr.mxu0 %v891
    %1018 = vmatpush1.msra.mxu0 %v890
    %1019 = vmatprep.subr.mxu0 %v887
    %1020 = vmatpush1.msra.mxu0 %v886
    %1021 = vmatprep.subr.mxu0 %v883
    %1022 = vmatpush1.msra.mxu0 %v882
    %1023 = vmatprep.subr.mxu0 %v879
    %1024 = vmatpush1.msra.mxu0 %v878
    %1025 = vmatprep.subr.mxu0 %v875
    %1026 = vmatpush1.msra.mxu0 %v874
    %1027 = vmatprep.subr.mxu0 %v871
    %1028 = vmatpush1.msra.mxu0 %v870
    %1029 = vmatprep.subr.mxu0 %v867
    %1030 = vmatpush1.msra.mxu0 %v866
    %1031 = vmatprep.subr.mxu0 0.0
    %1032 = vmatpush2.msra.mxu0 0.0
    %1033 = vmatprep.subr.mxu0 0.0
    %1034 = vmatpush2.msra.mxu0 0.0
    %1035 = vmatprep.subr.mxu0 0.0
    %1036 = vmatpush2.msra.mxu0 0.0
    %1037 = vmatprep.subr.mxu0 0.0
    %1038 = vmatpush2.msra.mxu0 0.0
    %1039 = vmatprep.subr.mxu0 0.0
    %1040 = vmatpush2.msra.mxu0 0.0
    %1041 = vmatprep.subr.mxu0 0.0
    %1042 = vmatpush2.msra.mxu0 0.0
    %1043 = vmatprep.subr.mxu0 0.0
    %1044 = vmatpush2.msra.mxu0 0.0
    %1045 = vmatprep.subr.mxu0 0.0
    %1046 = vmatpush2.msra.mxu0 0.0
    %1047 = vmatprep.subr.mxu0 0.0
    %1048 = vmatpush2.msra.mxu0 0.0
    %1049 = vmatprep.subr.mxu0 0.0
    %1050 = vmatpush2.msra.mxu0 0.0
    %1051 = vmatprep.subr.mxu0 0.0
    %1052 = vmatpush2.msra.mxu0 0.0
    %1053 = vmatprep.subr.mxu0 0.0
    %1054 = vmatpush2.msra.mxu0 0.0
    %1055 = vmatprep.subr.mxu0 0.0
    %1056 = vmatpush2.msra.mxu0 0.0
    %1057 = vmatprep.subr.mxu0 0.0
    %1058 = vmatpush2.msra.mxu0 0.0
    %1059 = vmatprep.subr.mxu0 0.0
    %1060 = vmatpush2.msra.mxu0 0.0
    %1061 = vmatprep.subr.mxu0 0.0
    %1062 = vmatpush2.msra.mxu0 0.0
    %1063 = vmatprep.mubr.f32.mxu0 0.0
    %1064 = vmatmul.mubr.f32.gmra.mxu0 %v854
    %v1065 = vpop.f32.mrf.mxu0
    %v1066 = vadd.f32 0.0, %v1065
    %v1067 = vpop.f32.mrf.mxu0
    %v1068 = vadd.f32 0.0, %v1067
    %1069 = vdwg.mxu0
    %v1070 = vadd.f32 %v860, %v995
    %v1071 = vadd.f32 %v861, %v997
    %v1072 = vadd.f32 %v862, %v1066
    %v1073 = vadd.f32 %v863, %v1068
    %v1074 = vmul.f32 %v1070, 0.5
    %v1075 = vmul.f32 %v1071, 0.5
    %v1076 = vmul.f32 %v1072, 0.5
    %v1077 = vtanh.pop %v1074
    %v1078 = vtanh.pop %v1075
    %v1079 = vtanh.pop %v1076
    %v1080 = vadd.f32 %v1077, 1.0
    %v1081 = vadd.f32 %v1078, 1.0
    %v1082 = vadd.f32 %v1079, 1.0
    %v1083 = vmul.f32 %v1080, 0.5
    %v1084 = vmul.f32 %v1081, 0.5
    %v1085 = vmul.f32 %v1082, 0.5
    %v1086 = vtanh.pop %v1073
    %v1087 = vmul.f32 %v1084, %v852
    %v1088 = vmul.f32 %v1083, %v1086
    %v1089 = vadd.f32 %v1087, %v1088
    %v1090 = vtanh.pop %v1089
    %v1091 = vmul.f32 %v1085, %v1090
    %s1092 = scalar_lea.vmem [#allocation3], 16
    %1093 = vst [vmem:[%s1092] sm:$0xff] %v1091
    %s1094 = smul.u32 3, 4
    %s1095 = smul.addr %s1094, 8
    %s1096 = scalar_lea.vmem [#allocation2], %s1095
    %v1097 = vld [vmem:[%s1096] sm:$0xff]
    %v1098 = vld [vmem:[%s1096 + $0x8] sm:$0xff]
    %v1099 = vld [vmem:[%s1096 + $0x10] sm:$0xff]
    %v1100 = vld [vmem:[%s1096 + $0x18] sm:$0xff]
    %v1101 = vld [vmem:[#allocation9] sm:$0xff]
    %v1102 = vld [vmem:[#allocation9 + $0x8] sm:$0xff]
    %v1103 = vld [vmem:[#allocation9 + $0x10] sm:$0xff]
    %v1104 = vld [vmem:[#allocation9 + $0x18] sm:$0xff]
    %v1105 = vld [vmem:[#allocation9 + $0x20] sm:$0xff]
    %v1106 = vld [vmem:[#allocation9 + $0x28] sm:$0xff]
    %v1107 = vld [vmem:[#allocation9 + $0x30] sm:$0xff]
    %v1108 = vld [vmem:[#allocation9 + $0x38] sm:$0xff]
    %v1109 = vld [vmem:[#allocation9 + $0x40] sm:$0xff]
    %v1110 = vld [vmem:[#allocation9 + $0x48] sm:$0xff]
    %v1111 = vld [vmem:[#allocation9 + $0x50] sm:$0xff]
    %v1112 = vld [vmem:[#allocation9 + $0x58] sm:$0xff]
    %v1113 = vld [vmem:[#allocation9 + $0x60] sm:$0xff]
    %v1114 = vld [vmem:[#allocation9 + $0x68] sm:$0xff]
    %v1115 = vld [vmem:[#allocation9 + $0x70] sm:$0xff]
    %v1116 = vld [vmem:[#allocation9 + $0x78] sm:$0xff]
    %v1117 = vld [vmem:[#allocation9 + $0x80] sm:$0xff]
    %v1118 = vld [vmem:[#allocation9 + $0x88] sm:$0xff]
    %v1119 = vld [vmem:[#allocation9 + $0x90] sm:$0xff]
    %v1120 = vld [vmem:[#allocation9 + $0x98] sm:$0xff]
    %v1121 = vld [vmem:[#allocation9 + $0xa0] sm:$0xff]
    %v1122 = vld [vmem:[#allocation9 + $0xa8] sm:$0xff]
    %v1123 = vld [vmem:[#allocation9 + $0xb0] sm:$0xff]
    %v1124 = vld [vmem:[#allocation9 + $0xb8] sm:$0xff]
    %v1125 = vld [vmem:[#allocation9 + $0xc0] sm:$0xff]
    %v1126 = vld [vmem:[#allocation9 + $0xc8] sm:$0xff]
    %v1127 = vld [vmem:[#allocation9 + $0xd0] sm:$0xff]
    %v1128 = vld [vmem:[#allocation9 + $0xd8] sm:$0xff]
    %v1129 = vld [vmem:[#allocation9 + $0xe0] sm:$0xff]
    %v1130 = vld [vmem:[#allocation9 + $0xe8] sm:$0xff]
    %v1131 = vld [vmem:[#allocation9 + $0xf0] sm:$0xff]
    %v1132 = vld [vmem:[#allocation9 + $0xf8] sm:$0xff]
    %v1133 = vld [vmem:[#allocation9 + $0x100] sm:$0xff]
    %v1134 = vld [vmem:[#allocation9 + $0x108] sm:$0xff]
    %v1135 = vld [vmem:[#allocation9 + $0x110] sm:$0xff]
    %v1136 = vld [vmem:[#allocation9 + $0x118] sm:$0xff]
    %v1137 = vld [vmem:[#allocation9 + $0x120] sm:$0xff]
    %v1138 = vld [vmem:[#allocation9 + $0x128] sm:$0xff]
    %v1139 = vld [vmem:[#allocation9 + $0x130] sm:$0xff]
    %v1140 = vld [vmem:[#allocation9 + $0x138] sm:$0xff]
    %v1141 = vld [vmem:[#allocation9 + $0x140] sm:$0xff]
    %v1142 = vld [vmem:[#allocation9 + $0x148] sm:$0xff]
    %v1143 = vld [vmem:[#allocation9 + $0x150] sm:$0xff]
    %v1144 = vld [vmem:[#allocation9 + $0x158] sm:$0xff]
    %v1145 = vld [vmem:[#allocation9 + $0x160] sm:$0xff]
    %v1146 = vld [vmem:[#allocation9 + $0x168] sm:$0xff]
    %v1147 = vld [vmem:[#allocation9 + $0x170] sm:$0xff]
    %v1148 = vld [vmem:[#allocation9 + $0x178] sm:$0xff]
    %v1149 = vld [vmem:[#allocation9 + $0x180] sm:$0xff]
    %v1150 = vld [vmem:[#allocation9 + $0x188] sm:$0xff]
    %v1151 = vld [vmem:[#allocation9 + $0x190] sm:$0xff]
    %v1152 = vld [vmem:[#allocation9 + $0x198] sm:$0xff]
    %v1153 = vld [vmem:[#allocation9 + $0x1a0] sm:$0xff]
    %v1154 = vld [vmem:[#allocation9 + $0x1a8] sm:$0xff]
    %v1155 = vld [vmem:[#allocation9 + $0x1b0] sm:$0xff]
    %v1156 = vld [vmem:[#allocation9 + $0x1b8] sm:$0xff]
    %v1157 = vld [vmem:[#allocation9 + $0x1c0] sm:$0xff]
    %v1158 = vld [vmem:[#allocation9 + $0x1c8] sm:$0xff]
    %v1159 = vld [vmem:[#allocation9 + $0x1d0] sm:$0xff]
    %v1160 = vld [vmem:[#allocation9 + $0x1d8] sm:$0xff]
    %v1161 = vld [vmem:[#allocation9 + $0x1e0] sm:$0xff]
    %v1162 = vld [vmem:[#allocation9 + $0x1e8] sm:$0xff]
    %v1163 = vld [vmem:[#allocation9 + $0x1f0] sm:$0xff]
    %v1164 = vld [vmem:[#allocation9 + $0x1f8] sm:$0xff]
    %1165 = vmatprep.subr.mxu0 %v1162
    %1166 = vmatpush1.msra.mxu0 %v1161
    %1167 = vmatprep.subr.mxu0 %v1158
    %1168 = vmatpush1.msra.mxu0 %v1157
    %1169 = vmatprep.subr.mxu0 %v1154
    %1170 = vmatpush1.msra.mxu0 %v1153
    %1171 = vmatprep.subr.mxu0 %v1150
    %1172 = vmatpush1.msra.mxu0 %v1149
    %1173 = vmatprep.subr.mxu0 %v1146
    %1174 = vmatpush1.msra.mxu0 %v1145
    %1175 = vmatprep.subr.mxu0 %v1142
    %1176 = vmatpush1.msra.mxu0 %v1141
    %1177 = vmatprep.subr.mxu0 %v1138
    %1178 = vmatpush1.msra.mxu0 %v1137
    %1179 = vmatprep.subr.mxu0 %v1134
    %1180 = vmatpush1.msra.mxu0 %v1133
    %1181 = vmatprep.subr.mxu0 %v1130
    %1182 = vmatpush1.msra.mxu0 %v1129
    %1183 = vmatprep.subr.mxu0 %v1126
    %1184 = vmatpush1.msra.mxu0 %v1125
    %1185 = vmatprep.subr.mxu0 %v1122
    %1186 = vmatpush1.msra.mxu0 %v1121
    %1187 = vmatprep.subr.mxu0 %v1118
    %1188 = vmatpush1.msra.mxu0 %v1117
    %1189 = vmatprep.subr.mxu0 %v1114
    %1190 = vmatpush1.msra.mxu0 %v1113
    %1191 = vmatprep.subr.mxu0 %v1110
    %1192 = vmatpush1.msra.mxu0 %v1109
    %1193 = vmatprep.subr.mxu0 %v1106
    %1194 = vmatpush1.msra.mxu0 %v1105
    %1195 = vmatprep.subr.mxu0 %v1102
    %1196 = vmatpush1.msra.mxu0 %v1101
    %1197 = vmatprep.subr.mxu0 0.0
    %1198 = vmatpush2.msra.mxu0 0.0
    %1199 = vmatprep.subr.mxu0 0.0
    %1200 = vmatpush2.msra.mxu0 0.0
    %1201 = vmatprep.subr.mxu0 0.0
    %1202 = vmatpush2.msra.mxu0 0.0
    %1203 = vmatprep.subr.mxu0 0.0
    %1204 = vmatpush2.msra.mxu0 0.0
    %1205 = vmatprep.subr.mxu0 0.0
    %1206 = vmatpush2.msra.mxu0 0.0
    %1207 = vmatprep.subr.mxu0 0.0
    %1208 = vmatpush2.msra.mxu0 0.0
    %1209 = vmatprep.subr.mxu0 0.0
    %1210 = vmatpush2.msra.mxu0 0.0
    %1211 = vmatprep.subr.mxu0 0.0
    %1212 = vmatpush2.msra.mxu0 0.0
    %1213 = vmatprep.subr.mxu0 0.0
    %1214 = vmatpush2.msra.mxu0 0.0
    %1215 = vmatprep.subr.mxu0 0.0
    %1216 = vmatpush2.msra.mxu0 0.0
    %1217 = vmatprep.subr.mxu0 0.0
    %1218 = vmatpush2.msra.mxu0 0.0
    %1219 = vmatprep.subr.mxu0 0.0
    %1220 = vmatpush2.msra.mxu0 0.0
    %1221 = vmatprep.subr.mxu0 0.0
    %1222 = vmatpush2.msra.mxu0 0.0
    %1223 = vmatprep.subr.mxu0 0.0
    %1224 = vmatpush2.msra.mxu0 0.0
    %1225 = vmatprep.subr.mxu0 0.0
    %1226 = vmatpush2.msra.mxu0 0.0
    %1227 = vmatprep.subr.mxu0 0.0
    %1228 = vmatpush2.msra.mxu0 0.0
    %1229 = vmatprep.mubr.f32.mxu0 0.0
    %1230 = vmatmul.mubr.f32.gmra.mxu0 %v1091
    %v1231 = vpop.f32.mrf.mxu0
    %v1232 = vadd.f32 0.0, %v1231
    %v1233 = vpop.f32.mrf.mxu0
    %v1234 = vadd.f32 0.0, %v1233
    %1235 = vdwg.mxu0
    %1236 = vmatprep.subr.mxu0 %v1164
    %1237 = vmatpush1.msra.mxu0 %v1163
    %1238 = vmatprep.subr.mxu0 %v1160
    %1239 = vmatpush1.msra.mxu0 %v1159
    %1240 = vmatprep.subr.mxu0 %v1156
    %1241 = vmatpush1.msra.mxu0 %v1155
    %1242 = vmatprep.subr.mxu0 %v1152
    %1243 = vmatpush1.msra.mxu0 %v1151
    %1244 = vmatprep.subr.mxu0 %v1148
    %1245 = vmatpush1.msra.mxu0 %v1147
    %1246 = vmatprep.subr.mxu0 %v1144
    %1247 = vmatpush1.msra.mxu0 %v1143
    %1248 = vmatprep.subr.mxu0 %v1140
    %1249 = vmatpush1.msra.mxu0 %v1139
    %1250 = vmatprep.subr.mxu0 %v1136
    %1251 = vmatpush1.msra.mxu0 %v1135
    %1252 = vmatprep.subr.mxu0 %v1132
    %1253 = vmatpush1.msra.mxu0 %v1131
    %1254 = vmatprep.subr.mxu0 %v1128
    %1255 = vmatpush1.msra.mxu0 %v1127
    %1256 = vmatprep.subr.mxu0 %v1124
    %1257 = vmatpush1.msra.mxu0 %v1123
    %1258 = vmatprep.subr.mxu0 %v1120
    %1259 = vmatpush1.msra.mxu0 %v1119
    %1260 = vmatprep.subr.mxu0 %v1116
    %1261 = vmatpush1.msra.mxu0 %v1115
    %1262 = vmatprep.subr.mxu0 %v1112
    %1263 = vmatpush1.msra.mxu0 %v1111
    %1264 = vmatprep.subr.mxu0 %v1108
    %1265 = vmatpush1.msra.mxu0 %v1107
    %1266 = vmatprep.subr.mxu0 %v1104
    %1267 = vmatpush1.msra.mxu0 %v1103
    %1268 = vmatprep.subr.mxu0 0.0
    %1269 = vmatpush2.msra.mxu0 0.0
    %1270 = vmatprep.subr.mxu0 0.0
    %1271 = vmatpush2.msra.mxu0 0.0
    %1272 = vmatprep.subr.mxu0 0.0
    %1273 = vmatpush2.msra.mxu0 0.0
    %1274 = vmatprep.subr.mxu0 0.0
    %1275 = vmatpush2.msra.mxu0 0.0
    %1276 = vmatprep.subr.mxu0 0.0
    %1277 = vmatpush2.msra.mxu0 0.0
    %1278 = vmatprep.subr.mxu0 0.0
    %1279 = vmatpush2.msra.mxu0 0.0
    %1280 = vmatprep.subr.mxu0 0.0
    %1281 = vmatpush2.msra.mxu0 0.0
    %1282 = vmatprep.subr.mxu0 0.0
    %1283 = vmatpush2.msra.mxu0 0.0
    %1284 = vmatprep.subr.mxu0 0.0
    %1285 = vmatpush2.msra.mxu0 0.0
    %1286 = vmatprep.subr.mxu0 0.0
    %1287 = vmatpush2.msra.mxu0 0.0
    %1288 = vmatprep.subr.mxu0 0.0
    %1289 = vmatpush2.msra.mxu0 0.0
    %1290 = vmatprep.subr.mxu0 0.0
    %1291 = vmatpush2.msra.mxu0 0.0
    %1292 = vmatprep.subr.mxu0 0.0
    %1293 = vmatpush2.msra.mxu0 0.0
    %1294 = vmatprep.subr.mxu0 0.0
    %1295 = vmatpush2.msra.mxu0 0.0
    %1296 = vmatprep.subr.mxu0 0.0
    %1297 = vmatpush2.msra.mxu0 0.0
    %1298 = vmatprep.subr.mxu0 0.0
    %1299 = vmatpush2.msra.mxu0 0.0
    %1300 = vmatprep.mubr.f32.mxu0 0.0
    %1301 = vmatmul.mubr.f32.gmra.mxu0 %v1091
    %v1302 = vpop.f32.mrf.mxu0
    %v1303 = vadd.f32 0.0, %v1302
    %v1304 = vpop.f32.mrf.mxu0
    %v1305 = vadd.f32 0.0, %v1304
    %1306 = vdwg.mxu0
    %v1307 = vadd.f32 %v1097, %v1232
    %v1308 = vadd.f32 %v1098, %v1234
    %v1309 = vadd.f32 %v1099, %v1303
    %v1310 = vadd.f32 %v1100, %v1305
    %v1311 = vmul.f32 %v1307, 0.5
    %v1312 = vmul.f32 %v1308, 0.5
    %v1313 = vmul.f32 %v1309, 0.5
    %v1314 = vtanh.pop %v1311
    %v1315 = vtanh.pop %v1312
    %v1316 = vtanh.pop %v1313
    %v1317 = vadd.f32 %v1314, 1.0
    %v1318 = vadd.f32 %v1315, 1.0
    %v1319 = vadd.f32 %v1316, 1.0
    %v1320 = vmul.f32 %v1317, 0.5
    %v1321 = vmul.f32 %v1318, 0.5
    %v1322 = vmul.f32 %v1319, 0.5
    %v1323 = vtanh.pop %v1310
    %v1324 = vmul.f32 %v1321, %v1089
    %v1325 = vmul.f32 %v1320, %v1323
    %v1326 = vadd.f32 %v1324, %v1325
    %v1327 = vtanh.pop %v1326
    %v1328 = vmul.f32 %v1322, %v1327
    %s1329 = scalar_lea.vmem [#allocation3], 24
    %1330 = vst [vmem:[%s1329] sm:$0xff] %v1328
    %s1331 = smul.u32 4, 4
    %s1332 = smul.addr %s1331, 8
    %s1333 = scalar_lea.vmem [#allocation2], %s1332
    %v1334 = vld [vmem:[%s1333] sm:$0xff]
    %v1335 = vld [vmem:[%s1333 + $0x8] sm:$0xff]
    %v1336 = vld [vmem:[%s1333 + $0x10] sm:$0xff]
    %v1337 = vld [vmem:[%s1333 + $0x18] sm:$0xff]
    %v1338 = vld [vmem:[#allocation9] sm:$0xff]
    %v1339 = vld [vmem:[#allocation9 + $0x8] sm:$0xff]
    %v1340 = vld [vmem:[#allocation9 + $0x10] sm:$0xff]
    %v1341 = vld [vmem:[#allocation9 + $0x18] sm:$0xff]
    %v1342 = vld [vmem:[#allocation9 + $0x20] sm:$0xff]
    %v1343 = vld [vmem:[#allocation9 + $0x28] sm:$0xff]
    %v1344 = vld [vmem:[#allocation9 + $0x30] sm:$0xff]
    %v1345 = vld [vmem:[#allocation9 + $0x38] sm:$0xff]
    %v1346 = vld [vmem:[#allocation9 + $0x40] sm:$0xff]
    %v1347 = vld [vmem:[#allocation9 + $0x48] sm:$0xff]
    %v1348 = vld [vmem:[#allocation9 + $0x50] sm:$0xff]
    %v1349 = vld [vmem:[#allocation9 + $0x58] sm:$0xff]
    %v1350 = vld [vmem:[#allocation9 + $0x60] sm:$0xff]
    %v1351 = vld [vmem:[#allocation9 + $0x68] sm:$0xff]
    %v1352 = vld [vmem:[#allocation9 + $0x70] sm:$0xff]
    %v1353 = vld [vmem:[#allocation9 + $0x78] sm:$0xff]
    %v1354 = vld [vmem:[#allocation9 + $0x80] sm:$0xff]
    %v1355 = vld [vmem:[#allocation9 + $0x88] sm:$0xff]
    %v1356 = vld [vmem:[#allocation9 + $0x90] sm:$0xff]
    %v1357 = vld [vmem:[#allocation9 + $0x98] sm:$0xff]
    %v1358 = vld [vmem:[#allocation9 + $0xa0] sm:$0xff]
    %v1359 = vld [vmem:[#allocation9 + $0xa8] sm:$0xff]
    %v1360 = vld [vmem:[#allocation9 + $0xb0] sm:$0xff]
    %v1361 = vld [vmem:[#allocation9 + $0xb8] sm:$0xff]
    %v1362 = vld [vmem:[#allocation9 + $0xc0] sm:$0xff]
    %v1363 = vld [vmem:[#allocation9 + $0xc8] sm:$0xff]
    %v1364 = vld [vmem:[#allocation9 + $0xd0] sm:$0xff]
    %v1365 = vld [vmem:[#allocation9 + $0xd8] sm:$0xff]
    %v1366 = vld [vmem:[#allocation9 + $0xe0] sm:$0xff]
    %v1367 = vld [vmem:[#allocation9 + $0xe8] sm:$0xff]
    %v1368 = vld [vmem:[#allocation9 + $0xf0] sm:$0xff]
    %v1369 = vld [vmem:[#allocation9 + $0xf8] sm:$0xff]
    %v1370 = vld [vmem:[#allocation9 + $0x100] sm:$0xff]
    %v1371 = vld [vmem:[#allocation9 + $0x108] sm:$0xff]
    %v1372 = vld [vmem:[#allocation9 + $0x110] sm:$0xff]
    %v1373 = vld [vmem:[#allocation9 + $0x118] sm:$0xff]
    %v1374 = vld [vmem:[#allocation9 + $0x120] sm:$0xff]
    %v1375 = vld [vmem:[#allocation9 + $0x128] sm:$0xff]
    %v1376 = vld [vmem:[#allocation9 + $0x130] sm:$0xff]
    %v1377 = vld [vmem:[#allocation9 + $0x138] sm:$0xff]
    %v1378 = vld [vmem:[#allocation9 + $0x140] sm:$0xff]
    %v1379 = vld [vmem:[#allocation9 + $0x148] sm:$0xff]
    %v1380 = vld [vmem:[#allocation9 + $0x150] sm:$0xff]
    %v1381 = vld [vmem:[#allocation9 + $0x158] sm:$0xff]
    %v1382 = vld [vmem:[#allocation9 + $0x160] sm:$0xff]
    %v1383 = vld [vmem:[#allocation9 + $0x168] sm:$0xff]
    %v1384 = vld [vmem:[#allocation9 + $0x170] sm:$0xff]
    %v1385 = vld [vmem:[#allocation9 + $0x178] sm:$0xff]
    %v1386 = vld [vmem:[#allocation9 + $0x180] sm:$0xff]
    %v1387 = vld [vmem:[#allocation9 + $0x188] sm:$0xff]
    %v1388 = vld [vmem:[#allocation9 + $0x190] sm:$0xff]
    %v1389 = vld [vmem:[#allocation9 + $0x198] sm:$0xff]
    %v1390 = vld [vmem:[#allocation9 + $0x1a0] sm:$0xff]
    %v1391 = vld [vmem:[#allocation9 + $0x1a8] sm:$0xff]
    %v1392 = vld [vmem:[#allocation9 + $0x1b0] sm:$0xff]
    %v1393 = vld [vmem:[#allocation9 + $0x1b8] sm:$0xff]
    %v1394 = vld [vmem:[#allocation9 + $0x1c0] sm:$0xff]
    %v1395 = vld [vmem:[#allocation9 + $0x1c8] sm:$0xff]
    %v1396 = vld [vmem:[#allocation9 + $0x1d0] sm:$0xff]
    %v1397 = vld [vmem:[#allocation9 + $0x1d8] sm:$0xff]
    %v1398 = vld [vmem:[#allocation9 + $0x1e0] sm:$0xff]
    %v1399 = vld [vmem:[#allocation9 + $0x1e8] sm:$0xff]
    %v1400 = vld [vmem:[#allocation9 + $0x1f0] sm:$0xff]
    %v1401 = vld [vmem:[#allocation9 + $0x1f8] sm:$0xff]
    %1402 = vmatprep.subr.mxu0 %v1399
    %1403 = vmatpush1.msra.mxu0 %v1398
    %1404 = vmatprep.subr.mxu0 %v1395
    %1405 = vmatpush1.msra.mxu0 %v1394
    %1406 = vmatprep.subr.mxu0 %v1391
    %1407 = vmatpush1.msra.mxu0 %v1390
    %1408 = vmatprep.subr.mxu0 %v1387
    %1409 = vmatpush1.msra.mxu0 %v1386
    %1410 = vmatprep.subr.mxu0 %v1383
    %1411 = vmatpush1.msra.mxu0 %v1382
    %1412 = vmatprep.subr.mxu0 %v1379
    %1413 = vmatpush1.msra.mxu0 %v1378
    %1414 = vmatprep.subr.mxu0 %v1375
    %1415 = vmatpush1.msra.mxu0 %v1374
    %1416 = vmatprep.subr.mxu0 %v1371
    %1417 = vmatpush1.msra.mxu0 %v1370
    %1418 = vmatprep.subr.mxu0 %v1367
    %1419 = vmatpush1.msra.mxu0 %v1366
    %1420 = vmatprep.subr.mxu0 %v1363
    %1421 = vmatpush1.msra.mxu0 %v1362
    %1422 = vmatprep.subr.mxu0 %v1359
    %1423 = vmatpush1.msra.mxu0 %v1358
    %1424 = vmatprep.subr.mxu0 %v1355
    %1425 = vmatpush1.msra.mxu0 %v1354
    %1426 = vmatprep.subr.mxu0 %v1351
    %1427 = vmatpush1.msra.mxu0 %v1350
    %1428 = vmatprep.subr.mxu0 %v1347
    %1429 = vmatpush1.msra.mxu0 %v1346
    %1430 = vmatprep.subr.mxu0 %v1343
    %1431 = vmatpush1.msra.mxu0 %v1342
    %1432 = vmatprep.subr.mxu0 %v1339
    %1433 = vmatpush1.msra.mxu0 %v1338
    %1434 = vmatprep.subr.mxu0 0.0
    %1435 = vmatpush2.msra.mxu0 0.0
    %1436 = vmatprep.subr.mxu0 0.0
    %1437 = vmatpush2.msra.mxu0 0.0
    %1438 = vmatprep.subr.mxu0 0.0
    %1439 = vmatpush2.msra.mxu0 0.0
    %1440 = vmatprep.subr.mxu0 0.0
    %1441 = vmatpush2.msra.mxu0 0.0
    %1442 = vmatprep.subr.mxu0 0.0
    %1443 = vmatpush2.msra.mxu0 0.0
    %1444 = vmatprep.subr.mxu0 0.0
    %1445 = vmatpush2.msra.mxu0 0.0
    %1446 = vmatprep.subr.mxu0 0.0
    %1447 = vmatpush2.msra.mxu0 0.0
    %1448 = vmatprep.subr.mxu0 0.0
    %1449 = vmatpush2.msra.mxu0 0.0
    %1450 = vmatprep.subr.mxu0 0.0
    %1451 = vmatpush2.msra.mxu0 0.0
    %1452 = vmatprep.subr.mxu0 0.0
    %1453 = vmatpush2.msra.mxu0 0.0
    %1454 = vmatprep.subr.mxu0 0.0
    %1455 = vmatpush2.msra.mxu0 0.0
    %1456 = vmatprep.subr.mxu0 0.0
    %1457 = vmatpush2.msra.mxu0 0.0
    %1458 = vmatprep.subr.mxu0 0.0
    %1459 = vmatpush2.msra.mxu0 0.0
    %1460 = vmatprep.subr.mxu0 0.0
    %1461 = vmatpush2.msra.mxu0 0.0
    %1462 = vmatprep.subr.mxu0 0.0
    %1463 = vmatpush2.msra.mxu0 0.0
    %1464 = vmatprep.subr.mxu0 0.0
    %1465 = vmatpush2.msra.mxu0 0.0
    %1466 = vmatprep.mubr.f32.mxu0 0.0
    %1467 = vmatmul.mubr.f32.gmra.mxu0 %v1328
    %v1468 = vpop.f32.mrf.mxu0
    %v1469 = vadd.f32 0.0, %v1468
    %v1470 = vpop.f32.mrf.mxu0
    %v1471 = vadd.f32 0.0, %v1470
    %1472 = vdwg.mxu0
    %1473 = vmatprep.subr.mxu0 %v1401
    %1474 = vmatpush1.msra.mxu0 %v1400
    %1475 = vmatprep.subr.mxu0 %v1397
    %1476 = vmatpush1.msra.mxu0 %v1396
    %1477 = vmatprep.subr.mxu0 %v1393
    %1478 = vmatpush1.msra.mxu0 %v1392
    %1479 = vmatprep.subr.mxu0 %v1389
    %1480 = vmatpush1.msra.mxu0 %v1388
    %1481 = vmatprep.subr.mxu0 %v1385
    %1482 = vmatpush1.msra.mxu0 %v1384
    %1483 = vmatprep.subr.mxu0 %v1381
    %1484 = vmatpush1.msra.mxu0 %v1380
    %1485 = vmatprep.subr.mxu0 %v1377
    %1486 = vmatpush1.msra.mxu0 %v1376
    %1487 = vmatprep.subr.mxu0 %v1373
    %1488 = vmatpush1.msra.mxu0 %v1372
    %1489 = vmatprep.subr.mxu0 %v1369
    %1490 = vmatpush1.msra.mxu0 %v1368
    %1491 = vmatprep.subr.mxu0 %v1365
    %1492 = vmatpush1.msra.mxu0 %v1364
    %1493 = vmatprep.subr.mxu0 %v1361
    %1494 = vmatpush1.msra.mxu0 %v1360
    %1495 = vmatprep.subr.mxu0 %v1357
    %1496 = vmatpush1.msra.mxu0 %v1356
    %1497 = vmatprep.subr.mxu0 %v1353
    %1498 = vmatpush1.msra.mxu0 %v1352
    %1499 = vmatprep.subr.mxu0 %v1349
    %1500 = vmatpush1.msra.mxu0 %v1348
    %1501 = vmatprep.subr.mxu0 %v1345
    %1502 = vmatpush1.msra.mxu0 %v1344
    %1503 = vmatprep.subr.mxu0 %v1341
    %1504 = vmatpush1.msra.mxu0 %v1340
    %1505 = vmatprep.subr.mxu0 0.0
    %1506 = vmatpush2.msra.mxu0 0.0
    %1507 = vmatprep.subr.mxu0 0.0
    %1508 = vmatpush2.msra.mxu0 0.0
    %1509 = vmatprep.subr.mxu0 0.0
    %1510 = vmatpush2.msra.mxu0 0.0
    %1511 = vmatprep.subr.mxu0 0.0
    %1512 = vmatpush2.msra.mxu0 0.0
    %1513 = vmatprep.subr.mxu0 0.0
    %1514 = vmatpush2.msra.mxu0 0.0
    %1515 = vmatprep.subr.mxu0 0.0
    %1516 = vmatpush2.msra.mxu0 0.0
    %1517 = vmatprep.subr.mxu0 0.0
    %1518 = vmatpush2.msra.mxu0 0.0
    %1519 = vmatprep.subr.mxu0 0.0
    %1520 = vmatpush2.msra.mxu0 0.0
    %1521 = vmatprep.subr.mxu0 0.0
    %1522 = vmatpush2.msra.mxu0 0.0
    %1523 = vmatprep.subr.mxu0 0.0
    %1524 = vmatpush2.msra.mxu0 0.0
    %1525 = vmatprep.subr.mxu0 0.0
    %1526 = vmatpush2.msra.mxu0 0.0
    %1527 = vmatprep.subr.mxu0 0.0
    %1528 = vmatpush2.msra.mxu0 0.0
    %1529 = vmatprep.subr.mxu0 0.0
    %1530 = vmatpush2.msra.mxu0 0.0
    %1531 = vmatprep.subr.mxu0 0.0
    %1532 = vmatpush2.msra.mxu0 0.0
    %1533 = vmatprep.subr.mxu0 0.0
    %1534 = vmatpush2.msra.mxu0 0.0
    %1535 = vmatprep.subr.mxu0 0.0
    %1536 = vmatpush2.msra.mxu0 0.0
    %1537 = vmatprep.mubr.f32.mxu0 0.0
    %1538 = vmatmul.mubr.f32.gmra.mxu0 %v1328
    %v1539 = vpop.f32.mrf.mxu0
    %v1540 = vadd.f32 0.0, %v1539
    %v1541 = vpop.f32.mrf.mxu0
    %v1542 = vadd.f32 0.0, %v1541
    %1543 = vdwg.mxu0
    %v1544 = vadd.f32 %v1334, %v1469
    %v1545 = vadd.f32 %v1335, %v1471
    %v1546 = vadd.f32 %v1336, %v1540
    %v1547 = vadd.f32 %v1337, %v1542
    %v1548 = vmul.f32 %v1544, 0.5
    %v1549 = vmul.f32 %v1545, 0.5
    %v1550 = vmul.f32 %v1546, 0.5
    %v1551 = vtanh.pop %v1548
    %v1552 = vtanh.pop %v1549
    %v1553 = vtanh.pop %v1550
    %v1554 = vadd.f32 %v1551, 1.0
    %v1555 = vadd.f32 %v1552, 1.0
    %v1556 = vadd.f32 %v1553, 1.0
    %v1557 = vmul.f32 %v1554, 0.5
    %v1558 = vmul.f32 %v1555, 0.5
    %v1559 = vmul.f32 %v1556, 0.5
    %v1560 = vtanh.pop %v1547
    %v1561 = vmul.f32 %v1558, %v1326
    %v1562 = vmul.f32 %v1557, %v1560
    %v1563 = vadd.f32 %v1561, %v1562
    %v1564 = vtanh.pop %v1563
    %v1565 = vmul.f32 %v1559, %v1564
    %s1566 = scalar_lea.vmem [#allocation3], 32
    %1567 = vst [vmem:[%s1566] sm:$0xff] %v1565
    %s1568 = smul.u32 5, 4
    %s1569 = smul.addr %s1568, 8
    %s1570 = scalar_lea.vmem [#allocation2], %s1569
    %v1571 = vld [vmem:[%s1570] sm:$0xff]
    %v1572 = vld [vmem:[%s1570 + $0x8] sm:$0xff]
    %v1573 = vld [vmem:[%s1570 + $0x10] sm:$0xff]
    %v1574 = vld [vmem:[%s1570 + $0x18] sm:$0xff]
    %v1575 = vld [vmem:[#allocation9] sm:$0xff]
    %v1576 = vld [vmem:[#allocation9 + $0x8] sm:$0xff]
    %v1577 = vld [vmem:[#allocation9 + $0x10] sm:$0xff]
    %v1578 = vld [vmem:[#allocation9 + $0x18] sm:$0xff]
    %v1579 = vld [vmem:[#allocation9 + $0x20] sm:$0xff]
    %v1580 = vld [vmem:[#allocation9 + $0x28] sm:$0xff]
    %v1581 = vld [vmem:[#allocation9 + $0x30] sm:$0xff]
    %v1582 = vld [vmem:[#allocation9 + $0x38] sm:$0xff]
    %v1583 = vld [vmem:[#allocation9 + $0x40] sm:$0xff]
    %v1584 = vld [vmem:[#allocation9 + $0x48] sm:$0xff]
    %v1585 = vld [vmem:[#allocation9 + $0x50] sm:$0xff]
    %v1586 = vld [vmem:[#allocation9 + $0x58] sm:$0xff]
    %v1587 = vld [vmem:[#allocation9 + $0x60] sm:$0xff]
    %v1588 = vld [vmem:[#allocation9 + $0x68] sm:$0xff]
    %v1589 = vld [vmem:[#allocation9 + $0x70] sm:$0xff]
    %v1590 = vld [vmem:[#allocation9 + $0x78] sm:$0xff]
    %v1591 = vld [vmem:[#allocation9 + $0x80] sm:$0xff]
    %v1592 = vld [vmem:[#allocation9 + $0x88] sm:$0xff]
    %v1593 = vld [vmem:[#allocation9 + $0x90] sm:$0xff]
    %v1594 = vld [vmem:[#allocation9 + $0x98] sm:$0xff]
    %v1595 = vld [vmem:[#allocation9 + $0xa0] sm:$0xff]
    %v1596 = vld [vmem:[#allocation9 + $0xa8] sm:$0xff]
    %v1597 = vld [vmem:[#allocation9 + $0xb0] sm:$0xff]
    %v1598 = vld [vmem:[#allocation9 + $0xb8] sm:$0xff]
    %v1599 = vld [vmem:[#allocation9 + $0xc0] sm:$0xff]
    %v1600 = vld [vmem:[#allocation9 + $0xc8] sm:$0xff]
    %v1601 = vld [vmem:[#allocation9 + $0xd0] sm:$0xff]
    %v1602 = vld [vmem:[#allocation9 + $0xd8] sm:$0xff]
    %v1603 = vld [vmem:[#allocation9 + $0xe0] sm:$0xff]
    %v1604 = vld [vmem:[#allocation9 + $0xe8] sm:$0xff]
    %v1605 = vld [vmem:[#allocation9 + $0xf0] sm:$0xff]
    %v1606 = vld [vmem:[#allocation9 + $0xf8] sm:$0xff]
    %v1607 = vld [vmem:[#allocation9 + $0x100] sm:$0xff]
    %v1608 = vld [vmem:[#allocation9 + $0x108] sm:$0xff]
    %v1609 = vld [vmem:[#allocation9 + $0x110] sm:$0xff]
    %v1610 = vld [vmem:[#allocation9 + $0x118] sm:$0xff]
    %v1611 = vld [vmem:[#allocation9 + $0x120] sm:$0xff]
    %v1612 = vld [vmem:[#allocation9 + $0x128] sm:$0xff]
    %v1613 = vld [vmem:[#allocation9 + $0x130] sm:$0xff]
    %v1614 = vld [vmem:[#allocation9 + $0x138] sm:$0xff]
    %v1615 = vld [vmem:[#allocation9 + $0x140] sm:$0xff]
    %v1616 = vld [vmem:[#allocation9 + $0x148] sm:$0xff]
    %v1617 = vld [vmem:[#allocation9 + $0x150] sm:$0xff]
    %v1618 = vld [vmem:[#allocation9 + $0x158] sm:$0xff]
    %v1619 = vld [vmem:[#allocation9 + $0x160] sm:$0xff]
    %v1620 = vld [vmem:[#allocation9 + $0x168] sm:$0xff]
    %v1621 = vld [vmem:[#allocation9 + $0x170] sm:$0xff]
    %v1622 = vld [vmem:[#allocation9 + $0x178] sm:$0xff]
    %v1623 = vld [vmem:[#allocation9 + $0x180] sm:$0xff]
    %v1624 = vld [vmem:[#allocation9 + $0x188] sm:$0xff]
    %v1625 = vld [vmem:[#allocation9 + $0x190] sm:$0xff]
    %v1626 = vld [vmem:[#allocation9 + $0x198] sm:$0xff]
    %v1627 = vld [vmem:[#allocation9 + $0x1a0] sm:$0xff]
    %v1628 = vld [vmem:[#allocation9 + $0x1a8] sm:$0xff]
    %v1629 = vld [vmem:[#allocation9 + $0x1b0] sm:$0xff]
    %v1630 = vld [vmem:[#allocation9 + $0x1b8] sm:$0xff]
    %v1631 = vld [vmem:[#allocation9 + $0x1c0] sm:$0xff]
    %v1632 = vld [vmem:[#allocation9 + $0x1c8] sm:$0xff]
    %v1633 = vld [vmem:[#allocation9 + $0x1d0] sm:$0xff]
    %v1634 = vld [vmem:[#allocation9 + $0x1d8] sm:$0xff]
    %v1635 = vld [vmem:[#allocation9 + $0x1e0] sm:$0xff]
    %v1636 = vld [vmem:[#allocation9 + $0x1e8] sm:$0xff]
    %v1637 = vld [vmem:[#allocation9 + $0x1f0] sm:$0xff]
    %v1638 = vld [vmem:[#allocation9 + $0x1f8] sm:$0xff]
    %1639 = vmatprep.subr.mxu0 %v1636
    %1640 = vmatpush1.msra.mxu0 %v1635
    %1641 = vmatprep.subr.mxu0 %v1632
    %1642 = vmatpush1.msra.mxu0 %v1631
    %1643 = vmatprep.subr.mxu0 %v1628
    %1644 = vmatpush1.msra.mxu0 %v1627
    %1645 = vmatprep.subr.mxu0 %v1624
    %1646 = vmatpush1.msra.mxu0 %v1623
    %1647 = vmatprep.subr.mxu0 %v1620
    %1648 = vmatpush1.msra.mxu0 %v1619
    %1649 = vmatprep.subr.mxu0 %v1616
    %1650 = vmatpush1.msra.mxu0 %v1615
    %1651 = vmatprep.subr.mxu0 %v1612
    %1652 = vmatpush1.msra.mxu0 %v1611
    %1653 = vmatprep.subr.mxu0 %v1608
    %1654 = vmatpush1.msra.mxu0 %v1607
    %1655 = vmatprep.subr.mxu0 %v1604
    %1656 = vmatpush1.msra.mxu0 %v1603
    %1657 = vmatprep.subr.mxu0 %v1600
    %1658 = vmatpush1.msra.mxu0 %v1599
    %1659 = vmatprep.subr.mxu0 %v1596
    %1660 = vmatpush1.msra.mxu0 %v1595
    %1661 = vmatprep.subr.mxu0 %v1592
    %1662 = vmatpush1.msra.mxu0 %v1591
    %1663 = vmatprep.subr.mxu0 %v1588
    %1664 = vmatpush1.msra.mxu0 %v1587
    %1665 = vmatprep.subr.mxu0 %v1584
    %1666 = vmatpush1.msra.mxu0 %v1583
    %1667 = vmatprep.subr.mxu0 %v1580
    %1668 = vmatpush1.msra.mxu0 %v1579
    %1669 = vmatprep.subr.mxu0 %v1576
    %1670 = vmatpush1.msra.mxu0 %v1575
    %1671 = vmatprep.subr.mxu0 0.0
    %1672 = vmatpush2.msra.mxu0 0.0
    %1673 = vmatprep.subr.mxu0 0.0
    %1674 = vmatpush2.msra.mxu0 0.0
    %1675 = vmatprep.subr.mxu0 0.0
    %1676 = vmatpush2.msra.mxu0 0.0
    %1677 = vmatprep.subr.mxu0 0.0
    %1678 = vmatpush2.msra.mxu0 0.0
    %1679 = vmatprep.subr.mxu0 0.0
    %1680 = vmatpush2.msra.mxu0 0.0
    %1681 = vmatprep.subr.mxu0 0.0
    %1682 = vmatpush2.msra.mxu0 0.0
    %1683 = vmatprep.subr.mxu0 0.0
    %1684 = vmatpush2.msra.mxu0 0.0
    %1685 = vmatprep.subr.mxu0 0.0
    %1686 = vmatpush2.msra.mxu0 0.0
    %1687 = vmatprep.subr.mxu0 0.0
    %1688 = vmatpush2.msra.mxu0 0.0
    %1689 = vmatprep.subr.mxu0 0.0
    %1690 = vmatpush2.msra.mxu0 0.0
    %1691 = vmatprep.subr.mxu0 0.0
    %1692 = vmatpush2.msra.mxu0 0.0
    %1693 = vmatprep.subr.mxu0 0.0
    %1694 = vmatpush2.msra.mxu0 0.0
    %1695 = vmatprep.subr.mxu0 0.0
    %1696 = vmatpush2.msra.mxu0 0.0
    %1697 = vmatprep.subr.mxu0 0.0
    %1698 = vmatpush2.msra.mxu0 0.0
    %1699 = vmatprep.subr.mxu0 0.0
    %1700 = vmatpush2.msra.mxu0 0.0
    %1701 = vmatprep.subr.mxu0 0.0
    %1702 = vmatpush2.msra.mxu0 0.0
    %1703 = vmatprep.mubr.f32.mxu0 0.0
    %1704 = vmatmul.mubr.f32.gmra.mxu0 %v1565
    %v1705 = vpop.f32.mrf.mxu0
    %v1706 = vadd.f32 0.0, %v1705
    %v1707 = vpop.f32.mrf.mxu0
    %v1708 = vadd.f32 0.0, %v1707
    %1709 = vdwg.mxu0
    %1710 = vmatprep.subr.mxu0 %v1638
    %1711 = vmatpush1.msra.mxu0 %v1637
    %1712 = vmatprep.subr.mxu0 %v1634
    %1713 = vmatpush1.msra.mxu0 %v1633
    %1714 = vmatprep.subr.mxu0 %v1630
    %1715 = vmatpush1.msra.mxu0 %v1629
    %1716 = vmatprep.subr.mxu0 %v1626
    %1717 = vmatpush1.msra.mxu0 %v1625
    %1718 = vmatprep.subr.mxu0 %v1622
    %1719 = vmatpush1.msra.mxu0 %v1621
    %1720 = vmatprep.subr.mxu0 %v1618
    %1721 = vmatpush1.msra.mxu0 %v1617
    %1722 = vmatprep.subr.mxu0 %v1614
    %1723 = vmatpush1.msra.mxu0 %v1613
    %1724 = vmatprep.subr.mxu0 %v1610
    %1725 = vmatpush1.msra.mxu0 %v1609
    %1726 = vmatprep.subr.mxu0 %v1606
    %1727 = vmatpush1.msra.mxu0 %v1605
    %1728 = vmatprep.subr.mxu0 %v1602
    %1729 = vmatpush1.msra.mxu0 %v1601
    %1730 = vmatprep.subr.mxu0 %v1598
    %1731 = vmatpush1.msra.mxu0 %v1597
    %1732 = vmatprep.subr.mxu0 %v1594
    %1733 = vmatpush1.msra.mxu0 %v1593
    %1734 = vmatprep.subr.mxu0 %v1590
    %1735 = vmatpush1.msra.mxu0 %v1589
    %1736 = vmatprep.subr.mxu0 %v1586
    %1737 = vmatpush1.msra.mxu0 %v1585
    %1738 = vmatprep.subr.mxu0 %v1582
    %1739 = vmatpush1.msra.mxu0 %v1581
    %1740 = vmatprep.subr.mxu0 %v1578
    %1741 = vmatpush1.msra.mxu0 %v1577
    %1742 = vmatprep.subr.mxu0 0.0
    %1743 = vmatpush2.msra.mxu0 0.0
    %1744 = vmatprep.subr.mxu0 0.0
    %1745 = vmatpush2.msra.mxu0 0.0
    %1746 = vmatprep.subr.mxu0 0.0
    %1747 = vmatpush2.msra.mxu0 0.0
    %1748 = vmatprep.subr.mxu0 0.0
    %1749 = vmatpush2.msra.mxu0 0.0
    %1750 = vmatprep.subr.mxu0 0.0
    %1751 = vmatpush2.msra.mxu0 0.0
    %1752 = vmatprep.subr.mxu0 0.0
    %1753 = vmatpush2.msra.mxu0 0.0
    %1754 = vmatprep.subr.mxu0 0.0
    %1755 = vmatpush2.msra.mxu0 0.0
    %1756 = vmatprep.subr.mxu0 0.0
    %1757 = vmatpush2.msra.mxu0 0.0
    %1758 = vmatprep.subr.mxu0 0.0
    %1759 = vmatpush2.msra.mxu0 0.0
    %1760 = vmatprep.subr.mxu0 0.0
    %1761 = vmatpush2.msra.mxu0 0.0
    %1762 = vmatprep.subr.mxu0 0.0
    %1763 = vmatpush2.msra.mxu0 0.0
    %1764 = vmatprep.subr.mxu0 0.0
    %1765 = vmatpush2.msra.mxu0 0.0
    %1766 = vmatprep.subr.mxu0 0.0
    %1767 = vmatpush2.msra.mxu0 0.0
    %1768 = vmatprep.subr.mxu0 0.0
    %1769 = vmatpush2.msra.mxu0 0.0
    %1770 = vmatprep.subr.mxu0 0.0
    %1771 = vmatpush2.msra.mxu0 0.0
    %1772 = vmatprep.subr.mxu0 0.0
    %1773 = vmatpush2.msra.mxu0 0.0
    %1774 = vmatprep.mubr.f32.mxu0 0.0
    %1775 = vmatmul.mubr.f32.gmra.mxu0 %v1565
    %v1776 = vpop.f32.mrf.mxu0
    %v1777 = vadd.f32 0.0, %v1776
    %v1778 = vpop.f32.mrf.mxu0
    %v1779 = vadd.f32 0.0, %v1778
    %1780 = vdwg.mxu0
    %v1781 = vadd.f32 %v1571, %v1706
    %v1782 = vadd.f32 %v1572, %v1708
    %v1783 = vadd.f32 %v1573, %v1777
    %v1784 = vadd.f32 %v1574, %v1779
    %v1785 = vmul.f32 %v1781, 0.5
    %v1786 = vmul.f32 %v1782, 0.5
    %v1787 = vmul.f32 %v1783, 0.5
    %v1788 = vtanh.pop %v1785
    %v1789 = vtanh.pop %v1786
    %v1790 = vtanh.pop %v1787
    %v1791 = vadd.f32 %v1788, 1.0
    %v1792 = vadd.f32 %v1789, 1.0
    %v1793 = vadd.f32 %v1790, 1.0
    %v1794 = vmul.f32 %v1791, 0.5
    %v1795 = vmul.f32 %v1792, 0.5
    %v1796 = vmul.f32 %v1793, 0.5
    %v1797 = vtanh.pop %v1784
    %v1798 = vmul.f32 %v1795, %v1563
    %v1799 = vmul.f32 %v1794, %v1797
    %v1800 = vadd.f32 %v1798, %v1799
    %v1801 = vtanh.pop %v1800
    %v1802 = vmul.f32 %v1796, %v1801
    %s1803 = scalar_lea.vmem [#allocation3], 40
    %1804 = vst [vmem:[%s1803] sm:$0xff] %v1802
    %s1805 = smul.u32 6, 4
    %s1806 = smul.addr %s1805, 8
    %s1807 = scalar_lea.vmem [#allocation2], %s1806
    %v1808 = vld [vmem:[%s1807] sm:$0xff]
    %v1809 = vld [vmem:[%s1807 + $0x8] sm:$0xff]
    %v1810 = vld [vmem:[%s1807 + $0x10] sm:$0xff]
    %v1811 = vld [vmem:[%s1807 + $0x18] sm:$0xff]
    %v1812 = vld [vmem:[#allocation9] sm:$0xff]
    %v1813 = vld [vmem:[#allocation9 + $0x8] sm:$0xff]
    %v1814 = vld [vmem:[#allocation9 + $0x10] sm:$0xff]
    %v1815 = vld [vmem:[#allocation9 + $0x18] sm:$0xff]
    %v1816 = vld [vmem:[#allocation9 + $0x20] sm:$0xff]
    %v1817 = vld [vmem:[#allocation9 + $0x28] sm:$0xff]
    %v1818 = vld [vmem:[#allocation9 + $0x30] sm:$0xff]
    %v1819 = vld [vmem:[#allocation9 + $0x38] sm:$0xff]
    %v1820 = vld [vmem:[#allocation9 + $0x40] sm:$0xff]
    %v1821 = vld [vmem:[#allocation9 + $0x48] sm:$0xff]
    %v1822 = vld [vmem:[#allocation9 + $0x50] sm:$0xff]
    %v1823 = vld [vmem:[#allocation9 + $0x58] sm:$0xff]
    %v1824 = vld [vmem:[#allocation9 + $0x60] sm:$0xff]
    %v1825 = vld [vmem:[#allocation9 + $0x68] sm:$0xff]
    %v1826 = vld [vmem:[#allocation9 + $0x70] sm:$0xff]
    %v1827 = vld [vmem:[#allocation9 + $0x78] sm:$0xff]
    %v1828 = vld [vmem:[#allocation9 + $0x80] sm:$0xff]
    %v1829 = vld [vmem:[#allocation9 + $0x88] sm:$0xff]
    %v1830 = vld [vmem:[#allocation9 + $0x90] sm:$0xff]
    %v1831 = vld [vmem:[#allocation9 + $0x98] sm:$0xff]
    %v1832 = vld [vmem:[#allocation9 + $0xa0] sm:$0xff]
    %v1833 = vld [vmem:[#allocation9 + $0xa8] sm:$0xff]
    %v1834 = vld [vmem:[#allocation9 + $0xb0] sm:$0xff]
    %v1835 = vld [vmem:[#allocation9 + $0xb8] sm:$0xff]
    %v1836 = vld [vmem:[#allocation9 + $0xc0] sm:$0xff]
    %v1837 = vld [vmem:[#allocation9 + $0xc8] sm:$0xff]
    %v1838 = vld [vmem:[#allocation9 + $0xd0] sm:$0xff]
    %v1839 = vld [vmem:[#allocation9 + $0xd8] sm:$0xff]
    %v1840 = vld [vmem:[#allocation9 + $0xe0] sm:$0xff]
    %v1841 = vld [vmem:[#allocation9 + $0xe8] sm:$0xff]
    %v1842 = vld [vmem:[#allocation9 + $0xf0] sm:$0xff]
    %v1843 = vld [vmem:[#allocation9 + $0xf8] sm:$0xff]
    %v1844 = vld [vmem:[#allocation9 + $0x100] sm:$0xff]
    %v1845 = vld [vmem:[#allocation9 + $0x108] sm:$0xff]
    %v1846 = vld [vmem:[#allocation9 + $0x110] sm:$0xff]
    %v1847 = vld [vmem:[#allocation9 + $0x118] sm:$0xff]
    %v1848 = vld [vmem:[#allocation9 + $0x120] sm:$0xff]
    %v1849 = vld [vmem:[#allocation9 + $0x128] sm:$0xff]
    %v1850 = vld [vmem:[#allocation9 + $0x130] sm:$0xff]
    %v1851 = vld [vmem:[#allocation9 + $0x138] sm:$0xff]
    %v1852 = vld [vmem:[#allocation9 + $0x140] sm:$0xff]
    %v1853 = vld [vmem:[#allocation9 + $0x148] sm:$0xff]
    %v1854 = vld [vmem:[#allocation9 + $0x150] sm:$0xff]
    %v1855 = vld [vmem:[#allocation9 + $0x158] sm:$0xff]
    %v1856 = vld [vmem:[#allocation9 + $0x160] sm:$0xff]
    %v1857 = vld [vmem:[#allocation9 + $0x168] sm:$0xff]
    %v1858 = vld [vmem:[#allocation9 + $0x170] sm:$0xff]
    %v1859 = vld [vmem:[#allocation9 + $0x178] sm:$0xff]
    %v1860 = vld [vmem:[#allocation9 + $0x180] sm:$0xff]
    %v1861 = vld [vmem:[#allocation9 + $0x188] sm:$0xff]
    %v1862 = vld [vmem:[#allocation9 + $0x190] sm:$0xff]
    %v1863 = vld [vmem:[#allocation9 + $0x198] sm:$0xff]
    %v1864 = vld [vmem:[#allocation9 + $0x1a0] sm:$0xff]
    %v1865 = vld [vmem:[#allocation9 + $0x1a8] sm:$0xff]
    %v1866 = vld [vmem:[#allocation9 + $0x1b0] sm:$0xff]
    %v1867 = vld [vmem:[#allocation9 + $0x1b8] sm:$0xff]
    %v1868 = vld [vmem:[#allocation9 + $0x1c0] sm:$0xff]
    %v1869 = vld [vmem:[#allocation9 + $0x1c8] sm:$0xff]
    %v1870 = vld [vmem:[#allocation9 + $0x1d0] sm:$0xff]
    %v1871 = vld [vmem:[#allocation9 + $0x1d8] sm:$0xff]
    %v1872 = vld [vmem:[#allocation9 + $0x1e0] sm:$0xff]
    %v1873 = vld [vmem:[#allocation9 + $0x1e8] sm:$0xff]
    %v1874 = vld [vmem:[#allocation9 + $0x1f0] sm:$0xff]
    %v1875 = vld [vmem:[#allocation9 + $0x1f8] sm:$0xff]
    %1876 = vmatprep.subr.mxu0 %v1873
    %1877 = vmatpush1.msra.mxu0 %v1872
    %1878 = vmatprep.subr.mxu0 %v1869
    %1879 = vmatpush1.msra.mxu0 %v1868
    %1880 = vmatprep.subr.mxu0 %v1865
    %1881 = vmatpush1.msra.mxu0 %v1864
    %1882 = vmatprep.subr.mxu0 %v1861
    %1883 = vmatpush1.msra.mxu0 %v1860
    %1884 = vmatprep.subr.mxu0 %v1857
    %1885 = vmatpush1.msra.mxu0 %v1856
    %1886 = vmatprep.subr.mxu0 %v1853
    %1887 = vmatpush1.msra.mxu0 %v1852
    %1888 = vmatprep.subr.mxu0 %v1849
    %1889 = vmatpush1.msra.mxu0 %v1848
    %1890 = vmatprep.subr.mxu0 %v1845
    %1891 = vmatpush1.msra.mxu0 %v1844
    %1892 = vmatprep.subr.mxu0 %v1841
    %1893 = vmatpush1.msra.mxu0 %v1840
    %1894 = vmatprep.subr.mxu0 %v1837
    %1895 = vmatpush1.msra.mxu0 %v1836
    %1896 = vmatprep.subr.mxu0 %v1833
    %1897 = vmatpush1.msra.mxu0 %v1832
    %1898 = vmatprep.subr.mxu0 %v1829
    %1899 = vmatpush1.msra.mxu0 %v1828
    %1900 = vmatprep.subr.mxu0 %v1825
    %1901 = vmatpush1.msra.mxu0 %v1824
    %1902 = vmatprep.subr.mxu0 %v1821
    %1903 = vmatpush1.msra.mxu0 %v1820
    %1904 = vmatprep.subr.mxu0 %v1817
    %1905 = vmatpush1.msra.mxu0 %v1816
    %1906 = vmatprep.subr.mxu0 %v1813
    %1907 = vmatpush1.msra.mxu0 %v1812
    %1908 = vmatprep.subr.mxu0 0.0
    %1909 = vmatpush2.msra.mxu0 0.0
    %1910 = vmatprep.subr.mxu0 0.0
    %1911 = vmatpush2.msra.mxu0 0.0
    %1912 = vmatprep.subr.mxu0 0.0
    %1913 = vmatpush2.msra.mxu0 0.0
    %1914 = vmatprep.subr.mxu0 0.0
    %1915 = vmatpush2.msra.mxu0 0.0
    %1916 = vmatprep.subr.mxu0 0.0
    %1917 = vmatpush2.msra.mxu0 0.0
    %1918 = vmatprep.subr.mxu0 0.0
    %1919 = vmatpush2.msra.mxu0 0.0
    %1920 = vmatprep.subr.mxu0 0.0
    %1921 = vmatpush2.msra.mxu0 0.0
    %1922 = vmatprep.subr.mxu0 0.0
    %1923 = vmatpush2.msra.mxu0 0.0
    %1924 = vmatprep.subr.mxu0 0.0
    %1925 = vmatpush2.msra.mxu0 0.0
    %1926 = vmatprep.subr.mxu0 0.0
    %1927 = vmatpush2.msra.mxu0 0.0
    %1928 = vmatprep.subr.mxu0 0.0
    %1929 = vmatpush2.msra.mxu0 0.0
    %1930 = vmatprep.subr.mxu0 0.0
    %1931 = vmatpush2.msra.mxu0 0.0
    %1932 = vmatprep.subr.mxu0 0.0
    %1933 = vmatpush2.msra.mxu0 0.0
    %1934 = vmatprep.subr.mxu0 0.0
    %1935 = vmatpush2.msra.mxu0 0.0
    %1936 = vmatprep.subr.mxu0 0.0
    %1937 = vmatpush2.msra.mxu0 0.0
    %1938 = vmatprep.subr.mxu0 0.0
    %1939 = vmatpush2.msra.mxu0 0.0
    %1940 = vmatprep.mubr.f32.mxu0 0.0
    %1941 = vmatmul.mubr.f32.gmra.mxu0 %v1802
    %v1942 = vpop.f32.mrf.mxu0
    %v1943 = vadd.f32 0.0, %v1942
    %v1944 = vpop.f32.mrf.mxu0
    %v1945 = vadd.f32 0.0, %v1944
    %1946 = vdwg.mxu0
    %1947 = vmatprep.subr.mxu0 %v1875
    %1948 = vmatpush1.msra.mxu0 %v1874
    %1949 = vmatprep.subr.mxu0 %v1871
    %1950 = vmatpush1.msra.mxu0 %v1870
    %1951 = vmatprep.subr.mxu0 %v1867
    %1952 = vmatpush1.msra.mxu0 %v1866
    %1953 = vmatprep.subr.mxu0 %v1863
    %1954 = vmatpush1.msra.mxu0 %v1862
    %1955 = vmatprep.subr.mxu0 %v1859
    %1956 = vmatpush1.msra.mxu0 %v1858
    %1957 = vmatprep.subr.mxu0 %v1855
    %1958 = vmatpush1.msra.mxu0 %v1854
    %1959 = vmatprep.subr.mxu0 %v1851
    %1960 = vmatpush1.msra.mxu0 %v1850
    %1961 = vmatprep.subr.mxu0 %v1847
    %1962 = vmatpush1.msra.mxu0 %v1846
    %1963 = vmatprep.subr.mxu0 %v1843
    %1964 = vmatpush1.msra.mxu0 %v1842
    %1965 = vmatprep.subr.mxu0 %v1839
    %1966 = vmatpush1.msra.mxu0 %v1838
    %1967 = vmatprep.subr.mxu0 %v1835
    %1968 = vmatpush1.msra.mxu0 %v1834
    %1969 = vmatprep.subr.mxu0 %v1831
    %1970 = vmatpush1.msra.mxu0 %v1830
    %1971 = vmatprep.subr.mxu0 %v1827
    %1972 = vmatpush1.msra.mxu0 %v1826
    %1973 = vmatprep.subr.mxu0 %v1823
    %1974 = vmatpush1.msra.mxu0 %v1822
    %1975 = vmatprep.subr.mxu0 %v1819
    %1976 = vmatpush1.msra.mxu0 %v1818
    %1977 = vmatprep.subr.mxu0 %v1815
    %1978 = vmatpush1.msra.mxu0 %v1814
    %1979 = vmatprep.subr.mxu0 0.0
    %1980 = vmatpush2.msra.mxu0 0.0
    %1981 = vmatprep.subr.mxu0 0.0
    %1982 = vmatpush2.msra.mxu0 0.0
    %1983 = vmatprep.subr.mxu0 0.0
    %1984 = vmatpush2.msra.mxu0 0.0
    %1985 = vmatprep.subr.mxu0 0.0
    %1986 = vmatpush2.msra.mxu0 0.0
    %1987 = vmatprep.subr.mxu0 0.0
    %1988 = vmatpush2.msra.mxu0 0.0
    %1989 = vmatprep.subr.mxu0 0.0
    %1990 = vmatpush2.msra.mxu0 0.0
    %1991 = vmatprep.subr.mxu0 0.0
    %1992 = vmatpush2.msra.mxu0 0.0
    %1993 = vmatprep.subr.mxu0 0.0
    %1994 = vmatpush2.msra.mxu0 0.0
    %1995 = vmatprep.subr.mxu0 0.0
    %1996 = vmatpush2.msra.mxu0 0.0
    %1997 = vmatprep.subr.mxu0 0.0
    %1998 = vmatpush2.msra.mxu0 0.0
    %1999 = vmatprep.subr.mxu0 0.0
    %2000 = vmatpush2.msra.mxu0 0.0
    %2001 = vmatprep.subr.mxu0 0.0
    %2002 = vmatpush2.msra.mxu0 0.0
    %2003 = vmatprep.subr.mxu0 0.0
    %2004 = vmatpush2.msra.mxu0 0.0
    %2005 = vmatprep.subr.mxu0 0.0
    %2006 = vmatpush2.msra.mxu0 0.0
    %2007 = vmatprep.subr.mxu0 0.0
    %2008 = vmatpush2.msra.mxu0 0.0
    %2009 = vmatprep.subr.mxu0 0.0
    %2010 = vmatpush2.msra.mxu0 0.0
    %2011 = vmatprep.mubr.f32.mxu0 0.0
    %2012 = vmatmul.mubr.f32.gmra.mxu0 %v1802
    %v2013 = vpop.f32.mrf.mxu0
    %v2014 = vadd.f32 0.0, %v2013
    %v2015 = vpop.f32.mrf.mxu0
    %v2016 = vadd.f32 0.0, %v2015
    %2017 = vdwg.mxu0
    %v2018 = vadd.f32 %v1808, %v1943
    %v2019 = vadd.f32 %v1809, %v1945
    %v2020 = vadd.f32 %v1810, %v2014
    %v2021 = vadd.f32 %v1811, %v2016
    %v2022 = vmul.f32 %v2018, 0.5
    %v2023 = vmul.f32 %v2019, 0.5
    %v2024 = vmul.f32 %v2020, 0.5
    %v2025 = vtanh.pop %v2022
    %v2026 = vtanh.pop %v2023
    %v2027 = vtanh.pop %v2024
    %v2028 = vadd.f32 %v2025, 1.0
    %v2029 = vadd.f32 %v2026, 1.0
    %v2030 = vadd.f32 %v2027, 1.0
    %v2031 = vmul.f32 %v2028, 0.5
    %v2032 = vmul.f32 %v2029, 0.5
    %v2033 = vmul.f32 %v2030, 0.5
    %v2034 = vtanh.pop %v2021
    %v2035 = vmul.f32 %v2032, %v1800
    %v2036 = vmul.f32 %v2031, %v2034
    %v2037 = vadd.f32 %v2035, %v2036
    %v2038 = vtanh.pop %v2037
    %v2039 = vmul.f32 %v2033, %v2038
    %s2040 = scalar_lea.vmem [#allocation3], 48
    %2041 = vst [vmem:[%s2040] sm:$0xff] %v2039
    %s2042 = smul.u32 7, 4
    %s2043 = smul.addr %s2042, 8
    %s2044 = scalar_lea.vmem [#allocation2], %s2043
    %v2045 = vld [vmem:[%s2044] sm:$0xff]
    %v2046 = vld [vmem:[%s2044 + $0x8] sm:$0xff]
    %v2047 = vld [vmem:[%s2044 + $0x10] sm:$0xff]
    %v2048 = vld [vmem:[%s2044 + $0x18] sm:$0xff]
    %v2049 = vld [vmem:[#allocation9] sm:$0xff]
    %v2050 = vld [vmem:[#allocation9 + $0x8] sm:$0xff]
    %v2051 = vld [vmem:[#allocation9 + $0x10] sm:$0xff]
    %v2052 = vld [vmem:[#allocation9 + $0x18] sm:$0xff]
    %v2053 = vld [vmem:[#allocation9 + $0x20] sm:$0xff]
    %v2054 = vld [vmem:[#allocation9 + $0x28] sm:$0xff]
    %v2055 = vld [vmem:[#allocation9 + $0x30] sm:$0xff]
    %v2056 = vld [vmem:[#allocation9 + $0x38] sm:$0xff]
    %v2057 = vld [vmem:[#allocation9 + $0x40] sm:$0xff]
    %v2058 = vld [vmem:[#allocation9 + $0x48] sm:$0xff]
    %v2059 = vld [vmem:[#allocation9 + $0x50] sm:$0xff]
    %v2060 = vld [vmem:[#allocation9 + $0x58] sm:$0xff]
    %v2061 = vld [vmem:[#allocation9 + $0x60] sm:$0xff]
    %v2062 = vld [vmem:[#allocation9 + $0x68] sm:$0xff]
    %v2063 = vld [vmem:[#allocation9 + $0x70] sm:$0xff]
    %v2064 = vld [vmem:[#allocation9 + $0x78] sm:$0xff]
    %v2065 = vld [vmem:[#allocation9 + $0x80] sm:$0xff]
    %v2066 = vld [vmem:[#allocation9 + $0x88] sm:$0xff]
    %v2067 = vld [vmem:[#allocation9 + $0x90] sm:$0xff]
    %v2068 = vld [vmem:[#allocation9 + $0x98] sm:$0xff]
    %v2069 = vld [vmem:[#allocation9 + $0xa0] sm:$0xff]
    %v2070 = vld [vmem:[#allocation9 + $0xa8] sm:$0xff]
    %v2071 = vld [vmem:[#allocation9 + $0xb0] sm:$0xff]
    %v2072 = vld [vmem:[#allocation9 + $0xb8] sm:$0xff]
    %v2073 = vld [vmem:[#allocation9 + $0xc0] sm:$0xff]
    %v2074 = vld [vmem:[#allocation9 + $0xc8] sm:$0xff]
    %v2075 = vld [vmem:[#allocation9 + $0xd0] sm:$0xff]
    %v2076 = vld [vmem:[#allocation9 + $0xd8] sm:$0xff]
    %v2077 = vld [vmem:[#allocation9 + $0xe0] sm:$0xff]
    %v2078 = vld [vmem:[#allocation9 + $0xe8] sm:$0xff]
    %v2079 = vld [vmem:[#allocation9 + $0xf0] sm:$0xff]
    %v2080 = vld [vmem:[#allocation9 + $0xf8] sm:$0xff]
    %v2081 = vld [vmem:[#allocation9 + $0x100] sm:$0xff]
    %v2082 = vld [vmem:[#allocation9 + $0x108] sm:$0xff]
    %v2083 = vld [vmem:[#allocation9 + $0x110] sm:$0xff]
    %v2084 = vld [vmem:[#allocation9 + $0x118] sm:$0xff]
    %v2085 = vld [vmem:[#allocation9 + $0x120] sm:$0xff]
    %v2086 = vld [vmem:[#allocation9 + $0x128] sm:$0xff]
    %v2087 = vld [vmem:[#allocation9 + $0x130] sm:$0xff]
    %v2088 = vld [vmem:[#allocation9 + $0x138] sm:$0xff]
    %v2089 = vld [vmem:[#allocation9 + $0x140] sm:$0xff]
    %v2090 = vld [vmem:[#allocation9 + $0x148] sm:$0xff]
    %v2091 = vld [vmem:[#allocation9 + $0x150] sm:$0xff]
    %v2092 = vld [vmem:[#allocation9 + $0x158] sm:$0xff]
    %v2093 = vld [vmem:[#allocation9 + $0x160] sm:$0xff]
    %v2094 = vld [vmem:[#allocation9 + $0x168] sm:$0xff]
    %v2095 = vld [vmem:[#allocation9 + $0x170] sm:$0xff]
    %v2096 = vld [vmem:[#allocation9 + $0x178] sm:$0xff]
    %v2097 = vld [vmem:[#allocation9 + $0x180] sm:$0xff]
    %v2098 = vld [vmem:[#allocation9 + $0x188] sm:$0xff]
    %v2099 = vld [vmem:[#allocation9 + $0x190] sm:$0xff]
    %v2100 = vld [vmem:[#allocation9 + $0x198] sm:$0xff]
    %v2101 = vld [vmem:[#allocation9 + $0x1a0] sm:$0xff]
    %v2102 = vld [vmem:[#allocation9 + $0x1a8] sm:$0xff]
    %v2103 = vld [vmem:[#allocation9 + $0x1b0] sm:$0xff]
    %v2104 = vld [vmem:[#allocation9 + $0x1b8] sm:$0xff]
    %v2105 = vld [vmem:[#allocation9 + $0x1c0] sm:$0xff]
    %v2106 = vld [vmem:[#allocation9 + $0x1c8] sm:$0xff]
    %v2107 = vld [vmem:[#allocation9 + $0x1d0] sm:$0xff]
    %v2108 = vld [vmem:[#allocation9 + $0x1d8] sm:$0xff]
    %v2109 = vld [vmem:[#allocation9 + $0x1e0] sm:$0xff]
    %v2110 = vld [vmem:[#allocation9 + $0x1e8] sm:$0xff]
    %v2111 = vld [vmem:[#allocation9 + $0x1f0] sm:$0xff]
    %v2112 = vld [vmem:[#allocation9 + $0x1f8] sm:$0xff]
    %2113 = vmatprep.subr.mxu0 %v2110
    %2114 = vmatpush1.msra.mxu0 %v2109
    %2115 = vmatprep.subr.mxu0 %v2106
    %2116 = vmatpush1.msra.mxu0 %v2105
    %2117 = vmatprep.subr.mxu0 %v2102
    %2118 = vmatpush1.msra.mxu0 %v2101
    %2119 = vmatprep.subr.mxu0 %v2098
    %2120 = vmatpush1.msra.mxu0 %v2097
    %2121 = vmatprep.subr.mxu0 %v2094
    %2122 = vmatpush1.msra.mxu0 %v2093
    %2123 = vmatprep.subr.mxu0 %v2090
    %2124 = vmatpush1.msra.mxu0 %v2089
    %2125 = vmatprep.subr.mxu0 %v2086
    %2126 = vmatpush1.msra.mxu0 %v2085
    %2127 = vmatprep.subr.mxu0 %v2082
    %2128 = vmatpush1.msra.mxu0 %v2081
    %2129 = vmatprep.subr.mxu0 %v2078
    %2130 = vmatpush1.msra.mxu0 %v2077
    %2131 = vmatprep.subr.mxu0 %v2074
    %2132 = vmatpush1.msra.mxu0 %v2073
    %2133 = vmatprep.subr.mxu0 %v2070
    %2134 = vmatpush1.msra.mxu0 %v2069
    %2135 = vmatprep.subr.mxu0 %v2066
    %2136 = vmatpush1.msra.mxu0 %v2065
    %2137 = vmatprep.subr.mxu0 %v2062
    %2138 = vmatpush1.msra.mxu0 %v2061
    %2139 = vmatprep.subr.mxu0 %v2058
    %2140 = vmatpush1.msra.mxu0 %v2057
    %2141 = vmatprep.subr.mxu0 %v2054
    %2142 = vmatpush1.msra.mxu0 %v2053
    %2143 = vmatprep.subr.mxu0 %v2050
    %2144 = vmatpush1.msra.mxu0 %v2049
    %2145 = vmatprep.subr.mxu0 0.0
    %2146 = vmatpush2.msra.mxu0 0.0
    %2147 = vmatprep.subr.mxu0 0.0
    %2148 = vmatpush2.msra.mxu0 0.0
    %2149 = vmatprep.subr.mxu0 0.0
    %2150 = vmatpush2.msra.mxu0 0.0
    %2151 = vmatprep.subr.mxu0 0.0
    %2152 = vmatpush2.msra.mxu0 0.0
    %2153 = vmatprep.subr.mxu0 0.0
    %2154 = vmatpush2.msra.mxu0 0.0
    %2155 = vmatprep.subr.mxu0 0.0
    %2156 = vmatpush2.msra.mxu0 0.0
    %2157 = vmatprep.subr.mxu0 0.0
    %2158 = vmatpush2.msra.mxu0 0.0
    %2159 = vmatprep.subr.mxu0 0.0
    %2160 = vmatpush2.msra.mxu0 0.0
    %2161 = vmatprep.subr.mxu0 0.0
    %2162 = vmatpush2.msra.mxu0 0.0
    %2163 = vmatprep.subr.mxu0 0.0
    %2164 = vmatpush2.msra.mxu0 0.0
    %2165 = vmatprep.subr.mxu0 0.0
    %2166 = vmatpush2.msra.mxu0 0.0
    %2167 = vmatprep.subr.mxu0 0.0
    %2168 = vmatpush2.msra.mxu0 0.0
    %2169 = vmatprep.subr.mxu0 0.0
    %2170 = vmatpush2.msra.mxu0 0.0
    %2171 = vmatprep.subr.mxu0 0.0
    %2172 = vmatpush2.msra.mxu0 0.0
    %2173 = vmatprep.subr.mxu0 0.0
    %2174 = vmatpush2.msra.mxu0 0.0
    %2175 = vmatprep.subr.mxu0 0.0
    %2176 = vmatpush2.msra.mxu0 0.0
    %2177 = vmatprep.mubr.f32.mxu0 0.0
    %2178 = vmatmul.mubr.f32.gmra.mxu0 %v2039
    %v2179 = vpop.f32.mrf.mxu0
    %v2180 = vadd.f32 0.0, %v2179
    %v2181 = vpop.f32.mrf.mxu0
    %v2182 = vadd.f32 0.0, %v2181
    %2183 = vdwg.mxu0
    %2184 = vmatprep.subr.mxu0 %v2112
    %2185 = vmatpush1.msra.mxu0 %v2111
    %2186 = vmatprep.subr.mxu0 %v2108
    %2187 = vmatpush1.msra.mxu0 %v2107
    %2188 = vmatprep.subr.mxu0 %v2104
    %2189 = vmatpush1.msra.mxu0 %v2103
    %2190 = vmatprep.subr.mxu0 %v2100
    %2191 = vmatpush1.msra.mxu0 %v2099
    %2192 = vmatprep.subr.mxu0 %v2096
    %2193 = vmatpush1.msra.mxu0 %v2095
    %2194 = vmatprep.subr.mxu0 %v2092
    %2195 = vmatpush1.msra.mxu0 %v2091
    %2196 = vmatprep.subr.mxu0 %v2088
    %2197 = vmatpush1.msra.mxu0 %v2087
    %2198 = vmatprep.subr.mxu0 %v2084
    %2199 = vmatpush1.msra.mxu0 %v2083
    %2200 = vmatprep.subr.mxu0 %v2080
    %2201 = vmatpush1.msra.mxu0 %v2079
    %2202 = vmatprep.subr.mxu0 %v2076
    %2203 = vmatpush1.msra.mxu0 %v2075
    %2204 = vmatprep.subr.mxu0 %v2072
    %2205 = vmatpush1.msra.mxu0 %v2071
    %2206 = vmatprep.subr.mxu0 %v2068
    %2207 = vmatpush1.msra.mxu0 %v2067
    %2208 = vmatprep.subr.mxu0 %v2064
    %2209 = vmatpush1.msra.mxu0 %v2063
    %2210 = vmatprep.subr.mxu0 %v2060
    %2211 = vmatpush1.msra.mxu0 %v2059
    %2212 = vmatprep.subr.mxu0 %v2056
    %2213 = vmatpush1.msra.mxu0 %v2055
    %2214 = vmatprep.subr.mxu0 %v2052
    %2215 = vmatpush1.msra.mxu0 %v2051
    %2216 = vmatprep.subr.mxu0 0.0
    %2217 = vmatpush2.msra.mxu0 0.0
    %2218 = vmatprep.subr.mxu0 0.0
    %2219 = vmatpush2.msra.mxu0 0.0
    %2220 = vmatprep.subr.mxu0 0.0
    %2221 = vmatpush2.msra.mxu0 0.0
    %2222 = vmatprep.subr.mxu0 0.0
    %2223 = vmatpush2.msra.mxu0 0.0
    %2224 = vmatprep.subr.mxu0 0.0
    %2225 = vmatpush2.msra.mxu0 0.0
    %2226 = vmatprep.subr.mxu0 0.0
    %2227 = vmatpush2.msra.mxu0 0.0
    %2228 = vmatprep.subr.mxu0 0.0
    %2229 = vmatpush2.msra.mxu0 0.0
    %2230 = vmatprep.subr.mxu0 0.0
    %2231 = vmatpush2.msra.mxu0 0.0
    %2232 = vmatprep.subr.mxu0 0.0
    %2233 = vmatpush2.msra.mxu0 0.0
    %2234 = vmatprep.subr.mxu0 0.0
    %2235 = vmatpush2.msra.mxu0 0.0
    %2236 = vmatprep.subr.mxu0 0.0
    %2237 = vmatpush2.msra.mxu0 0.0
    %2238 = vmatprep.subr.mxu0 0.0
    %2239 = vmatpush2.msra.mxu0 0.0
    %2240 = vmatprep.subr.mxu0 0.0
    %2241 = vmatpush2.msra.mxu0 0.0
    %2242 = vmatprep.subr.mxu0 0.0
    %2243 = vmatpush2.msra.mxu0 0.0
    %2244 = vmatprep.subr.mxu0 0.0
    %2245 = vmatpush2.msra.mxu0 0.0
    %2246 = vmatprep.subr.mxu0 0.0
    %2247 = vmatpush2.msra.mxu0 0.0
    %2248 = vmatprep.mubr.f32.mxu0 0.0
    %2249 = vmatmul.mubr.f32.gmra.mxu0 %v2039
    %v2250 = vpop.f32.mrf.mxu0
    %v2251 = vadd.f32 0.0, %v2250
    %v2252 = vpop.f32.mrf.mxu0
    %v2253 = vadd.f32 0.0, %v2252
    %2254 = vdwg.mxu0
    %v2255 = vadd.f32 %v2045, %v2180
    %v2256 = vadd.f32 %v2046, %v2182
    %v2257 = vadd.f32 %v2047, %v2251
    %v2258 = vadd.f32 %v2048, %v2253
    %v2259 = vmul.f32 %v2255, 0.5
    %v2260 = vmul.f32 %v2256, 0.5
    %v2261 = vmul.f32 %v2257, 0.5
    %v2262 = vtanh.pop %v2259
    %v2263 = vtanh.pop %v2260
    %v2264 = vtanh.pop %v2261
    %v2265 = vadd.f32 %v2262, 1.0
    %v2266 = vadd.f32 %v2263, 1.0
    %v2267 = vadd.f32 %v2264, 1.0
    %v2268 = vmul.f32 %v2265, 0.5
    %v2269 = vmul.f32 %v2266, 0.5
    %v2270 = vmul.f32 %v2267, 0.5
    %v2271 = vtanh.pop %v2258
    %v2272 = vmul.f32 %v2269, %v2037
    %v2273 = vmul.f32 %v2268, %v2271
    %v2274 = vadd.f32 %v2272, %v2273
    %v2275 = vtanh.pop %v2274
    %v2276 = vmul.f32 %v2270, %v2275
    %s2277 = scalar_lea.vmem [#allocation3], 56
    %2278 = vst [vmem:[%s2277] sm:$0xff] %v2276
    %2279 = vst [vmem:[#allocation4] sm:$0xff] %v2276
    %2280 = vst [vmem:[#allocation5] sm:$0xff] %v2274
    %v2281 = vld [vmem:[#allocation3] sm:$0xff]
    %v2282 = vld [vmem:[#allocation3 + $0x8] sm:$0xff]
    %v2283 = vld [vmem:[#allocation3 + $0x10] sm:$0xff]
    %v2284 = vld [vmem:[#allocation3 + $0x18] sm:$0xff]
    %v2285 = vld [vmem:[#allocation3 + $0x20] sm:$0xff]
    %v2286 = vld [vmem:[#allocation3 + $0x28] sm:$0xff]
    %v2287 = vld [vmem:[#allocation3 + $0x30] sm:$0xff]
    %v2288 = vld [vmem:[#allocation3 + $0x38] sm:$0xff]
    %v2289 = vld [vmem:[#allocation6] sm:$0xff]
    %v2290 = vld [vmem:[#allocation6 + $0x8] sm:$0xff]
    %v2291 = vld [vmem:[#allocation6 + $0x10] sm:$0xff]
    %v2292 = vld [vmem:[#allocation6 + $0x18] sm:$0xff]
    %v2293 = vld [vmem:[#allocation6 + $0x20] sm:$0xff]
    %v2294 = vld [vmem:[#allocation6 + $0x28] sm:$0xff]
    %v2295 = vld [vmem:[#allocation6 + $0x30] sm:$0xff]
    %v2296 = vld [vmem:[#allocation6 + $0x38] sm:$0xff]
    %v2297 = vld [vmem:[#allocation6 + $0x40] sm:$0xff]
    %v2298 = vld [vmem:[#allocation6 + $0x48] sm:$0xff]
    %v2299 = vld [vmem:[#allocation6 + $0x50] sm:$0xff]
    %v2300 = vld [vmem:[#allocation6 + $0x58] sm:$0xff]
    %v2301 = vld [vmem:[#allocation6 + $0x60] sm:$0xff]
    %v2302 = vld [vmem:[#allocation6 + $0x68] sm:$0xff]
    %v2303 = vld [vmem:[#allocation6 + $0x70] sm:$0xff]
    %v2304 = vld [vmem:[#allocation6 + $0x78] sm:$0xff]
    %v2305 = vld [vmem:[#allocation6 + $0x80] sm:$0xff]
    %v2306 = vld [vmem:[#allocation6 + $0x88] sm:$0xff]
    %v2307 = vld [vmem:[#allocation6 + $0x90] sm:$0xff]
    %v2308 = vld [vmem:[#allocation6 + $0x98] sm:$0xff]
    %v2309 = vld [vmem:[#allocation6 + $0xa0] sm:$0xff]
    %v2310 = vld [vmem:[#allocation6 + $0xa8] sm:$0xff]
    %v2311 = vld [vmem:[#allocation6 + $0xb0] sm:$0xff]
    %v2312 = vld [vmem:[#allocation6 + $0xb8] sm:$0xff]
    %v2313 = vld [vmem:[#allocation6 + $0xc0] sm:$0xff]
    %v2314 = vld [vmem:[#allocation6 + $0xc8] sm:$0xff]
    %v2315 = vld [vmem:[#allocation6 + $0xd0] sm:$0xff]
    %v2316 = vld [vmem:[#allocation6 + $0xd8] sm:$0xff]
    %v2317 = vld [vmem:[#allocation6 + $0xe0] sm:$0xff]
    %v2318 = vld [vmem:[#allocation6 + $0xe8] sm:$0xff]
    %v2319 = vld [vmem:[#allocation6 + $0xf0] sm:$0xff]
    %v2320 = vld [vmem:[#allocation6 + $0xf8] sm:$0xff]
    %v2321 = vld [vmem:[#allocation6 + $0x100] sm:$0xff]
    %v2322 = vld [vmem:[#allocation6 + $0x108] sm:$0xff]
    %v2323 = vld [vmem:[#allocation6 + $0x110] sm:$0xff]
    %v2324 = vld [vmem:[#allocation6 + $0x118] sm:$0xff]
    %v2325 = vld [vmem:[#allocation6 + $0x120] sm:$0xff]
    %v2326 = vld [vmem:[#allocation6 + $0x128] sm:$0xff]
    %v2327 = vld [vmem:[#allocation6 + $0x130] sm:$0xff]
    %v2328 = vld [vmem:[#allocation6 + $0x138] sm:$0xff]
    %v2329 = vld [vmem:[#allocation6 + $0x140] sm:$0xff]
    %v2330 = vld [vmem:[#allocation6 + $0x148] sm:$0xff]
    %v2331 = vld [vmem:[#allocation6 + $0x150] sm:$0xff]
    %v2332 = vld [vmem:[#allocation6 + $0x158] sm:$0xff]
    %v2333 = vld [vmem:[#allocation6 + $0x160] sm:$0xff]
    %v2334 = vld [vmem:[#allocation6 + $0x168] sm:$0xff]
    %v2335 = vld [vmem:[#allocation6 + $0x170] sm:$0xff]
    %v2336 = vld [vmem:[#allocation6 + $0x178] sm:$0xff]
    %v2337 = vld [vmem:[#allocation6 + $0x180] sm:$0xff]
    %v2338 = vld [vmem:[#allocation6 + $0x188] sm:$0xff]
    %v2339 = vld [vmem:[#allocation6 + $0x190] sm:$0xff]
    %v2340 = vld [vmem:[#allocation6 + $0x198] sm:$0xff]
    %v2341 = vld [vmem:[#allocation6 + $0x1a0] sm:$0xff]
    %v2342 = vld [vmem:[#allocation6 + $0x1a8] sm:$0xff]
    %v2343 = vld [vmem:[#allocation6 + $0x1b0] sm:$0xff]
    %v2344 = vld [vmem:[#allocation6 + $0x1b8] sm:$0xff]
    %v2345 = vld [vmem:[#allocation6 + $0x1c0] sm:$0xff]
    %v2346 = vld [vmem:[#allocation6 + $0x1c8] sm:$0xff]
    %v2347 = vld [vmem:[#allocation6 + $0x1d0] sm:$0xff]
    %v2348 = vld [vmem:[#allocation6 + $0x1d8] sm:$0xff]
    %v2349 = vld [vmem:[#allocation6 + $0x1e0] sm:$0xff]
    %v2350 = vld [vmem:[#allocation6 + $0x1e8] sm:$0xff]
    %v2351 = vld [vmem:[#allocation6 + $0x1f0] sm:$0xff]
    %v2352 = vld [vmem:[#allocation6 + $0x1f8] sm:$0xff]
    %2353 = vmatprep.subr.mxu0 %v2350
    %2354 = vmatpush1.msra.mxu0 %v2349
    %2355 = vmatprep.subr.mxu0 %v2346
    %2356 = vmatpush1.msra.mxu0 %v2345
    %2357 = vmatprep.subr.mxu0 %v2342
    %2358 = vmatpush1.msra.mxu0 %v2341
    %2359 = vmatprep.subr.mxu0 %v2338
    %2360 = vmatpush1.msra.mxu0 %v2337
    %2361 = vmatprep.subr.mxu0 %v2334
    %2362 = vmatpush1.msra.mxu0 %v2333
    %2363 = vmatprep.subr.mxu0 %v2330
    %2364 = vmatpush1.msra.mxu0 %v2329
    %2365 = vmatprep.subr.mxu0 %v2326
    %2366 = vmatpush1.msra.mxu0 %v2325
    %2367 = vmatprep.subr.mxu0 %v2322
    %2368 = vmatpush1.msra.mxu0 %v2321
    %2369 = vmatprep.subr.mxu0 %v2318
    %2370 = vmatpush1.msra.mxu0 %v2317
    %2371 = vmatprep.subr.mxu0 %v2314
    %2372 = vmatpush1.msra.mxu0 %v2313
    %2373 = vmatprep.subr.mxu0 %v2310
    %2374 = vmatpush1.msra.mxu0 %v2309
    %2375 = vmatprep.subr.mxu0 %v2306
    %2376 = vmatpush1.msra.mxu0 %v2305
    %2377 = vmatprep.subr.mxu0 %v2302
    %2378 = vmatpush1.msra.mxu0 %v2301
    %2379 = vmatprep.subr.mxu0 %v2298
    %2380 = vmatpush1.msra.mxu0 %v2297
    %2381 = vmatprep.subr.mxu0 %v2294
    %2382 = vmatpush1.msra.mxu0 %v2293
    %2383 = vmatprep.subr.mxu0 %v2290
    %2384 = vmatpush1.msra.mxu0 %v2289
    %2385 = vmatprep.subr.mxu0 0.0
    %2386 = vmatpush2.msra.mxu0 0.0
    %2387 = vmatprep.subr.mxu0 0.0
    %2388 = vmatpush2.msra.mxu0 0.0
    %2389 = vmatprep.subr.mxu0 0.0
    %2390 = vmatpush2.msra.mxu0 0.0
    %2391 = vmatprep.subr.mxu0 0.0
    %2392 = vmatpush2.msra.mxu0 0.0
    %2393 = vmatprep.subr.mxu0 0.0
    %2394 = vmatpush2.msra.mxu0 0.0
    %2395 = vmatprep.subr.mxu0 0.0
    %2396 = vmatpush2.msra.mxu0 0.0
    %2397 = vmatprep.subr.mxu0 0.0
    %2398 = vmatpush2.msra.mxu0 0.0
    %2399 = vmatprep.subr.mxu0 0.0
    %2400 = vmatpush2.msra.mxu0 0.0
    %2401 = vmatprep.subr.mxu0 0.0
    %2402 = vmatpush2.msra.mxu0 0.0
    %2403 = vmatprep.subr.mxu0 0.0
    %2404 = vmatpush2.msra.mxu0 0.0
    %2405 = vmatprep.subr.mxu0 0.0
    %2406 = vmatpush2.msra.mxu0 0.0
    %2407 = vmatprep.subr.mxu0 0.0
    %2408 = vmatpush2.msra.mxu0 0.0
    %2409 = vmatprep.subr.mxu0 0.0
    %2410 = vmatpush2.msra.mxu0 0.0
    %2411 = vmatprep.subr.mxu0 0.0
    %2412 = vmatpush2.msra.mxu0 0.0
    %2413 = vmatprep.subr.mxu0 0.0
    %2414 = vmatpush2.msra.mxu0 0.0
    %2415 = vmatprep.subr.mxu0 0.0
    %2416 = vmatpush2.msra.mxu0 0.0
    %2417 = vmatprep.mubr.f32.mxu0 0.0
    %2418 = vmatmul.mubr.f32.gmra.mxu0 %v2281
    %v2419 = vpop.f32.mrf.mxu0
    %v2420 = vadd.f32 %v82, %v2419
    %v2421 = vpop.f32.mrf.mxu0
    %v2422 = vadd.f32 %v86, %v2421
    %2423 = vmatprep.mubr.f32.mxu0 0.0
    %2424 = vmatmul.mubr.f32.gmra.mxu0 %v2282
    %v2425 = vpop.f32.mrf.mxu0
    %v2426 = vadd.f32 %v82, %v2425
    %v2427 = vpop.f32.mrf.mxu0
    %v2428 = vadd.f32 %v86, %v2427
    %2429 = vmatprep.mubr.f32.mxu0 0.0
    %2430 = vmatmul.mubr.f32.gmra.mxu0 %v2283
    %v2431 = vpop.f32.mrf.mxu0
    %v2432 = vadd.f32 %v82, %v2431
    %v2433 = vpop.f32.mrf.mxu0
    %v2434 = vadd.f32 %v86, %v2433
    %2435 = vmatprep.mubr.f32.mxu0 0.0
    %2436 = vmatmul.mubr.f32.gmra.mxu0 %v2284
    %v2437 = vpop.f32.mrf.mxu0
    %v2438 = vadd.f32 %v82, %v2437
    %v2439 = vpop.f32.mrf.mxu0
    %v2440 = vadd.f32 %v86, %v2439
    %2441 = vmatprep.mubr.f32.mxu0 0.0
    %2442 = vmatmul.mubr.f32.gmra.mxu0 %v2285
    %v2443 = vpop.f32.mrf.mxu0
    %v2444 = vadd.f32 %v82, %v2443
    %v2445 = vpop.f32.mrf.mxu0
    %v2446 = vadd.f32 %v86, %v2445
    %2447 = vmatprep.mubr.f32.mxu0 0.0
    %2448 = vmatmul.mubr.f32.gmra.mxu0 %v2286
    %v2449 = vpop.f32.mrf.mxu0
    %v2450 = vadd.f32 %v82, %v2449
    %v2451 = vpop.f32.mrf.mxu0
    %v2452 = vadd.f32 %v86, %v2451
    %2453 = vmatprep.mubr.f32.mxu0 0.0
    %2454 = vmatmul.mubr.f32.gmra.mxu0 %v2287
    %v2455 = vpop.f32.mrf.mxu0
    %v2456 = vadd.f32 %v82, %v2455
    %v2457 = vpop.f32.mrf.mxu0
    %v2458 = vadd.f32 %v86, %v2457
    %2459 = vmatprep.mubr.f32.mxu0 0.0
    %2460 = vmatmul.mubr.f32.gmra.mxu0 %v2288
    %v2461 = vpop.f32.mrf.mxu0
    %v2462 = vadd.f32 %v82, %v2461
    %v2463 = vpop.f32.mrf.mxu0
    %v2464 = vadd.f32 %v86, %v2463
    %2465 = vdwg.mxu0
    %2466 = vmatprep.subr.mxu0 %v2352
    %2467 = vmatpush1.msra.mxu0 %v2351
    %2468 = vmatprep.subr.mxu0 %v2348
    %2469 = vmatpush1.msra.mxu0 %v2347
    %2470 = vmatprep.subr.mxu0 %v2344
    %2471 = vmatpush1.msra.mxu0 %v2343
    %2472 = vmatprep.subr.mxu0 %v2340
    %2473 = vmatpush1.msra.mxu0 %v2339
    %2474 = vmatprep.subr.mxu0 %v2336
    %2475 = vmatpush1.msra.mxu0 %v2335
    %2476 = vmatprep.subr.mxu0 %v2332
    %2477 = vmatpush1.msra.mxu0 %v2331
    %2478 = vmatprep.subr.mxu0 %v2328
    %2479 = vmatpush1.msra.mxu0 %v2327
    %2480 = vmatprep.subr.mxu0 %v2324
    %2481 = vmatpush1.msra.mxu0 %v2323
    %2482 = vmatprep.subr.mxu0 %v2320
    %2483 = vmatpush1.msra.mxu0 %v2319
    %2484 = vmatprep.subr.mxu0 %v2316
    %2485 = vmatpush1.msra.mxu0 %v2315
    %2486 = vmatprep.subr.mxu0 %v2312
    %2487 = vmatpush1.msra.mxu0 %v2311
    %2488 = vmatprep.subr.mxu0 %v2308
    %2489 = vmatpush1.msra.mxu0 %v2307
    %2490 = vmatprep.subr.mxu0 %v2304
    %2491 = vmatpush1.msra.mxu0 %v2303
    %2492 = vmatprep.subr.mxu0 %v2300
    %2493 = vmatpush1.msra.mxu0 %v2299
    %2494 = vmatprep.subr.mxu0 %v2296
    %2495 = vmatpush1.msra.mxu0 %v2295
    %2496 = vmatprep.subr.mxu0 %v2292
    %2497 = vmatpush1.msra.mxu0 %v2291
    %2498 = vmatprep.subr.mxu0 0.0
    %2499 = vmatpush2.msra.mxu0 0.0
    %2500 = vmatprep.subr.mxu0 0.0
    %2501 = vmatpush2.msra.mxu0 0.0
    %2502 = vmatprep.subr.mxu0 0.0
    %2503 = vmatpush2.msra.mxu0 0.0
    %2504 = vmatprep.subr.mxu0 0.0
    %2505 = vmatpush2.msra.mxu0 0.0
    %2506 = vmatprep.subr.mxu0 0.0
    %2507 = vmatpush2.msra.mxu0 0.0
    %2508 = vmatprep.subr.mxu0 0.0
    %2509 = vmatpush2.msra.mxu0 0.0
    %2510 = vmatprep.subr.mxu0 0.0
    %2511 = vmatpush2.msra.mxu0 0.0
    %2512 = vmatprep.subr.mxu0 0.0
    %2513 = vmatpush2.msra.mxu0 0.0
    %2514 = vmatprep.subr.mxu0 0.0
    %2515 = vmatpush2.msra.mxu0 0.0
    %2516 = vmatprep.subr.mxu0 0.0
    %2517 = vmatpush2.msra.mxu0 0.0
    %2518 = vmatprep.subr.mxu0 0.0
    %2519 = vmatpush2.msra.mxu0 0.0
    %2520 = vmatprep.subr.mxu0 0.0
    %2521 = vmatpush2.msra.mxu0 0.0
    %2522 = vmatprep.subr.mxu0 0.0
    %2523 = vmatpush2.msra.mxu0 0.0
    %2524 = vmatprep.subr.mxu0 0.0
    %2525 = vmatpush2.msra.mxu0 0.0
    %2526 = vmatprep.subr.mxu0 0.0
    %2527 = vmatpush2.msra.mxu0 0.0
    %2528 = vmatprep.subr.mxu0 0.0
    %2529 = vmatpush2.msra.mxu0 0.0
    %2530 = vmatprep.mubr.f32.mxu0 0.0
    %2531 = vmatmul.mubr.f32.gmra.mxu0 %v2281
    %v2532 = vpop.f32.mrf.mxu0
    %v2533 = vadd.f32 %v90, %v2532
    %v2534 = vpop.f32.mrf.mxu0
    %v2535 = vadd.f32 %v94, %v2534
    %2536 = vmatprep.mubr.f32.mxu0 0.0
    %2537 = vmatmul.mubr.f32.gmra.mxu0 %v2282
    %v2538 = vpop.f32.mrf.mxu0
    %v2539 = vadd.f32 %v90, %v2538
    %v2540 = vpop.f32.mrf.mxu0
    %v2541 = vadd.f32 %v94, %v2540
    %2542 = vmatprep.mubr.f32.mxu0 0.0
    %2543 = vmatmul.mubr.f32.gmra.mxu0 %v2283
    %v2544 = vpop.f32.mrf.mxu0
    %v2545 = vadd.f32 %v90, %v2544
    %v2546 = vpop.f32.mrf.mxu0
    %v2547 = vadd.f32 %v94, %v2546
    %2548 = vmatprep.mubr.f32.mxu0 0.0
    %2549 = vmatmul.mubr.f32.gmra.mxu0 %v2284
    %v2550 = vpop.f32.mrf.mxu0
    %v2551 = vadd.f32 %v90, %v2550
    %v2552 = vpop.f32.mrf.mxu0
    %v2553 = vadd.f32 %v94, %v2552
    %2554 = vmatprep.mubr.f32.mxu0 0.0
    %2555 = vmatmul.mubr.f32.gmra.mxu0 %v2285
    %v2556 = vpop.f32.mrf.mxu0
    %v2557 = vadd.f32 %v90, %v2556
    %v2558 = vpop.f32.mrf.mxu0
    %v2559 = vadd.f32 %v94, %v2558
    %2560 = vmatprep.mubr.f32.mxu0 0.0
    %2561 = vmatmul.mubr.f32.gmra.mxu0 %v2286
    %v2562 = vpop.f32.mrf.mxu0
    %v2563 = vadd.f32 %v90, %v2562
    %v2564 = vpop.f32.mrf.mxu0
    %v2565 = vadd.f32 %v94, %v2564
    %2566 = vmatprep.mubr.f32.mxu0 0.0
    %2567 = vmatmul.mubr.f32.gmra.mxu0 %v2287
    %v2568 = vpop.f32.mrf.mxu0
    %v2569 = vadd.f32 %v90, %v2568
    %v2570 = vpop.f32.mrf.mxu0
    %v2571 = vadd.f32 %v94, %v2570
    %2572 = vmatprep.mubr.f32.mxu0 0.0
    %2573 = vmatmul.mubr.f32.gmra.mxu0 %v2288
    %v2574 = vpop.f32.mrf.mxu0
    %v2575 = vadd.f32 %v90, %v2574
    %v2576 = vpop.f32.mrf.mxu0
    %v2577 = vadd.f32 %v94, %v2576
    %2578 = vdwg.mxu0
    %2579 = vst [vmem:[#allocation2] sm:$0xff] %v2420
    %2580 = vst [vmem:[#allocation2 + $0x8] sm:$0xff] %v2422
    %2581 = vst [vmem:[#allocation2 + $0x10] sm:$0xff] %v2533
    %2582 = vst [vmem:[#allocation2 + $0x18] sm:$0xff] %v2535
    %2583 = vst [vmem:[#allocation2 + $0x20] sm:$0xff] %v2426
    %2584 = vst [vmem:[#allocation2 + $0x28] sm:$0xff] %v2428
    %2585 = vst [vmem:[#allocation2 + $0x30] sm:$0xff] %v2539
    %2586 = vst [vmem:[#allocation2 + $0x38] sm:$0xff] %v2541
    %2587 = vst [vmem:[#allocation2 + $0x40] sm:$0xff] %v2432
    %2588 = vst [vmem:[#allocation2 + $0x48] sm:$0xff] %v2434
    %2589 = vst [vmem:[#allocation2 + $0x50] sm:$0xff] %v2545
    %2590 = vst [vmem:[#allocation2 + $0x58] sm:$0xff] %v2547
    %2591 = vst [vmem:[#allocation2 + $0x60] sm:$0xff] %v2438
    %2592 = vst [vmem:[#allocation2 + $0x68] sm:$0xff] %v2440
    %2593 = vst [vmem:[#allocation2 + $0x70] sm:$0xff] %v2551
    %2594 = vst [vmem:[#allocation2 + $0x78] sm:$0xff] %v2553
    %2595 = vst [vmem:[#allocation2 + $0x80] sm:$0xff] %v2444
    %2596 = vst [vmem:[#allocation2 + $0x88] sm:$0xff] %v2446
    %2597 = vst [vmem:[#allocation2 + $0x90] sm:$0xff] %v2557
    %2598 = vst [vmem:[#allocation2 + $0x98] sm:$0xff] %v2559
    %2599 = vst [vmem:[#allocation2 + $0xa0] sm:$0xff] %v2450
    %2600 = vst [vmem:[#allocation2 + $0xa8] sm:$0xff] %v2452
    %2601 = vst [vmem:[#allocation2 + $0xb0] sm:$0xff] %v2563
    %2602 = vst [vmem:[#allocation2 + $0xb8] sm:$0xff] %v2565
    %2603 = vst [vmem:[#allocation2 + $0xc0] sm:$0xff] %v2456
    %2604 = vst [vmem:[#allocation2 + $0xc8] sm:$0xff] %v2458
    %2605 = vst [vmem:[#allocation2 + $0xd0] sm:$0xff] %v2569
    %2606 = vst [vmem:[#allocation2 + $0xd8] sm:$0xff] %v2571
    %2607 = vst [vmem:[#allocation2 + $0xe0] sm:$0xff] %v2462
    %2608 = vst [vmem:[#allocation2 + $0xe8] sm:$0xff] %v2464
    %2609 = vst [vmem:[#allocation2 + $0xf0] sm:$0xff] %v2575
    %2610 = vst [vmem:[#allocation2 + $0xf8] sm:$0xff] %v2577
    %s2611 = scalar_lea.vmem [#allocation4], 8
    %v2612 = vld [vmem:[%s2611] sm:$0xff]
    %s2613 = scalar_lea.vmem [#allocation5], 8
    %v2614 = vld [vmem:[%s2613] sm:$0xff]
    %v2615 = vld [vmem:[%s386] sm:$0xff]
    %v2616 = vld [vmem:[%s386 + $0x8] sm:$0xff]
    %v2617 = vld [vmem:[%s386 + $0x10] sm:$0xff]
    %v2618 = vld [vmem:[%s386 + $0x18] sm:$0xff]
    %v2619 = vld [vmem:[#allocation9] sm:$0xff]
    %v2620 = vld [vmem:[#allocation9 + $0x8] sm:$0xff]
    %v2621 = vld [vmem:[#allocation9 + $0x10] sm:$0xff]
    %v2622 = vld [vmem:[#allocation9 + $0x18] sm:$0xff]
    %v2623 = vld [vmem:[#allocation9 + $0x20] sm:$0xff]
    %v2624 = vld [vmem:[#allocation9 + $0x28] sm:$0xff]
    %v2625 = vld [vmem:[#allocation9 + $0x30] sm:$0xff]
    %v2626 = vld [vmem:[#allocation9 + $0x38] sm:$0xff]
    %v2627 = vld [vmem:[#allocation9 + $0x40] sm:$0xff]
    %v2628 = vld [vmem:[#allocation9 + $0x48] sm:$0xff]
    %v2629 = vld [vmem:[#allocation9 + $0x50] sm:$0xff]
    %v2630 = vld [vmem:[#allocation9 + $0x58] sm:$0xff]
    %v2631 = vld [vmem:[#allocation9 + $0x60] sm:$0xff]
    %v2632 = vld [vmem:[#allocation9 + $0x68] sm:$0xff]
    %v2633 = vld [vmem:[#allocation9 + $0x70] sm:$0xff]
    %v2634 = vld [vmem:[#allocation9 + $0x78] sm:$0xff]
    %v2635 = vld [vmem:[#allocation9 + $0x80] sm:$0xff]
    %v2636 = vld [vmem:[#allocation9 + $0x88] sm:$0xff]
    %v2637 = vld [vmem:[#allocation9 + $0x90] sm:$0xff]
    %v2638 = vld [vmem:[#allocation9 + $0x98] sm:$0xff]
    %v2639 = vld [vmem:[#allocation9 + $0xa0] sm:$0xff]
    %v2640 = vld [vmem:[#allocation9 + $0xa8] sm:$0xff]
    %v2641 = vld [vmem:[#allocation9 + $0xb0] sm:$0xff]
    %v2642 = vld [vmem:[#allocation9 + $0xb8] sm:$0xff]
    %v2643 = vld [vmem:[#allocation9 + $0xc0] sm:$0xff]
    %v2644 = vld [vmem:[#allocation9 + $0xc8] sm:$0xff]
    %v2645 = vld [vmem:[#allocation9 + $0xd0] sm:$0xff]
    %v2646 = vld [vmem:[#allocation9 + $0xd8] sm:$0xff]
    %v2647 = vld [vmem:[#allocation9 + $0xe0] sm:$0xff]
    %v2648 = vld [vmem:[#allocation9 + $0xe8] sm:$0xff]
    %v2649 = vld [vmem:[#allocation9 + $0xf0] sm:$0xff]
    %v2650 = vld [vmem:[#allocation9 + $0xf8] sm:$0xff]
    %v2651 = vld [vmem:[#allocation9 + $0x100] sm:$0xff]
    %v2652 = vld [vmem:[#allocation9 + $0x108] sm:$0xff]
    %v2653 = vld [vmem:[#allocation9 + $0x110] sm:$0xff]
    %v2654 = vld [vmem:[#allocation9 + $0x118] sm:$0xff]
    %v2655 = vld [vmem:[#allocation9 + $0x120] sm:$0xff]
    %v2656 = vld [vmem:[#allocation9 + $0x128] sm:$0xff]
    %v2657 = vld [vmem:[#allocation9 + $0x130] sm:$0xff]
    %v2658 = vld [vmem:[#allocation9 + $0x138] sm:$0xff]
    %v2659 = vld [vmem:[#allocation9 + $0x140] sm:$0xff]
    %v2660 = vld [vmem:[#allocation9 + $0x148] sm:$0xff]
    %v2661 = vld [vmem:[#allocation9 + $0x150] sm:$0xff]
    %v2662 = vld [vmem:[#allocation9 + $0x158] sm:$0xff]
    %v2663 = vld [vmem:[#allocation9 + $0x160] sm:$0xff]
    %v2664 = vld [vmem:[#allocation9 + $0x168] sm:$0xff]
    %v2665 = vld [vmem:[#allocation9 + $0x170] sm:$0xff]
    %v2666 = vld [vmem:[#allocation9 + $0x178] sm:$0xff]
    %v2667 = vld [vmem:[#allocation9 + $0x180] sm:$0xff]
    %v2668 = vld [vmem:[#allocation9 + $0x188] sm:$0xff]
    %v2669 = vld [vmem:[#allocation9 + $0x190] sm:$0xff]
    %v2670 = vld [vmem:[#allocation9 + $0x198] sm:$0xff]
    %v2671 = vld [vmem:[#allocation9 + $0x1a0] sm:$0xff]
    %v2672 = vld [vmem:[#allocation9 + $0x1a8] sm:$0xff]
    %v2673 = vld [vmem:[#allocation9 + $0x1b0] sm:$0xff]
    %v2674 = vld [vmem:[#allocation9 + $0x1b8] sm:$0xff]
    %v2675 = vld [vmem:[#allocation9 + $0x1c0] sm:$0xff]
    %v2676 = vld [vmem:[#allocation9 + $0x1c8] sm:$0xff]
    %v2677 = vld [vmem:[#allocation9 + $0x1d0] sm:$0xff]
    %v2678 = vld [vmem:[#allocation9 + $0x1d8] sm:$0xff]
    %v2679 = vld [vmem:[#allocation9 + $0x1e0] sm:$0xff]
    %v2680 = vld [vmem:[#allocation9 + $0x1e8] sm:$0xff]
    %v2681 = vld [vmem:[#allocation9 + $0x1f0] sm:$0xff]
    %v2682 = vld [vmem:[#allocation9 + $0x1f8] sm:$0xff]
    %2683 = vmatprep.subr.mxu0 %v2680
    %2684 = vmatpush1.msra.mxu0 %v2679
    %2685 = vmatprep.subr.mxu0 %v2676
    %2686 = vmatpush1.msra.mxu0 %v2675
    %2687 = vmatprep.subr.mxu0 %v2672
    %2688 = vmatpush1.msra.mxu0 %v2671
    %2689 = vmatprep.subr.mxu0 %v2668
    %2690 = vmatpush1.msra.mxu0 %v2667
    %2691 = vmatprep.subr.mxu0 %v2664
    %2692 = vmatpush1.msra.mxu0 %v2663
    %2693 = vmatprep.subr.mxu0 %v2660
    %2694 = vmatpush1.msra.mxu0 %v2659
    %2695 = vmatprep.subr.mxu0 %v2656
    %2696 = vmatpush1.msra.mxu0 %v2655
    %2697 = vmatprep.subr.mxu0 %v2652
    %2698 = vmatpush1.msra.mxu0 %v2651
    %2699 = vmatprep.subr.mxu0 %v2648
    %2700 = vmatpush1.msra.mxu0 %v2647
    %2701 = vmatprep.subr.mxu0 %v2644
    %2702 = vmatpush1.msra.mxu0 %v2643
    %2703 = vmatprep.subr.mxu0 %v2640
    %2704 = vmatpush1.msra.mxu0 %v2639
    %2705 = vmatprep.subr.mxu0 %v2636
    %2706 = vmatpush1.msra.mxu0 %v2635
    %2707 = vmatprep.subr.mxu0 %v2632
    %2708 = vmatpush1.msra.mxu0 %v2631
    %2709 = vmatprep.subr.mxu0 %v2628
    %2710 = vmatpush1.msra.mxu0 %v2627
    %2711 = vmatprep.subr.mxu0 %v2624
    %2712 = vmatpush1.msra.mxu0 %v2623
    %2713 = vmatprep.subr.mxu0 %v2620
    %2714 = vmatpush1.msra.mxu0 %v2619
    %2715 = vmatprep.subr.mxu0 0.0
    %2716 = vmatpush2.msra.mxu0 0.0
    %2717 = vmatprep.subr.mxu0 0.0
    %2718 = vmatpush2.msra.mxu0 0.0
    %2719 = vmatprep.subr.mxu0 0.0
    %2720 = vmatpush2.msra.mxu0 0.0
    %2721 = vmatprep.subr.mxu0 0.0
    %2722 = vmatpush2.msra.mxu0 0.0
    %2723 = vmatprep.subr.mxu0 0.0
    %2724 = vmatpush2.msra.mxu0 0.0
    %2725 = vmatprep.subr.mxu0 0.0
    %2726 = vmatpush2.msra.mxu0 0.0
    %2727 = vmatprep.subr.mxu0 0.0
    %2728 = vmatpush2.msra.mxu0 0.0
    %2729 = vmatprep.subr.mxu0 0.0
    %2730 = vmatpush2.msra.mxu0 0.0
    %2731 = vmatprep.subr.mxu0 0.0
    %2732 = vmatpush2.msra.mxu0 0.0
    %2733 = vmatprep.subr.mxu0 0.0
    %2734 = vmatpush2.msra.mxu0 0.0
    %2735 = vmatprep.subr.mxu0 0.0
    %2736 = vmatpush2.msra.mxu0 0.0
    %2737 = vmatprep.subr.mxu0 0.0
    %2738 = vmatpush2.msra.mxu0 0.0
    %2739 = vmatprep.subr.mxu0 0.0
    %2740 = vmatpush2.msra.mxu0 0.0
    %2741 = vmatprep.subr.mxu0 0.0
    %2742 = vmatpush2.msra.mxu0 0.0
    %2743 = vmatprep.subr.mxu0 0.0
    %2744 = vmatpush2.msra.mxu0 0.0
    %2745 = vmatprep.subr.mxu0 0.0
    %2746 = vmatpush2.msra.mxu0 0.0
    %2747 = vmatprep.mubr.f32.mxu0 0.0
    %2748 = vmatmul.mubr.f32.gmra.mxu0 %v2612
    %v2749 = vpop.f32.mrf.mxu0
    %v2750 = vadd.f32 0.0, %v2749
    %v2751 = vpop.f32.mrf.mxu0
    %v2752 = vadd.f32 0.0, %v2751
    %2753 = vdwg.mxu0
    %2754 = vmatprep.subr.mxu0 %v2682
    %2755 = vmatpush1.msra.mxu0 %v2681
    %2756 = vmatprep.subr.mxu0 %v2678
    %2757 = vmatpush1.msra.mxu0 %v2677
    %2758 = vmatprep.subr.mxu0 %v2674
    %2759 = vmatpush1.msra.mxu0 %v2673
    %2760 = vmatprep.subr.mxu0 %v2670
    %2761 = vmatpush1.msra.mxu0 %v2669
    %2762 = vmatprep.subr.mxu0 %v2666
    %2763 = vmatpush1.msra.mxu0 %v2665
    %2764 = vmatprep.subr.mxu0 %v2662
    %2765 = vmatpush1.msra.mxu0 %v2661
    %2766 = vmatprep.subr.mxu0 %v2658
    %2767 = vmatpush1.msra.mxu0 %v2657
    %2768 = vmatprep.subr.mxu0 %v2654
    %2769 = vmatpush1.msra.mxu0 %v2653
    %2770 = vmatprep.subr.mxu0 %v2650
    %2771 = vmatpush1.msra.mxu0 %v2649
    %2772 = vmatprep.subr.mxu0 %v2646
    %2773 = vmatpush1.msra.mxu0 %v2645
    %2774 = vmatprep.subr.mxu0 %v2642
    %2775 = vmatpush1.msra.mxu0 %v2641
    %2776 = vmatprep.subr.mxu0 %v2638
    %2777 = vmatpush1.msra.mxu0 %v2637
    %2778 = vmatprep.subr.mxu0 %v2634
    %2779 = vmatpush1.msra.mxu0 %v2633
    %2780 = vmatprep.subr.mxu0 %v2630
    %2781 = vmatpush1.msra.mxu0 %v2629
    %2782 = vmatprep.subr.mxu0 %v2626
    %2783 = vmatpush1.msra.mxu0 %v2625
    %2784 = vmatprep.subr.mxu0 %v2622
    %2785 = vmatpush1.msra.mxu0 %v2621
    %2786 = vmatprep.subr.mxu0 0.0
    %2787 = vmatpush2.msra.mxu0 0.0
    %2788 = vmatprep.subr.mxu0 0.0
    %2789 = vmatpush2.msra.mxu0 0.0
    %2790 = vmatprep.subr.mxu0 0.0
    %2791 = vmatpush2.msra.mxu0 0.0
    %2792 = vmatprep.subr.mxu0 0.0
    %2793 = vmatpush2.msra.mxu0 0.0
    %2794 = vmatprep.subr.mxu0 0.0
    %2795 = vmatpush2.msra.mxu0 0.0
    %2796 = vmatprep.subr.mxu0 0.0
    %2797 = vmatpush2.msra.mxu0 0.0
    %2798 = vmatprep.subr.mxu0 0.0
    %2799 = vmatpush2.msra.mxu0 0.0
    %2800 = vmatprep.subr.mxu0 0.0
    %2801 = vmatpush2.msra.mxu0 0.0
    %2802 = vmatprep.subr.mxu0 0.0
    %2803 = vmatpush2.msra.mxu0 0.0
    %2804 = vmatprep.subr.mxu0 0.0
    %2805 = vmatpush2.msra.mxu0 0.0
    %2806 = vmatprep.subr.mxu0 0.0
    %2807 = vmatpush2.msra.mxu0 0.0
    %2808 = vmatprep.subr.mxu0 0.0
    %2809 = vmatpush2.msra.mxu0 0.0
    %2810 = vmatprep.subr.mxu0 0.0
    %2811 = vmatpush2.msra.mxu0 0.0
    %2812 = vmatprep.subr.mxu0 0.0
    %2813 = vmatpush2.msra.mxu0 0.0
    %2814 = vmatprep.subr.mxu0 0.0
    %2815 = vmatpush2.msra.mxu0 0.0
    %2816 = vmatprep.subr.mxu0 0.0
    %2817 = vmatpush2.msra.mxu0 0.0
    %2818 = vmatprep.mubr.f32.mxu0 0.0
    %2819 = vmatmul.mubr.f32.gmra.mxu0 %v2612
    %v2820 = vpop.f32.mrf.mxu0
    %v2821 = vadd.f32 0.0, %v2820
    %v2822 = vpop.f32.mrf.mxu0
    %v2823 = vadd.f32 0.0, %v2822
    %2824 = vdwg.mxu0
    %v2825 = vadd.f32 %v2615, %v2750
    %v2826 = vadd.f32 %v2616, %v2752
    %v2827 = vadd.f32 %v2617, %v2821
    %v2828 = vadd.f32 %v2618, %v2823
    %v2829 = vmul.f32 %v2825, 0.5
    %v2830 = vmul.f32 %v2826, 0.5
    %v2831 = vmul.f32 %v2827, 0.5
    %v2832 = vtanh.pop %v2829
    %v2833 = vtanh.pop %v2830
    %v2834 = vtanh.pop %v2831
    %v2835 = vadd.f32 %v2832, 1.0
    %v2836 = vadd.f32 %v2833, 1.0
    %v2837 = vadd.f32 %v2834, 1.0
    %v2838 = vmul.f32 %v2835, 0.5
    %v2839 = vmul.f32 %v2836, 0.5
    %v2840 = vmul.f32 %v2837, 0.5
    %v2841 = vtanh.pop %v2828
    %v2842 = vmul.f32 %v2839, %v2614
    %v2843 = vmul.f32 %v2838, %v2841
    %v2844 = vadd.f32 %v2842, %v2843
    %v2845 = vtanh.pop %v2844
    %v2846 = vmul.f32 %v2840, %v2845
    %2847 = vst [vmem:[#allocation11] sm:$0xff] %v2846
    %v2848 = vld [vmem:[%s622] sm:$0xff]
    %v2849 = vld [vmem:[%s622 + $0x8] sm:$0xff]
    %v2850 = vld [vmem:[%s622 + $0x10] sm:$0xff]
    %v2851 = vld [vmem:[%s622 + $0x18] sm:$0xff]
    %v2852 = vld [vmem:[#allocation9] sm:$0xff]
    %v2853 = vld [vmem:[#allocation9 + $0x8] sm:$0xff]
    %v2854 = vld [vmem:[#allocation9 + $0x10] sm:$0xff]
    %v2855 = vld [vmem:[#allocation9 + $0x18] sm:$0xff]
    %v2856 = vld [vmem:[#allocation9 + $0x20] sm:$0xff]
    %v2857 = vld [vmem:[#allocation9 + $0x28] sm:$0xff]
    %v2858 = vld [vmem:[#allocation9 + $0x30] sm:$0xff]
    %v2859 = vld [vmem:[#allocation9 + $0x38] sm:$0xff]
    %v2860 = vld [vmem:[#allocation9 + $0x40] sm:$0xff]
    %v2861 = vld [vmem:[#allocation9 + $0x48] sm:$0xff]
    %v2862 = vld [vmem:[#allocation9 + $0x50] sm:$0xff]
    %v2863 = vld [vmem:[#allocation9 + $0x58] sm:$0xff]
    %v2864 = vld [vmem:[#allocation9 + $0x60] sm:$0xff]
    %v2865 = vld [vmem:[#allocation9 + $0x68] sm:$0xff]
    %v2866 = vld [vmem:[#allocation9 + $0x70] sm:$0xff]
    %v2867 = vld [vmem:[#allocation9 + $0x78] sm:$0xff]
    %v2868 = vld [vmem:[#allocation9 + $0x80] sm:$0xff]
    %v2869 = vld [vmem:[#allocation9 + $0x88] sm:$0xff]
    %v2870 = vld [vmem:[#allocation9 + $0x90] sm:$0xff]
    %v2871 = vld [vmem:[#allocation9 + $0x98] sm:$0xff]
    %v2872 = vld [vmem:[#allocation9 + $0xa0] sm:$0xff]
    %v2873 = vld [vmem:[#allocation9 + $0xa8] sm:$0xff]
    %v2874 = vld [vmem:[#allocation9 + $0xb0] sm:$0xff]
    %v2875 = vld [vmem:[#allocation9 + $0xb8] sm:$0xff]
    %v2876 = vld [vmem:[#allocation9 + $0xc0] sm:$0xff]
    %v2877 = vld [vmem:[#allocation9 + $0xc8] sm:$0xff]
    %v2878 = vld [vmem:[#allocation9 + $0xd0] sm:$0xff]
    %v2879 = vld [vmem:[#allocation9 + $0xd8] sm:$0xff]
    %v2880 = vld [vmem:[#allocation9 + $0xe0] sm:$0xff]
    %v2881 = vld [vmem:[#allocation9 + $0xe8] sm:$0xff]
    %v2882 = vld [vmem:[#allocation9 + $0xf0] sm:$0xff]
    %v2883 = vld [vmem:[#allocation9 + $0xf8] sm:$0xff]
    %v2884 = vld [vmem:[#allocation9 + $0x100] sm:$0xff]
    %v2885 = vld [vmem:[#allocation9 + $0x108] sm:$0xff]
    %v2886 = vld [vmem:[#allocation9 + $0x110] sm:$0xff]
    %v2887 = vld [vmem:[#allocation9 + $0x118] sm:$0xff]
    %v2888 = vld [vmem:[#allocation9 + $0x120] sm:$0xff]
    %v2889 = vld [vmem:[#allocation9 + $0x128] sm:$0xff]
    %v2890 = vld [vmem:[#allocation9 + $0x130] sm:$0xff]
    %v2891 = vld [vmem:[#allocation9 + $0x138] sm:$0xff]
    %v2892 = vld [vmem:[#allocation9 + $0x140] sm:$0xff]
    %v2893 = vld [vmem:[#allocation9 + $0x148] sm:$0xff]
    %v2894 = vld [vmem:[#allocation9 + $0x150] sm:$0xff]
    %v2895 = vld [vmem:[#allocation9 + $0x158] sm:$0xff]
    %v2896 = vld [vmem:[#allocation9 + $0x160] sm:$0xff]
    %v2897 = vld [vmem:[#allocation9 + $0x168] sm:$0xff]
    %v2898 = vld [vmem:[#allocation9 + $0x170] sm:$0xff]
    %v2899 = vld [vmem:[#allocation9 + $0x178] sm:$0xff]
    %v2900 = vld [vmem:[#allocation9 + $0x180] sm:$0xff]
    %v2901 = vld [vmem:[#allocation9 + $0x188] sm:$0xff]
    %v2902 = vld [vmem:[#allocation9 + $0x190] sm:$0xff]
    %v2903 = vld [vmem:[#allocation9 + $0x198] sm:$0xff]
    %v2904 = vld [vmem:[#allocation9 + $0x1a0] sm:$0xff]
    %v2905 = vld [vmem:[#allocation9 + $0x1a8] sm:$0xff]
    %v2906 = vld [vmem:[#allocation9 + $0x1b0] sm:$0xff]
    %v2907 = vld [vmem:[#allocation9 + $0x1b8] sm:$0xff]
    %v2908 = vld [vmem:[#allocation9 + $0x1c0] sm:$0xff]
    %v2909 = vld [vmem:[#allocation9 + $0x1c8] sm:$0xff]
    %v2910 = vld [vmem:[#allocation9 + $0x1d0] sm:$0xff]
    %v2911 = vld [vmem:[#allocation9 + $0x1d8] sm:$0xff]
    %v2912 = vld [vmem:[#allocation9 + $0x1e0] sm:$0xff]
    %v2913 = vld [vmem:[#allocation9 + $0x1e8] sm:$0xff]
    %v2914 = vld [vmem:[#allocation9 + $0x1f0] sm:$0xff]
    %v2915 = vld [vmem:[#allocation9 + $0x1f8] sm:$0xff]
    %2916 = vmatprep.subr.mxu0 %v2913
    %2917 = vmatpush1.msra.mxu0 %v2912
    %2918 = vmatprep.subr.mxu0 %v2909
    %2919 = vmatpush1.msra.mxu0 %v2908
    %2920 = vmatprep.subr.mxu0 %v2905
    %2921 = vmatpush1.msra.mxu0 %v2904
    %2922 = vmatprep.subr.mxu0 %v2901
    %2923 = vmatpush1.msra.mxu0 %v2900
    %2924 = vmatprep.subr.mxu0 %v2897
    %2925 = vmatpush1.msra.mxu0 %v2896
    %2926 = vmatprep.subr.mxu0 %v2893
    %2927 = vmatpush1.msra.mxu0 %v2892
    %2928 = vmatprep.subr.mxu0 %v2889
    %2929 = vmatpush1.msra.mxu0 %v2888
    %2930 = vmatprep.subr.mxu0 %v2885
    %2931 = vmatpush1.msra.mxu0 %v2884
    %2932 = vmatprep.subr.mxu0 %v2881
    %2933 = vmatpush1.msra.mxu0 %v2880
    %2934 = vmatprep.subr.mxu0 %v2877
    %2935 = vmatpush1.msra.mxu0 %v2876
    %2936 = vmatprep.subr.mxu0 %v2873
    %2937 = vmatpush1.msra.mxu0 %v2872
    %2938 = vmatprep.subr.mxu0 %v2869
    %2939 = vmatpush1.msra.mxu0 %v2868
    %2940 = vmatprep.subr.mxu0 %v2865
    %2941 = vmatpush1.msra.mxu0 %v2864
    %2942 = vmatprep.subr.mxu0 %v2861
    %2943 = vmatpush1.msra.mxu0 %v2860
    %2944 = vmatprep.subr.mxu0 %v2857
    %2945 = vmatpush1.msra.mxu0 %v2856
    %2946 = vmatprep.subr.mxu0 %v2853
    %2947 = vmatpush1.msra.mxu0 %v2852
    %2948 = vmatprep.subr.mxu0 0.0
    %2949 = vmatpush2.msra.mxu0 0.0
    %2950 = vmatprep.subr.mxu0 0.0
    %2951 = vmatpush2.msra.mxu0 0.0
    %2952 = vmatprep.subr.mxu0 0.0
    %2953 = vmatpush2.msra.mxu0 0.0
    %2954 = vmatprep.subr.mxu0 0.0
    %2955 = vmatpush2.msra.mxu0 0.0
    %2956 = vmatprep.subr.mxu0 0.0
    %2957 = vmatpush2.msra.mxu0 0.0
    %2958 = vmatprep.subr.mxu0 0.0
    %2959 = vmatpush2.msra.mxu0 0.0
    %2960 = vmatprep.subr.mxu0 0.0
    %2961 = vmatpush2.msra.mxu0 0.0
    %2962 = vmatprep.subr.mxu0 0.0
    %2963 = vmatpush2.msra.mxu0 0.0
    %2964 = vmatprep.subr.mxu0 0.0
    %2965 = vmatpush2.msra.mxu0 0.0
    %2966 = vmatprep.subr.mxu0 0.0
    %2967 = vmatpush2.msra.mxu0 0.0
    %2968 = vmatprep.subr.mxu0 0.0
    %2969 = vmatpush2.msra.mxu0 0.0
    %2970 = vmatprep.subr.mxu0 0.0
    %2971 = vmatpush2.msra.mxu0 0.0
    %2972 = vmatprep.subr.mxu0 0.0
    %2973 = vmatpush2.msra.mxu0 0.0
    %2974 = vmatprep.subr.mxu0 0.0
    %2975 = vmatpush2.msra.mxu0 0.0
    %2976 = vmatprep.subr.mxu0 0.0
    %2977 = vmatpush2.msra.mxu0 0.0
    %2978 = vmatprep.subr.mxu0 0.0
    %2979 = vmatpush2.msra.mxu0 0.0
    %2980 = vmatprep.mubr.f32.mxu0 0.0
    %2981 = vmatmul.mubr.f32.gmra.mxu0 %v2846
    %v2982 = vpop.f32.mrf.mxu0
    %v2983 = vadd.f32 0.0, %v2982
    %v2984 = vpop.f32.mrf.mxu0
    %v2985 = vadd.f32 0.0, %v2984
    %2986 = vdwg.mxu0
    %2987 = vmatprep.subr.mxu0 %v2915
    %2988 = vmatpush1.msra.mxu0 %v2914
    %2989 = vmatprep.subr.mxu0 %v2911
    %2990 = vmatpush1.msra.mxu0 %v2910
    %2991 = vmatprep.subr.mxu0 %v2907
    %2992 = vmatpush1.msra.mxu0 %v2906
    %2993 = vmatprep.subr.mxu0 %v2903
    %2994 = vmatpush1.msra.mxu0 %v2902
    %2995 = vmatprep.subr.mxu0 %v2899
    %2996 = vmatpush1.msra.mxu0 %v2898
    %2997 = vmatprep.subr.mxu0 %v2895
    %2998 = vmatpush1.msra.mxu0 %v2894
    %2999 = vmatprep.subr.mxu0 %v2891
    %3000 = vmatpush1.msra.mxu0 %v2890
    %3001 = vmatprep.subr.mxu0 %v2887
    %3002 = vmatpush1.msra.mxu0 %v2886
    %3003 = vmatprep.subr.mxu0 %v2883
    %3004 = vmatpush1.msra.mxu0 %v2882
    %3005 = vmatprep.subr.mxu0 %v2879
    %3006 = vmatpush1.msra.mxu0 %v2878
    %3007 = vmatprep.subr.mxu0 %v2875
    %3008 = vmatpush1.msra.mxu0 %v2874
    %3009 = vmatprep.subr.mxu0 %v2871
    %3010 = vmatpush1.msra.mxu0 %v2870
    %3011 = vmatprep.subr.mxu0 %v2867
    %3012 = vmatpush1.msra.mxu0 %v2866
    %3013 = vmatprep.subr.mxu0 %v2863
    %3014 = vmatpush1.msra.mxu0 %v2862
    %3015 = vmatprep.subr.mxu0 %v2859
    %3016 = vmatpush1.msra.mxu0 %v2858
    %3017 = vmatprep.subr.mxu0 %v2855
    %3018 = vmatpush1.msra.mxu0 %v2854
    %3019 = vmatprep.subr.mxu0 0.0
    %3020 = vmatpush2.msra.mxu0 0.0
    %3021 = vmatprep.subr.mxu0 0.0
    %3022 = vmatpush2.msra.mxu0 0.0
    %3023 = vmatprep.subr.mxu0 0.0
    %3024 = vmatpush2.msra.mxu0 0.0
    %3025 = vmatprep.subr.mxu0 0.0
    %3026 = vmatpush2.msra.mxu0 0.0
    %3027 = vmatprep.subr.mxu0 0.0
    %3028 = vmatpush2.msra.mxu0 0.0
    %3029 = vmatprep.subr.mxu0 0.0
    %3030 = vmatpush2.msra.mxu0 0.0
    %3031 = vmatprep.subr.mxu0 0.0
    %3032 = vmatpush2.msra.mxu0 0.0
    %3033 = vmatprep.subr.mxu0 0.0
    %3034 = vmatpush2.msra.mxu0 0.0
    %3035 = vmatprep.subr.mxu0 0.0
    %3036 = vmatpush2.msra.mxu0 0.0
    %3037 = vmatprep.subr.mxu0 0.0
    %3038 = vmatpush2.msra.mxu0 0.0
    %3039 = vmatprep.subr.mxu0 0.0
    %3040 = vmatpush2.msra.mxu0 0.0
    %3041 = vmatprep.subr.mxu0 0.0
    %3042 = vmatpush2.msra.mxu0 0.0
    %3043 = vmatprep.subr.mxu0 0.0
    %3044 = vmatpush2.msra.mxu0 0.0
    %3045 = vmatprep.subr.mxu0 0.0
    %3046 = vmatpush2.msra.mxu0 0.0
    %3047 = vmatprep.subr.mxu0 0.0
    %3048 = vmatpush2.msra.mxu0 0.0
    %3049 = vmatprep.subr.mxu0 0.0
    %3050 = vmatpush2.msra.mxu0 0.0
    %3051 = vmatprep.mubr.f32.mxu0 0.0
    %3052 = vmatmul.mubr.f32.gmra.mxu0 %v2846
    %v3053 = vpop.f32.mrf.mxu0
    %v3054 = vadd.f32 0.0, %v3053
    %v3055 = vpop.f32.mrf.mxu0
    %v3056 = vadd.f32 0.0, %v3055
    %3057 = vdwg.mxu0
    %v3058 = vadd.f32 %v2848, %v2983
    %v3059 = vadd.f32 %v2849, %v2985
    %v3060 = vadd.f32 %v2850, %v3054
    %v3061 = vadd.f32 %v2851, %v3056
    %v3062 = vmul.f32 %v3058, 0.5
    %v3063 = vmul.f32 %v3059, 0.5
    %v3064 = vmul.f32 %v3060, 0.5
    %v3065 = vtanh.pop %v3062
    %v3066 = vtanh.pop %v3063
    %v3067 = vtanh.pop %v3064
    %v3068 = vadd.f32 %v3065, 1.0
    %v3069 = vadd.f32 %v3066, 1.0
    %v3070 = vadd.f32 %v3067, 1.0
    %v3071 = vmul.f32 %v3068, 0.5
    %v3072 = vmul.f32 %v3069, 0.5
    %v3073 = vmul.f32 %v3070, 0.5
    %v3074 = vtanh.pop %v3061
    %v3075 = vmul.f32 %v3072, %v2844
    %v3076 = vmul.f32 %v3071, %v3074
    %v3077 = vadd.f32 %v3075, %v3076
    %v3078 = vtanh.pop %v3077
    %v3079 = vmul.f32 %v3073, %v3078
    %s3080 = scalar_lea.vmem [#allocation11], 8
    %3081 = vst [vmem:[%s3080] sm:$0xff] %v3079
    %v3082 = vld [vmem:[%s859] sm:$0xff]
    %v3083 = vld [vmem:[%s859 + $0x8] sm:$0xff]
    %v3084 = vld [vmem:[%s859 + $0x10] sm:$0xff]
    %v3085 = vld [vmem:[%s859 + $0x18] sm:$0xff]
    %v3086 = vld [vmem:[#allocation9] sm:$0xff]
    %v3087 = vld [vmem:[#allocation9 + $0x8] sm:$0xff]
    %v3088 = vld [vmem:[#allocation9 + $0x10] sm:$0xff]
    %v3089 = vld [vmem:[#allocation9 + $0x18] sm:$0xff]
    %v3090 = vld [vmem:[#allocation9 + $0x20] sm:$0xff]
    %v3091 = vld [vmem:[#allocation9 + $0x28] sm:$0xff]
    %v3092 = vld [vmem:[#allocation9 + $0x30] sm:$0xff]
    %v3093 = vld [vmem:[#allocation9 + $0x38] sm:$0xff]
    %v3094 = vld [vmem:[#allocation9 + $0x40] sm:$0xff]
    %v3095 = vld [vmem:[#allocation9 + $0x48] sm:$0xff]
    %v3096 = vld [vmem:[#allocation9 + $0x50] sm:$0xff]
    %v3097 = vld [vmem:[#allocation9 + $0x58] sm:$0xff]
    %v3098 = vld [vmem:[#allocation9 + $0x60] sm:$0xff]
    %v3099 = vld [vmem:[#allocation9 + $0x68] sm:$0xff]
    %v3100 = vld [vmem:[#allocation9 + $0x70] sm:$0xff]
    %v3101 = vld [vmem:[#allocation9 + $0x78] sm:$0xff]
    %v3102 = vld [vmem:[#allocation9 + $0x80] sm:$0xff]
    %v3103 = vld [vmem:[#allocation9 + $0x88] sm:$0xff]
    %v3104 = vld [vmem:[#allocation9 + $0x90] sm:$0xff]
    %v3105 = vld [vmem:[#allocation9 + $0x98] sm:$0xff]
    %v3106 = vld [vmem:[#allocation9 + $0xa0] sm:$0xff]
    %v3107 = vld [vmem:[#allocation9 + $0xa8] sm:$0xff]
    %v3108 = vld [vmem:[#allocation9 + $0xb0] sm:$0xff]
    %v3109 = vld [vmem:[#allocation9 + $0xb8] sm:$0xff]
    %v3110 = vld [vmem:[#allocation9 + $0xc0] sm:$0xff]
    %v3111 = vld [vmem:[#allocation9 + $0xc8] sm:$0xff]
    %v3112 = vld [vmem:[#allocation9 + $0xd0] sm:$0xff]
    %v3113 = vld [vmem:[#allocation9 + $0xd8] sm:$0xff]
    %v3114 = vld [vmem:[#allocation9 + $0xe0] sm:$0xff]
    %v3115 = vld [vmem:[#allocation9 + $0xe8] sm:$0xff]
    %v3116 = vld [vmem:[#allocation9 + $0xf0] sm:$0xff]
    %v3117 = vld [vmem:[#allocation9 + $0xf8] sm:$0xff]
    %v3118 = vld [vmem:[#allocation9 + $0x100] sm:$0xff]
    %v3119 = vld [vmem:[#allocation9 + $0x108] sm:$0xff]
    %v3120 = vld [vmem:[#allocation9 + $0x110] sm:$0xff]
    %v3121 = vld [vmem:[#allocation9 + $0x118] sm:$0xff]
    %v3122 = vld [vmem:[#allocation9 + $0x120] sm:$0xff]
    %v3123 = vld [vmem:[#allocation9 + $0x128] sm:$0xff]
    %v3124 = vld [vmem:[#allocation9 + $0x130] sm:$0xff]
    %v3125 = vld [vmem:[#allocation9 + $0x138] sm:$0xff]
    %v3126 = vld [vmem:[#allocation9 + $0x140] sm:$0xff]
    %v3127 = vld [vmem:[#allocation9 + $0x148] sm:$0xff]
    %v3128 = vld [vmem:[#allocation9 + $0x150] sm:$0xff]
    %v3129 = vld [vmem:[#allocation9 + $0x158] sm:$0xff]
    %v3130 = vld [vmem:[#allocation9 + $0x160] sm:$0xff]
    %v3131 = vld [vmem:[#allocation9 + $0x168] sm:$0xff]
    %v3132 = vld [vmem:[#allocation9 + $0x170] sm:$0xff]
    %v3133 = vld [vmem:[#allocation9 + $0x178] sm:$0xff]
    %v3134 = vld [vmem:[#allocation9 + $0x180] sm:$0xff]
    %v3135 = vld [vmem:[#allocation9 + $0x188] sm:$0xff]
    %v3136 = vld [vmem:[#allocation9 + $0x190] sm:$0xff]
    %v3137 = vld [vmem:[#allocation9 + $0x198] sm:$0xff]
    %v3138 = vld [vmem:[#allocation9 + $0x1a0] sm:$0xff]
    %v3139 = vld [vmem:[#allocation9 + $0x1a8] sm:$0xff]
    %v3140 = vld [vmem:[#allocation9 + $0x1b0] sm:$0xff]
    %v3141 = vld [vmem:[#allocation9 + $0x1b8] sm:$0xff]
    %v3142 = vld [vmem:[#allocation9 + $0x1c0] sm:$0xff]
    %v3143 = vld [vmem:[#allocation9 + $0x1c8] sm:$0xff]
    %v3144 = vld [vmem:[#allocation9 + $0x1d0] sm:$0xff]
    %v3145 = vld [vmem:[#allocation9 + $0x1d8] sm:$0xff]
    %v3146 = vld [vmem:[#allocation9 + $0x1e0] sm:$0xff]
    %v3147 = vld [vmem:[#allocation9 + $0x1e8] sm:$0xff]
    %v3148 = vld [vmem:[#allocation9 + $0x1f0] sm:$0xff]
    %v3149 = vld [vmem:[#allocation9 + $0x1f8] sm:$0xff]
    %3150 = vmatprep.subr.mxu0 %v3147
    %3151 = vmatpush1.msra.mxu0 %v3146
    %3152 = vmatprep.subr.mxu0 %v3143
    %3153 = vmatpush1.msra.mxu0 %v3142
    %3154 = vmatprep.subr.mxu0 %v3139
    %3155 = vmatpush1.msra.mxu0 %v3138
    %3156 = vmatprep.subr.mxu0 %v3135
    %3157 = vmatpush1.msra.mxu0 %v3134
    %3158 = vmatprep.subr.mxu0 %v3131
    %3159 = vmatpush1.msra.mxu0 %v3130
    %3160 = vmatprep.subr.mxu0 %v3127
    %3161 = vmatpush1.msra.mxu0 %v3126
    %3162 = vmatprep.subr.mxu0 %v3123
    %3163 = vmatpush1.msra.mxu0 %v3122
    %3164 = vmatprep.subr.mxu0 %v3119
    %3165 = vmatpush1.msra.mxu0 %v3118
    %3166 = vmatprep.subr.mxu0 %v3115
    %3167 = vmatpush1.msra.mxu0 %v3114
    %3168 = vmatprep.subr.mxu0 %v3111
    %3169 = vmatpush1.msra.mxu0 %v3110
    %3170 = vmatprep.subr.mxu0 %v3107
    %3171 = vmatpush1.msra.mxu0 %v3106
    %3172 = vmatprep.subr.mxu0 %v3103
    %3173 = vmatpush1.msra.mxu0 %v3102
    %3174 = vmatprep.subr.mxu0 %v3099
    %3175 = vmatpush1.msra.mxu0 %v3098
    %3176 = vmatprep.subr.mxu0 %v3095
    %3177 = vmatpush1.msra.mxu0 %v3094
    %3178 = vmatprep.subr.mxu0 %v3091
    %3179 = vmatpush1.msra.mxu0 %v3090
    %3180 = vmatprep.subr.mxu0 %v3087
    %3181 = vmatpush1.msra.mxu0 %v3086
    %3182 = vmatprep.subr.mxu0 0.0
    %3183 = vmatpush2.msra.mxu0 0.0
    %3184 = vmatprep.subr.mxu0 0.0
    %3185 = vmatpush2.msra.mxu0 0.0
    %3186 = vmatprep.subr.mxu0 0.0
    %3187 = vmatpush2.msra.mxu0 0.0
    %3188 = vmatprep.subr.mxu0 0.0
    %3189 = vmatpush2.msra.mxu0 0.0
    %3190 = vmatprep.subr.mxu0 0.0
    %3191 = vmatpush2.msra.mxu0 0.0
    %3192 = vmatprep.subr.mxu0 0.0
    %3193 = vmatpush2.msra.mxu0 0.0
    %3194 = vmatprep.subr.mxu0 0.0
    %3195 = vmatpush2.msra.mxu0 0.0
    %3196 = vmatprep.subr.mxu0 0.0
    %3197 = vmatpush2.msra.mxu0 0.0
    %3198 = vmatprep.subr.mxu0 0.0
    %3199 = vmatpush2.msra.mxu0 0.0
    %3200 = vmatprep.subr.mxu0 0.0
    %3201 = vmatpush2.msra.mxu0 0.0
    %3202 = vmatprep.subr.mxu0 0.0
    %3203 = vmatpush2.msra.mxu0 0.0
    %3204 = vmatprep.subr.mxu0 0.0
    %3205 = vmatpush2.msra.mxu0 0.0
    %3206 = vmatprep.subr.mxu0 0.0
    %3207 = vmatpush2.msra.mxu0 0.0
    %3208 = vmatprep.subr.mxu0 0.0
    %3209 = vmatpush2.msra.mxu0 0.0
    %3210 = vmatprep.subr.mxu0 0.0
    %3211 = vmatpush2.msra.mxu0 0.0
    %3212 = vmatprep.subr.mxu0 0.0
    %3213 = vmatpush2.msra.mxu0 0.0
    %3214 = vmatprep.mubr.f32.mxu0 0.0
    %3215 = vmatmul.mubr.f32.gmra.mxu0 %v3079
    %v3216 = vpop.f32.mrf.mxu0
    %v3217 = vadd.f32 0.0, %v3216
    %v3218 = vpop.f32.mrf.mxu0
    %v3219 = vadd.f32 0.0, %v3218
    %3220 = vdwg.mxu0
    %3221 = vmatprep.subr.mxu0 %v3149
    %3222 = vmatpush1.msra.mxu0 %v3148
    %3223 = vmatprep.subr.mxu0 %v3145
    %3224 = vmatpush1.msra.mxu0 %v3144
    %3225 = vmatprep.subr.mxu0 %v3141
    %3226 = vmatpush1.msra.mxu0 %v3140
    %3227 = vmatprep.subr.mxu0 %v3137
    %3228 = vmatpush1.msra.mxu0 %v3136
    %3229 = vmatprep.subr.mxu0 %v3133
    %3230 = vmatpush1.msra.mxu0 %v3132
    %3231 = vmatprep.subr.mxu0 %v3129
    %3232 = vmatpush1.msra.mxu0 %v3128
    %3233 = vmatprep.subr.mxu0 %v3125
    %3234 = vmatpush1.msra.mxu0 %v3124
    %3235 = vmatprep.subr.mxu0 %v3121
    %3236 = vmatpush1.msra.mxu0 %v3120
    %3237 = vmatprep.subr.mxu0 %v3117
    %3238 = vmatpush1.msra.mxu0 %v3116
    %3239 = vmatprep.subr.mxu0 %v3113
    %3240 = vmatpush1.msra.mxu0 %v3112
    %3241 = vmatprep.subr.mxu0 %v3109
    %3242 = vmatpush1.msra.mxu0 %v3108
    %3243 = vmatprep.subr.mxu0 %v3105
    %3244 = vmatpush1.msra.mxu0 %v3104
    %3245 = vmatprep.subr.mxu0 %v3101
    %3246 = vmatpush1.msra.mxu0 %v3100
    %3247 = vmatprep.subr.mxu0 %v3097
    %3248 = vmatpush1.msra.mxu0 %v3096
    %3249 = vmatprep.subr.mxu0 %v3093
    %3250 = vmatpush1.msra.mxu0 %v3092
    %3251 = vmatprep.subr.mxu0 %v3089
    %3252 = vmatpush1.msra.mxu0 %v3088
    %3253 = vmatprep.subr.mxu0 0.0
    %3254 = vmatpush2.msra.mxu0 0.0
    %3255 = vmatprep.subr.mxu0 0.0
    %3256 = vmatpush2.msra.mxu0 0.0
    %3257 = vmatprep.subr.mxu0 0.0
    %3258 = vmatpush2.msra.mxu0 0.0
    %3259 = vmatprep.subr.mxu0 0.0
    %3260 = vmatpush2.msra.mxu0 0.0
    %3261 = vmatprep.subr.mxu0 0.0
    %3262 = vmatpush2.msra.mxu0 0.0
    %3263 = vmatprep.subr.mxu0 0.0
    %3264 = vmatpush2.msra.mxu0 0.0
    %3265 = vmatprep.subr.mxu0 0.0
    %3266 = vmatpush2.msra.mxu0 0.0
    %3267 = vmatprep.subr.mxu0 0.0
    %3268 = vmatpush2.msra.mxu0 0.0
    %3269 = vmatprep.subr.mxu0 0.0
    %3270 = vmatpush2.msra.mxu0 0.0
    %3271 = vmatprep.subr.mxu0 0.0
    %3272 = vmatpush2.msra.mxu0 0.0
    %3273 = vmatprep.subr.mxu0 0.0
    %3274 = vmatpush2.msra.mxu0 0.0
    %3275 = vmatprep.subr.mxu0 0.0
    %3276 = vmatpush2.msra.mxu0 0.0
    %3277 = vmatprep.subr.mxu0 0.0
    %3278 = vmatpush2.msra.mxu0 0.0
    %3279 = vmatprep.subr.mxu0 0.0
    %3280 = vmatpush2.msra.mxu0 0.0
    %3281 = vmatprep.subr.mxu0 0.0
    %3282 = vmatpush2.msra.mxu0 0.0
    %3283 = vmatprep.subr.mxu0 0.0
    %3284 = vmatpush2.msra.mxu0 0.0
    %3285 = vmatprep.mubr.f32.mxu0 0.0
    %3286 = vmatmul.mubr.f32.gmra.mxu0 %v3079
    %v3287 = vpop.f32.mrf.mxu0
    %v3288 = vadd.f32 0.0, %v3287
    %v3289 = vpop.f32.mrf.mxu0
    %v3290 = vadd.f32 0.0, %v3289
    %3291 = vdwg.mxu0
    %v3292 = vadd.f32 %v3082, %v3217
    %v3293 = vadd.f32 %v3083, %v3219
    %v3294 = vadd.f32 %v3084, %v3288
    %v3295 = vadd.f32 %v3085, %v3290
    %v3296 = vmul.f32 %v3292, 0.5
    %v3297 = vmul.f32 %v3293, 0.5
    %v3298 = vmul.f32 %v3294, 0.5
    %v3299 = vtanh.pop %v3296
    %v3300 = vtanh.pop %v3297
    %v3301 = vtanh.pop %v3298
    %v3302 = vadd.f32 %v3299, 1.0
    %v3303 = vadd.f32 %v3300, 1.0
    %v3304 = vadd.f32 %v3301, 1.0
    %v3305 = vmul.f32 %v3302, 0.5
    %v3306 = vmul.f32 %v3303, 0.5
    %v3307 = vmul.f32 %v3304, 0.5
    %v3308 = vtanh.pop %v3295
    %v3309 = vmul.f32 %v3306, %v3077
    %v3310 = vmul.f32 %v3305, %v3308
    %v3311 = vadd.f32 %v3309, %v3310
    %v3312 = vtanh.pop %v3311
    %v3313 = vmul.f32 %v3307, %v3312
    %s3314 = scalar_lea.vmem [#allocation11], 16
    %3315 = vst [vmem:[%s3314] sm:$0xff] %v3313
    %v3316 = vld [vmem:[%s1096] sm:$0xff]
    %v3317 = vld [vmem:[%s1096 + $0x8] sm:$0xff]
    %v3318 = vld [vmem:[%s1096 + $0x10] sm:$0xff]
    %v3319 = vld [vmem:[%s1096 + $0x18] sm:$0xff]
    %v3320 = vld [vmem:[#allocation9] sm:$0xff]
    %v3321 = vld [vmem:[#allocation9 + $0x8] sm:$0xff]
    %v3322 = vld [vmem:[#allocation9 + $0x10] sm:$0xff]
    %v3323 = vld [vmem:[#allocation9 + $0x18] sm:$0xff]
    %v3324 = vld [vmem:[#allocation9 + $0x20] sm:$0xff]
    %v3325 = vld [vmem:[#allocation9 + $0x28] sm:$0xff]
    %v3326 = vld [vmem:[#allocation9 + $0x30] sm:$0xff]
    %v3327 = vld [vmem:[#allocation9 + $0x38] sm:$0xff]
    %v3328 = vld [vmem:[#allocation9 + $0x40] sm:$0xff]
    %v3329 = vld [vmem:[#allocation9 + $0x48] sm:$0xff]
    %v3330 = vld [vmem:[#allocation9 + $0x50] sm:$0xff]
    %v3331 = vld [vmem:[#allocation9 + $0x58] sm:$0xff]
    %v3332 = vld [vmem:[#allocation9 + $0x60] sm:$0xff]
    %v3333 = vld [vmem:[#allocation9 + $0x68] sm:$0xff]
    %v3334 = vld [vmem:[#allocation9 + $0x70] sm:$0xff]
    %v3335 = vld [vmem:[#allocation9 + $0x78] sm:$0xff]
    %v3336 = vld [vmem:[#allocation9 + $0x80] sm:$0xff]
    %v3337 = vld [vmem:[#allocation9 + $0x88] sm:$0xff]
    %v3338 = vld [vmem:[#allocation9 + $0x90] sm:$0xff]
    %v3339 = vld [vmem:[#allocation9 + $0x98] sm:$0xff]
    %v3340 = vld [vmem:[#allocation9 + $0xa0] sm:$0xff]
    %v3341 = vld [vmem:[#allocation9 + $0xa8] sm:$0xff]
    %v3342 = vld [vmem:[#allocation9 + $0xb0] sm:$0xff]
    %v3343 = vld [vmem:[#allocation9 + $0xb8] sm:$0xff]
    %v3344 = vld [vmem:[#allocation9 + $0xc0] sm:$0xff]
    %v3345 = vld [vmem:[#allocation9 + $0xc8] sm:$0xff]
    %v3346 = vld [vmem:[#allocation9 + $0xd0] sm:$0xff]
    %v3347 = vld [vmem:[#allocation9 + $0xd8] sm:$0xff]
    %v3348 = vld [vmem:[#allocation9 + $0xe0] sm:$0xff]
    %v3349 = vld [vmem:[#allocation9 + $0xe8] sm:$0xff]
    %v3350 = vld [vmem:[#allocation9 + $0xf0] sm:$0xff]
    %v3351 = vld [vmem:[#allocation9 + $0xf8] sm:$0xff]
    %v3352 = vld [vmem:[#allocation9 + $0x100] sm:$0xff]
    %v3353 = vld [vmem:[#allocation9 + $0x108] sm:$0xff]
    %v3354 = vld [vmem:[#allocation9 + $0x110] sm:$0xff]
    %v3355 = vld [vmem:[#allocation9 + $0x118] sm:$0xff]
    %v3356 = vld [vmem:[#allocation9 + $0x120] sm:$0xff]
    %v3357 = vld [vmem:[#allocation9 + $0x128] sm:$0xff]
    %v3358 = vld [vmem:[#allocation9 + $0x130] sm:$0xff]
    %v3359 = vld [vmem:[#allocation9 + $0x138] sm:$0xff]
    %v3360 = vld [vmem:[#allocation9 + $0x140] sm:$0xff]
    %v3361 = vld [vmem:[#allocation9 + $0x148] sm:$0xff]
    %v3362 = vld [vmem:[#allocation9 + $0x150] sm:$0xff]
    %v3363 = vld [vmem:[#allocation9 + $0x158] sm:$0xff]
    %v3364 = vld [vmem:[#allocation9 + $0x160] sm:$0xff]
    %v3365 = vld [vmem:[#allocation9 + $0x168] sm:$0xff]
    %v3366 = vld [vmem:[#allocation9 + $0x170] sm:$0xff]
    %v3367 = vld [vmem:[#allocation9 + $0x178] sm:$0xff]
    %v3368 = vld [vmem:[#allocation9 + $0x180] sm:$0xff]
    %v3369 = vld [vmem:[#allocation9 + $0x188] sm:$0xff]
    %v3370 = vld [vmem:[#allocation9 + $0x190] sm:$0xff]
    %v3371 = vld [vmem:[#allocation9 + $0x198] sm:$0xff]
    %v3372 = vld [vmem:[#allocation9 + $0x1a0] sm:$0xff]
    %v3373 = vld [vmem:[#allocation9 + $0x1a8] sm:$0xff]
    %v3374 = vld [vmem:[#allocation9 + $0x1b0] sm:$0xff]
    %v3375 = vld [vmem:[#allocation9 + $0x1b8] sm:$0xff]
    %v3376 = vld [vmem:[#allocation9 + $0x1c0] sm:$0xff]
    %v3377 = vld [vmem:[#allocation9 + $0x1c8] sm:$0xff]
    %v3378 = vld [vmem:[#allocation9 + $0x1d0] sm:$0xff]
    %v3379 = vld [vmem:[#allocation9 + $0x1d8] sm:$0xff]
    %v3380 = vld [vmem:[#allocation9 + $0x1e0] sm:$0xff]
    %v3381 = vld [vmem:[#allocation9 + $0x1e8] sm:$0xff]
    %v3382 = vld [vmem:[#allocation9 + $0x1f0] sm:$0xff]
    %v3383 = vld [vmem:[#allocation9 + $0x1f8] sm:$0xff]
    %3384 = vmatprep.subr.mxu0 %v3381
    %3385 = vmatpush1.msra.mxu0 %v3380
    %3386 = vmatprep.subr.mxu0 %v3377
    %3387 = vmatpush1.msra.mxu0 %v3376
    %3388 = vmatprep.subr.mxu0 %v3373
    %3389 = vmatpush1.msra.mxu0 %v3372
    %3390 = vmatprep.subr.mxu0 %v3369
    %3391 = vmatpush1.msra.mxu0 %v3368
    %3392 = vmatprep.subr.mxu0 %v3365
    %3393 = vmatpush1.msra.mxu0 %v3364
    %3394 = vmatprep.subr.mxu0 %v3361
    %3395 = vmatpush1.msra.mxu0 %v3360
    %3396 = vmatprep.subr.mxu0 %v3357
    %3397 = vmatpush1.msra.mxu0 %v3356
    %3398 = vmatprep.subr.mxu0 %v3353
    %3399 = vmatpush1.msra.mxu0 %v3352
    %3400 = vmatprep.subr.mxu0 %v3349
    %3401 = vmatpush1.msra.mxu0 %v3348
    %3402 = vmatprep.subr.mxu0 %v3345
    %3403 = vmatpush1.msra.mxu0 %v3344
    %3404 = vmatprep.subr.mxu0 %v3341
    %3405 = vmatpush1.msra.mxu0 %v3340
    %3406 = vmatprep.subr.mxu0 %v3337
    %3407 = vmatpush1.msra.mxu0 %v3336
    %3408 = vmatprep.subr.mxu0 %v3333
    %3409 = vmatpush1.msra.mxu0 %v3332
    %3410 = vmatprep.subr.mxu0 %v3329
    %3411 = vmatpush1.msra.mxu0 %v3328
    %3412 = vmatprep.subr.mxu0 %v3325
    %3413 = vmatpush1.msra.mxu0 %v3324
    %3414 = vmatprep.subr.mxu0 %v3321
    %3415 = vmatpush1.msra.mxu0 %v3320
    %3416 = vmatprep.subr.mxu0 0.0
    %3417 = vmatpush2.msra.mxu0 0.0
    %3418 = vmatprep.subr.mxu0 0.0
    %3419 = vmatpush2.msra.mxu0 0.0
    %3420 = vmatprep.subr.mxu0 0.0
    %3421 = vmatpush2.msra.mxu0 0.0
    %3422 = vmatprep.subr.mxu0 0.0
    %3423 = vmatpush2.msra.mxu0 0.0
    %3424 = vmatprep.subr.mxu0 0.0
    %3425 = vmatpush2.msra.mxu0 0.0
    %3426 = vmatprep.subr.mxu0 0.0
    %3427 = vmatpush2.msra.mxu0 0.0
    %3428 = vmatprep.subr.mxu0 0.0
    %3429 = vmatpush2.msra.mxu0 0.0
    %3430 = vmatprep.subr.mxu0 0.0
    %3431 = vmatpush2.msra.mxu0 0.0
    %3432 = vmatprep.subr.mxu0 0.0
    %3433 = vmatpush2.msra.mxu0 0.0
    %3434 = vmatprep.subr.mxu0 0.0
    %3435 = vmatpush2.msra.mxu0 0.0
    %3436 = vmatprep.subr.mxu0 0.0
    %3437 = vmatpush2.msra.mxu0 0.0
    %3438 = vmatprep.subr.mxu0 0.0
    %3439 = vmatpush2.msra.mxu0 0.0
    %3440 = vmatprep.subr.mxu0 0.0
    %3441 = vmatpush2.msra.mxu0 0.0
    %3442 = vmatprep.subr.mxu0 0.0
    %3443 = vmatpush2.msra.mxu0 0.0
    %3444 = vmatprep.subr.mxu0 0.0
    %3445 = vmatpush2.msra.mxu0 0.0
    %3446 = vmatprep.subr.mxu0 0.0
    %3447 = vmatpush2.msra.mxu0 0.0
    %3448 = vmatprep.mubr.f32.mxu0 0.0
    %3449 = vmatmul.mubr.f32.gmra.mxu0 %v3313
    %v3450 = vpop.f32.mrf.mxu0
    %v3451 = vadd.f32 0.0, %v3450
    %v3452 = vpop.f32.mrf.mxu0
    %v3453 = vadd.f32 0.0, %v3452
    %3454 = vdwg.mxu0
    %3455 = vmatprep.subr.mxu0 %v3383
    %3456 = vmatpush1.msra.mxu0 %v3382
    %3457 = vmatprep.subr.mxu0 %v3379
    %3458 = vmatpush1.msra.mxu0 %v3378
    %3459 = vmatprep.subr.mxu0 %v3375
    %3460 = vmatpush1.msra.mxu0 %v3374
    %3461 = vmatprep.subr.mxu0 %v3371
    %3462 = vmatpush1.msra.mxu0 %v3370
    %3463 = vmatprep.subr.mxu0 %v3367
    %3464 = vmatpush1.msra.mxu0 %v3366
    %3465 = vmatprep.subr.mxu0 %v3363
    %3466 = vmatpush1.msra.mxu0 %v3362
    %3467 = vmatprep.subr.mxu0 %v3359
    %3468 = vmatpush1.msra.mxu0 %v3358
    %3469 = vmatprep.subr.mxu0 %v3355
    %3470 = vmatpush1.msra.mxu0 %v3354
    %3471 = vmatprep.subr.mxu0 %v3351
    %3472 = vmatpush1.msra.mxu0 %v3350
    %3473 = vmatprep.subr.mxu0 %v3347
    %3474 = vmatpush1.msra.mxu0 %v3346
    %3475 = vmatprep.subr.mxu0 %v3343
    %3476 = vmatpush1.msra.mxu0 %v3342
    %3477 = vmatprep.subr.mxu0 %v3339
    %3478 = vmatpush1.msra.mxu0 %v3338
    %3479 = vmatprep.subr.mxu0 %v3335
    %3480 = vmatpush1.msra.mxu0 %v3334
    %3481 = vmatprep.subr.mxu0 %v3331
    %3482 = vmatpush1.msra.mxu0 %v3330
    %3483 = vmatprep.subr.mxu0 %v3327
    %3484 = vmatpush1.msra.mxu0 %v3326
    %3485 = vmatprep.subr.mxu0 %v3323
    %3486 = vmatpush1.msra.mxu0 %v3322
    %3487 = vmatprep.subr.mxu0 0.0
    %3488 = vmatpush2.msra.mxu0 0.0
    %3489 = vmatprep.subr.mxu0 0.0
    %3490 = vmatpush2.msra.mxu0 0.0
    %3491 = vmatprep.subr.mxu0 0.0
    %3492 = vmatpush2.msra.mxu0 0.0
    %3493 = vmatprep.subr.mxu0 0.0
    %3494 = vmatpush2.msra.mxu0 0.0
    %3495 = vmatprep.subr.mxu0 0.0
    %3496 = vmatpush2.msra.mxu0 0.0
    %3497 = vmatprep.subr.mxu0 0.0
    %3498 = vmatpush2.msra.mxu0 0.0
    %3499 = vmatprep.subr.mxu0 0.0
    %3500 = vmatpush2.msra.mxu0 0.0
    %3501 = vmatprep.subr.mxu0 0.0
    %3502 = vmatpush2.msra.mxu0 0.0
    %3503 = vmatprep.subr.mxu0 0.0
    %3504 = vmatpush2.msra.mxu0 0.0
    %3505 = vmatprep.subr.mxu0 0.0
    %3506 = vmatpush2.msra.mxu0 0.0
    %3507 = vmatprep.subr.mxu0 0.0
    %3508 = vmatpush2.msra.mxu0 0.0
    %3509 = vmatprep.subr.mxu0 0.0
    %3510 = vmatpush2.msra.mxu0 0.0
    %3511 = vmatprep.subr.mxu0 0.0
    %3512 = vmatpush2.msra.mxu0 0.0
    %3513 = vmatprep.subr.mxu0 0.0
    %3514 = vmatpush2.msra.mxu0 0.0
    %3515 = vmatprep.subr.mxu0 0.0
    %3516 = vmatpush2.msra.mxu0 0.0
    %3517 = vmatprep.subr.mxu0 0.0
    %3518 = vmatpush2.msra.mxu0 0.0
    %3519 = vmatprep.mubr.f32.mxu0 0.0
    %3520 = vmatmul.mubr.f32.gmra.mxu0 %v3313
    %v3521 = vpop.f32.mrf.mxu0
    %v3522 = vadd.f32 0.0, %v3521
    %v3523 = vpop.f32.mrf.mxu0
    %v3524 = vadd.f32 0.0, %v3523
    %3525 = vdwg.mxu0
    %v3526 = vadd.f32 %v3316, %v3451
    %v3527 = vadd.f32 %v3317, %v3453
    %v3528 = vadd.f32 %v3318, %v3522
    %v3529 = vadd.f32 %v3319, %v3524
    %v3530 = vmul.f32 %v3526, 0.5
    %v3531 = vmul.f32 %v3527, 0.5
    %v3532 = vmul.f32 %v3528, 0.5
    %v3533 = vtanh.pop %v3530
    %v3534 = vtanh.pop %v3531
    %v3535 = vtanh.pop %v3532
    %v3536 = vadd.f32 %v3533, 1.0
    %v3537 = vadd.f32 %v3534, 1.0
    %v3538 = vadd.f32 %v3535, 1.0
    %v3539 = vmul.f32 %v3536, 0.5
    %v3540 = vmul.f32 %v3537, 0.5
    %v3541 = vmul.f32 %v3538, 0.5
    %v3542 = vtanh.pop %v3529
    %v3543 = vmul.f32 %v3540, %v3311
    %v3544 = vmul.f32 %v3539, %v3542
    %v3545 = vadd.f32 %v3543, %v3544
    %v3546 = vtanh.pop %v3545
    %v3547 = vmul.f32 %v3541, %v3546
    %s3548 = scalar_lea.vmem [#allocation11], 24
    %3549 = vst [vmem:[%s3548] sm:$0xff] %v3547
    %v3550 = vld [vmem:[%s1333] sm:$0xff]
    %v3551 = vld [vmem:[%s1333 + $0x8] sm:$0xff]
    %v3552 = vld [vmem:[%s1333 + $0x10] sm:$0xff]
    %v3553 = vld [vmem:[%s1333 + $0x18] sm:$0xff]
    %v3554 = vld [vmem:[#allocation9] sm:$0xff]
    %v3555 = vld [vmem:[#allocation9 + $0x8] sm:$0xff]
    %v3556 = vld [vmem:[#allocation9 + $0x10] sm:$0xff]
    %v3557 = vld [vmem:[#allocation9 + $0x18] sm:$0xff]
    %v3558 = vld [vmem:[#allocation9 + $0x20] sm:$0xff]
    %v3559 = vld [vmem:[#allocation9 + $0x28] sm:$0xff]
    %v3560 = vld [vmem:[#allocation9 + $0x30] sm:$0xff]
    %v3561 = vld [vmem:[#allocation9 + $0x38] sm:$0xff]
    %v3562 = vld [vmem:[#allocation9 + $0x40] sm:$0xff]
    %v3563 = vld [vmem:[#allocation9 + $0x48] sm:$0xff]
    %v3564 = vld [vmem:[#allocation9 + $0x50] sm:$0xff]
    %v3565 = vld [vmem:[#allocation9 + $0x58] sm:$0xff]
    %v3566 = vld [vmem:[#allocation9 + $0x60] sm:$0xff]
    %v3567 = vld [vmem:[#allocation9 + $0x68] sm:$0xff]
    %v3568 = vld [vmem:[#allocation9 + $0x70] sm:$0xff]
    %v3569 = vld [vmem:[#allocation9 + $0x78] sm:$0xff]
    %v3570 = vld [vmem:[#allocation9 + $0x80] sm:$0xff]
    %v3571 = vld [vmem:[#allocation9 + $0x88] sm:$0xff]
    %v3572 = vld [vmem:[#allocation9 + $0x90] sm:$0xff]
    %v3573 = vld [vmem:[#allocation9 + $0x98] sm:$0xff]
    %v3574 = vld [vmem:[#allocation9 + $0xa0] sm:$0xff]
    %v3575 = vld [vmem:[#allocation9 + $0xa8] sm:$0xff]
    %v3576 = vld [vmem:[#allocation9 + $0xb0] sm:$0xff]
    %v3577 = vld [vmem:[#allocation9 + $0xb8] sm:$0xff]
    %v3578 = vld [vmem:[#allocation9 + $0xc0] sm:$0xff]
    %v3579 = vld [vmem:[#allocation9 + $0xc8] sm:$0xff]
    %v3580 = vld [vmem:[#allocation9 + $0xd0] sm:$0xff]
    %v3581 = vld [vmem:[#allocation9 + $0xd8] sm:$0xff]
    %v3582 = vld [vmem:[#allocation9 + $0xe0] sm:$0xff]
    %v3583 = vld [vmem:[#allocation9 + $0xe8] sm:$0xff]
    %v3584 = vld [vmem:[#allocation9 + $0xf0] sm:$0xff]
    %v3585 = vld [vmem:[#allocation9 + $0xf8] sm:$0xff]
    %v3586 = vld [vmem:[#allocation9 + $0x100] sm:$0xff]
    %v3587 = vld [vmem:[#allocation9 + $0x108] sm:$0xff]
    %v3588 = vld [vmem:[#allocation9 + $0x110] sm:$0xff]
    %v3589 = vld [vmem:[#allocation9 + $0x118] sm:$0xff]
    %v3590 = vld [vmem:[#allocation9 + $0x120] sm:$0xff]
    %v3591 = vld [vmem:[#allocation9 + $0x128] sm:$0xff]
    %v3592 = vld [vmem:[#allocation9 + $0x130] sm:$0xff]
    %v3593 = vld [vmem:[#allocation9 + $0x138] sm:$0xff]
    %v3594 = vld [vmem:[#allocation9 + $0x140] sm:$0xff]
    %v3595 = vld [vmem:[#allocation9 + $0x148] sm:$0xff]
    %v3596 = vld [vmem:[#allocation9 + $0x150] sm:$0xff]
    %v3597 = vld [vmem:[#allocation9 + $0x158] sm:$0xff]
    %v3598 = vld [vmem:[#allocation9 + $0x160] sm:$0xff]
    %v3599 = vld [vmem:[#allocation9 + $0x168] sm:$0xff]
    %v3600 = vld [vmem:[#allocation9 + $0x170] sm:$0xff]
    %v3601 = vld [vmem:[#allocation9 + $0x178] sm:$0xff]
    %v3602 = vld [vmem:[#allocation9 + $0x180] sm:$0xff]
    %v3603 = vld [vmem:[#allocation9 + $0x188] sm:$0xff]
    %v3604 = vld [vmem:[#allocation9 + $0x190] sm:$0xff]
    %v3605 = vld [vmem:[#allocation9 + $0x198] sm:$0xff]
    %v3606 = vld [vmem:[#allocation9 + $0x1a0] sm:$0xff]
    %v3607 = vld [vmem:[#allocation9 + $0x1a8] sm:$0xff]
    %v3608 = vld [vmem:[#allocation9 + $0x1b0] sm:$0xff]
    %v3609 = vld [vmem:[#allocation9 + $0x1b8] sm:$0xff]
    %v3610 = vld [vmem:[#allocation9 + $0x1c0] sm:$0xff]
    %v3611 = vld [vmem:[#allocation9 + $0x1c8] sm:$0xff]
    %v3612 = vld [vmem:[#allocation9 + $0x1d0] sm:$0xff]
    %v3613 = vld [vmem:[#allocation9 + $0x1d8] sm:$0xff]
    %v3614 = vld [vmem:[#allocation9 + $0x1e0] sm:$0xff]
    %v3615 = vld [vmem:[#allocation9 + $0x1e8] sm:$0xff]
    %v3616 = vld [vmem:[#allocation9 + $0x1f0] sm:$0xff]
    %v3617 = vld [vmem:[#allocation9 + $0x1f8] sm:$0xff]
    %3618 = vmatprep.subr.mxu0 %v3615
    %3619 = vmatpush1.msra.mxu0 %v3614
    %3620 = vmatprep.subr.mxu0 %v3611
    %3621 = vmatpush1.msra.mxu0 %v3610
    %3622 = vmatprep.subr.mxu0 %v3607
    %3623 = vmatpush1.msra.mxu0 %v3606
    %3624 = vmatprep.subr.mxu0 %v3603
    %3625 = vmatpush1.msra.mxu0 %v3602
    %3626 = vmatprep.subr.mxu0 %v3599
    %3627 = vmatpush1.msra.mxu0 %v3598
    %3628 = vmatprep.subr.mxu0 %v3595
    %3629 = vmatpush1.msra.mxu0 %v3594
    %3630 = vmatprep.subr.mxu0 %v3591
    %3631 = vmatpush1.msra.mxu0 %v3590
    %3632 = vmatprep.subr.mxu0 %v3587
    %3633 = vmatpush1.msra.mxu0 %v3586
    %3634 = vmatprep.subr.mxu0 %v3583
    %3635 = vmatpush1.msra.mxu0 %v3582
    %3636 = vmatprep.subr.mxu0 %v3579
    %3637 = vmatpush1.msra.mxu0 %v3578
    %3638 = vmatprep.subr.mxu0 %v3575
    %3639 = vmatpush1.msra.mxu0 %v3574
    %3640 = vmatprep.subr.mxu0 %v3571
    %3641 = vmatpush1.msra.mxu0 %v3570
    %3642 = vmatprep.subr.mxu0 %v3567
    %3643 = vmatpush1.msra.mxu0 %v3566
    %3644 = vmatprep.subr.mxu0 %v3563
    %3645 = vmatpush1.msra.mxu0 %v3562
    %3646 = vmatprep.subr.mxu0 %v3559
    %3647 = vmatpush1.msra.mxu0 %v3558
    %3648 = vmatprep.subr.mxu0 %v3555
    %3649 = vmatpush1.msra.mxu0 %v3554
    %3650 = vmatprep.subr.mxu0 0.0
    %3651 = vmatpush2.msra.mxu0 0.0
    %3652 = vmatprep.subr.mxu0 0.0
    %3653 = vmatpush2.msra.mxu0 0.0
    %3654 = vmatprep.subr.mxu0 0.0
    %3655 = vmatpush2.msra.mxu0 0.0
    %3656 = vmatprep.subr.mxu0 0.0
    %3657 = vmatpush2.msra.mxu0 0.0
    %3658 = vmatprep.subr.mxu0 0.0
    %3659 = vmatpush2.msra.mxu0 0.0
    %3660 = vmatprep.subr.mxu0 0.0
    %3661 = vmatpush2.msra.mxu0 0.0
    %3662 = vmatprep.subr.mxu0 0.0
    %3663 = vmatpush2.msra.mxu0 0.0
    %3664 = vmatprep.subr.mxu0 0.0
    %3665 = vmatpush2.msra.mxu0 0.0
    %3666 = vmatprep.subr.mxu0 0.0
    %3667 = vmatpush2.msra.mxu0 0.0
    %3668 = vmatprep.subr.mxu0 0.0
    %3669 = vmatpush2.msra.mxu0 0.0
    %3670 = vmatprep.subr.mxu0 0.0
    %3671 = vmatpush2.msra.mxu0 0.0
    %3672 = vmatprep.subr.mxu0 0.0
    %3673 = vmatpush2.msra.mxu0 0.0
    %3674 = vmatprep.subr.mxu0 0.0
    %3675 = vmatpush2.msra.mxu0 0.0
    %3676 = vmatprep.subr.mxu0 0.0
    %3677 = vmatpush2.msra.mxu0 0.0
    %3678 = vmatprep.subr.mxu0 0.0
    %3679 = vmatpush2.msra.mxu0 0.0
    %3680 = vmatprep.subr.mxu0 0.0
    %3681 = vmatpush2.msra.mxu0 0.0
    %3682 = vmatprep.mubr.f32.mxu0 0.0
    %3683 = vmatmul.mubr.f32.gmra.mxu0 %v3547
    %v3684 = vpop.f32.mrf.mxu0
    %v3685 = vadd.f32 0.0, %v3684
    %v3686 = vpop.f32.mrf.mxu0
    %v3687 = vadd.f32 0.0, %v3686
    %3688 = vdwg.mxu0
    %3689 = vmatprep.subr.mxu0 %v3617
    %3690 = vmatpush1.msra.mxu0 %v3616
    %3691 = vmatprep.subr.mxu0 %v3613
    %3692 = vmatpush1.msra.mxu0 %v3612
    %3693 = vmatprep.subr.mxu0 %v3609
    %3694 = vmatpush1.msra.mxu0 %v3608
    %3695 = vmatprep.subr.mxu0 %v3605
    %3696 = vmatpush1.msra.mxu0 %v3604
    %3697 = vmatprep.subr.mxu0 %v3601
    %3698 = vmatpush1.msra.mxu0 %v3600
    %3699 = vmatprep.subr.mxu0 %v3597
    %3700 = vmatpush1.msra.mxu0 %v3596
    %3701 = vmatprep.subr.mxu0 %v3593
    %3702 = vmatpush1.msra.mxu0 %v3592
    %3703 = vmatprep.subr.mxu0 %v3589
    %3704 = vmatpush1.msra.mxu0 %v3588
    %3705 = vmatprep.subr.mxu0 %v3585
    %3706 = vmatpush1.msra.mxu0 %v3584
    %3707 = vmatprep.subr.mxu0 %v3581
    %3708 = vmatpush1.msra.mxu0 %v3580
    %3709 = vmatprep.subr.mxu0 %v3577
    %3710 = vmatpush1.msra.mxu0 %v3576
    %3711 = vmatprep.subr.mxu0 %v3573
    %3712 = vmatpush1.msra.mxu0 %v3572
    %3713 = vmatprep.subr.mxu0 %v3569
    %3714 = vmatpush1.msra.mxu0 %v3568
    %3715 = vmatprep.subr.mxu0 %v3565
    %3716 = vmatpush1.msra.mxu0 %v3564
    %3717 = vmatprep.subr.mxu0 %v3561
    %3718 = vmatpush1.msra.mxu0 %v3560
    %3719 = vmatprep.subr.mxu0 %v3557
    %3720 = vmatpush1.msra.mxu0 %v3556
    %3721 = vmatprep.subr.mxu0 0.0
    %3722 = vmatpush2.msra.mxu0 0.0
    %3723 = vmatprep.subr.mxu0 0.0
    %3724 = vmatpush2.msra.mxu0 0.0
    %3725 = vmatprep.subr.mxu0 0.0
    %3726 = vmatpush2.msra.mxu0 0.0
    %3727 = vmatprep.subr.mxu0 0.0
    %3728 = vmatpush2.msra.mxu0 0.0
    %3729 = vmatprep.subr.mxu0 0.0
    %3730 = vmatpush2.msra.mxu0 0.0
    %3731 = vmatprep.subr.mxu0 0.0
    %3732 = vmatpush2.msra.mxu0 0.0
    %3733 = vmatprep.subr.mxu0 0.0
    %3734 = vmatpush2.msra.mxu0 0.0
    %3735 = vmatprep.subr.mxu0 0.0
    %3736 = vmatpush2.msra.mxu0 0.0
    %3737 = vmatprep.subr.mxu0 0.0
    %3738 = vmatpush2.msra.mxu0 0.0
    %3739 = vmatprep.subr.mxu0 0.0
    %3740 = vmatpush2.msra.mxu0 0.0
    %3741 = vmatprep.subr.mxu0 0.0
    %3742 = vmatpush2.msra.mxu0 0.0
    %3743 = vmatprep.subr.mxu0 0.0
    %3744 = vmatpush2.msra.mxu0 0.0
    %3745 = vmatprep.subr.mxu0 0.0
    %3746 = vmatpush2.msra.mxu0 0.0
    %3747 = vmatprep.subr.mxu0 0.0
    %3748 = vmatpush2.msra.mxu0 0.0
    %3749 = vmatprep.subr.mxu0 0.0
    %3750 = vmatpush2.msra.mxu0 0.0
    %3751 = vmatprep.subr.mxu0 0.0
    %3752 = vmatpush2.msra.mxu0 0.0
    %3753 = vmatprep.mubr.f32.mxu0 0.0
    %3754 = vmatmul.mubr.f32.gmra.mxu0 %v3547
    %v3755 = vpop.f32.mrf.mxu0
    %v3756 = vadd.f32 0.0, %v3755
    %v3757 = vpop.f32.mrf.mxu0
    %v3758 = vadd.f32 0.0, %v3757
    %3759 = vdwg.mxu0
    %v3760 = vadd.f32 %v3550, %v3685
    %v3761 = vadd.f32 %v3551, %v3687
    %v3762 = vadd.f32 %v3552, %v3756
    %v3763 = vadd.f32 %v3553, %v3758
    %v3764 = vmul.f32 %v3760, 0.5
    %v3765 = vmul.f32 %v3761, 0.5
    %v3766 = vmul.f32 %v3762, 0.5
    %v3767 = vtanh.pop %v3764
    %v3768 = vtanh.pop %v3765
    %v3769 = vtanh.pop %v3766
    %v3770 = vadd.f32 %v3767, 1.0
    %v3771 = vadd.f32 %v3768, 1.0
    %v3772 = vadd.f32 %v3769, 1.0
    %v3773 = vmul.f32 %v3770, 0.5
    %v3774 = vmul.f32 %v3771, 0.5
    %v3775 = vmul.f32 %v3772, 0.5
    %v3776 = vtanh.pop %v3763
    %v3777 = vmul.f32 %v3774, %v3545
    %v3778 = vmul.f32 %v3773, %v3776
    %v3779 = vadd.f32 %v3777, %v3778
    %v3780 = vtanh.pop %v3779
    %v3781 = vmul.f32 %v3775, %v3780
    %s3782 = scalar_lea.vmem [#allocation11], 32
    %3783 = vst [vmem:[%s3782] sm:$0xff] %v3781
    %v3784 = vld [vmem:[%s1570] sm:$0xff]
    %v3785 = vld [vmem:[%s1570 + $0x8] sm:$0xff]
    %v3786 = vld [vmem:[%s1570 + $0x10] sm:$0xff]
    %v3787 = vld [vmem:[%s1570 + $0x18] sm:$0xff]
    %v3788 = vld [vmem:[#allocation9] sm:$0xff]
    %v3789 = vld [vmem:[#allocation9 + $0x8] sm:$0xff]
    %v3790 = vld [vmem:[#allocation9 + $0x10] sm:$0xff]
    %v3791 = vld [vmem:[#allocation9 + $0x18] sm:$0xff]
    %v3792 = vld [vmem:[#allocation9 + $0x20] sm:$0xff]
    %v3793 = vld [vmem:[#allocation9 + $0x28] sm:$0xff]
    %v3794 = vld [vmem:[#allocation9 + $0x30] sm:$0xff]
    %v3795 = vld [vmem:[#allocation9 + $0x38] sm:$0xff]
    %v3796 = vld [vmem:[#allocation9 + $0x40] sm:$0xff]
    %v3797 = vld [vmem:[#allocation9 + $0x48] sm:$0xff]
    %v3798 = vld [vmem:[#allocation9 + $0x50] sm:$0xff]
    %v3799 = vld [vmem:[#allocation9 + $0x58] sm:$0xff]
    %v3800 = vld [vmem:[#allocation9 + $0x60] sm:$0xff]
    %v3801 = vld [vmem:[#allocation9 + $0x68] sm:$0xff]
    %v3802 = vld [vmem:[#allocation9 + $0x70] sm:$0xff]
    %v3803 = vld [vmem:[#allocation9 + $0x78] sm:$0xff]
    %v3804 = vld [vmem:[#allocation9 + $0x80] sm:$0xff]
    %v3805 = vld [vmem:[#allocation9 + $0x88] sm:$0xff]
    %v3806 = vld [vmem:[#allocation9 + $0x90] sm:$0xff]
    %v3807 = vld [vmem:[#allocation9 + $0x98] sm:$0xff]
    %v3808 = vld [vmem:[#allocation9 + $0xa0] sm:$0xff]
    %v3809 = vld [vmem:[#allocation9 + $0xa8] sm:$0xff]
    %v3810 = vld [vmem:[#allocation9 + $0xb0] sm:$0xff]
    %v3811 = vld [vmem:[#allocation9 + $0xb8] sm:$0xff]
    %v3812 = vld [vmem:[#allocation9 + $0xc0] sm:$0xff]
    %v3813 = vld [vmem:[#allocation9 + $0xc8] sm:$0xff]
    %v3814 = vld [vmem:[#allocation9 + $0xd0] sm:$0xff]
    %v3815 = vld [vmem:[#allocation9 + $0xd8] sm:$0xff]
    %v3816 = vld [vmem:[#allocation9 + $0xe0] sm:$0xff]
    %v3817 = vld [vmem:[#allocation9 + $0xe8] sm:$0xff]
    %v3818 = vld [vmem:[#allocation9 + $0xf0] sm:$0xff]
    %v3819 = vld [vmem:[#allocation9 + $0xf8] sm:$0xff]
    %v3820 = vld [vmem:[#allocation9 + $0x100] sm:$0xff]
    %v3821 = vld [vmem:[#allocation9 + $0x108] sm:$0xff]
    %v3822 = vld [vmem:[#allocation9 + $0x110] sm:$0xff]
    %v3823 = vld [vmem:[#allocation9 + $0x118] sm:$0xff]
    %v3824 = vld [vmem:[#allocation9 + $0x120] sm:$0xff]
    %v3825 = vld [vmem:[#allocation9 + $0x128] sm:$0xff]
    %v3826 = vld [vmem:[#allocation9 + $0x130] sm:$0xff]
    %v3827 = vld [vmem:[#allocation9 + $0x138] sm:$0xff]
    %v3828 = vld [vmem:[#allocation9 + $0x140] sm:$0xff]
    %v3829 = vld [vmem:[#allocation9 + $0x148] sm:$0xff]
    %v3830 = vld [vmem:[#allocation9 + $0x150] sm:$0xff]
    %v3831 = vld [vmem:[#allocation9 + $0x158] sm:$0xff]
    %v3832 = vld [vmem:[#allocation9 + $0x160] sm:$0xff]
    %v3833 = vld [vmem:[#allocation9 + $0x168] sm:$0xff]
    %v3834 = vld [vmem:[#allocation9 + $0x170] sm:$0xff]
    %v3835 = vld [vmem:[#allocation9 + $0x178] sm:$0xff]
    %v3836 = vld [vmem:[#allocation9 + $0x180] sm:$0xff]
    %v3837 = vld [vmem:[#allocation9 + $0x188] sm:$0xff]
    %v3838 = vld [vmem:[#allocation9 + $0x190] sm:$0xff]
    %v3839 = vld [vmem:[#allocation9 + $0x198] sm:$0xff]
    %v3840 = vld [vmem:[#allocation9 + $0x1a0] sm:$0xff]
    %v3841 = vld [vmem:[#allocation9 + $0x1a8] sm:$0xff]
    %v3842 = vld [vmem:[#allocation9 + $0x1b0] sm:$0xff]
    %v3843 = vld [vmem:[#allocation9 + $0x1b8] sm:$0xff]
    %v3844 = vld [vmem:[#allocation9 + $0x1c0] sm:$0xff]
    %v3845 = vld [vmem:[#allocation9 + $0x1c8] sm:$0xff]
    %v3846 = vld [vmem:[#allocation9 + $0x1d0] sm:$0xff]
    %v3847 = vld [vmem:[#allocation9 + $0x1d8] sm:$0xff]
    %v3848 = vld [vmem:[#allocation9 + $0x1e0] sm:$0xff]
    %v3849 = vld [vmem:[#allocation9 + $0x1e8] sm:$0xff]
    %v3850 = vld [vmem:[#allocation9 + $0x1f0] sm:$0xff]
    %v3851 = vld [vmem:[#allocation9 + $0x1f8] sm:$0xff]
    %3852 = vmatprep.subr.mxu0 %v3849
    %3853 = vmatpush1.msra.mxu0 %v3848
    %3854 = vmatprep.subr.mxu0 %v3845
    %3855 = vmatpush1.msra.mxu0 %v3844
    %3856 = vmatprep.subr.mxu0 %v3841
    %3857 = vmatpush1.msra.mxu0 %v3840
    %3858 = vmatprep.subr.mxu0 %v3837
    %3859 = vmatpush1.msra.mxu0 %v3836
    %3860 = vmatprep.subr.mxu0 %v3833
    %3861 = vmatpush1.msra.mxu0 %v3832
    %3862 = vmatprep.subr.mxu0 %v3829
    %3863 = vmatpush1.msra.mxu0 %v3828
    %3864 = vmatprep.subr.mxu0 %v3825
    %3865 = vmatpush1.msra.mxu0 %v3824
    %3866 = vmatprep.subr.mxu0 %v3821
    %3867 = vmatpush1.msra.mxu0 %v3820
    %3868 = vmatprep.subr.mxu0 %v3817
    %3869 = vmatpush1.msra.mxu0 %v3816
    %3870 = vmatprep.subr.mxu0 %v3813
    %3871 = vmatpush1.msra.mxu0 %v3812
    %3872 = vmatprep.subr.mxu0 %v3809
    %3873 = vmatpush1.msra.mxu0 %v3808
    %3874 = vmatprep.subr.mxu0 %v3805
    %3875 = vmatpush1.msra.mxu0 %v3804
    %3876 = vmatprep.subr.mxu0 %v3801
    %3877 = vmatpush1.msra.mxu0 %v3800
    %3878 = vmatprep.subr.mxu0 %v3797
    %3879 = vmatpush1.msra.mxu0 %v3796
    %3880 = vmatprep.subr.mxu0 %v3793
    %3881 = vmatpush1.msra.mxu0 %v3792
    %3882 = vmatprep.subr.mxu0 %v3789
    %3883 = vmatpush1.msra.mxu0 %v3788
    %3884 = vmatprep.subr.mxu0 0.0
    %3885 = vmatpush2.msra.mxu0 0.0
    %3886 = vmatprep.subr.mxu0 0.0
    %3887 = vmatpush2.msra.mxu0 0.0
    %3888 = vmatprep.subr.mxu0 0.0
    %3889 = vmatpush2.msra.mxu0 0.0
    %3890 = vmatprep.subr.mxu0 0.0
    %3891 = vmatpush2.msra.mxu0 0.0
    %3892 = vmatprep.subr.mxu0 0.0
    %3893 = vmatpush2.msra.mxu0 0.0
    %3894 = vmatprep.subr.mxu0 0.0
    %3895 = vmatpush2.msra.mxu0 0.0
    %3896 = vmatprep.subr.mxu0 0.0
    %3897 = vmatpush2.msra.mxu0 0.0
    %3898 = vmatprep.subr.mxu0 0.0
    %3899 = vmatpush2.msra.mxu0 0.0
    %3900 = vmatprep.subr.mxu0 0.0
    %3901 = vmatpush2.msra.mxu0 0.0
    %3902 = vmatprep.subr.mxu0 0.0
    %3903 = vmatpush2.msra.mxu0 0.0
    %3904 = vmatprep.subr.mxu0 0.0
    %3905 = vmatpush2.msra.mxu0 0.0
    %3906 = vmatprep.subr.mxu0 0.0
    %3907 = vmatpush2.msra.mxu0 0.0
    %3908 = vmatprep.subr.mxu0 0.0
    %3909 = vmatpush2.msra.mxu0 0.0
    %3910 = vmatprep.subr.mxu0 0.0
    %3911 = vmatpush2.msra.mxu0 0.0
    %3912 = vmatprep.subr.mxu0 0.0
    %3913 = vmatpush2.msra.mxu0 0.0
    %3914 = vmatprep.subr.mxu0 0.0
    %3915 = vmatpush2.msra.mxu0 0.0
    %3916 = vmatprep.mubr.f32.mxu0 0.0
    %3917 = vmatmul.mubr.f32.gmra.mxu0 %v3781
    %v3918 = vpop.f32.mrf.mxu0
    %v3919 = vadd.f32 0.0, %v3918
    %v3920 = vpop.f32.mrf.mxu0
    %v3921 = vadd.f32 0.0, %v3920
    %3922 = vdwg.mxu0
    %3923 = vmatprep.subr.mxu0 %v3851
    %3924 = vmatpush1.msra.mxu0 %v3850
    %3925 = vmatprep.subr.mxu0 %v3847
    %3926 = vmatpush1.msra.mxu0 %v3846
    %3927 = vmatprep.subr.mxu0 %v3843
    %3928 = vmatpush1.msra.mxu0 %v3842
    %3929 = vmatprep.subr.mxu0 %v3839
    %3930 = vmatpush1.msra.mxu0 %v3838
    %3931 = vmatprep.subr.mxu0 %v3835
    %3932 = vmatpush1.msra.mxu0 %v3834
    %3933 = vmatprep.subr.mxu0 %v3831
    %3934 = vmatpush1.msra.mxu0 %v3830
    %3935 = vmatprep.subr.mxu0 %v3827
    %3936 = vmatpush1.msra.mxu0 %v3826
    %3937 = vmatprep.subr.mxu0 %v3823
    %3938 = vmatpush1.msra.mxu0 %v3822
    %3939 = vmatprep.subr.mxu0 %v3819
    %3940 = vmatpush1.msra.mxu0 %v3818
    %3941 = vmatprep.subr.mxu0 %v3815
    %3942 = vmatpush1.msra.mxu0 %v3814
    %3943 = vmatprep.subr.mxu0 %v3811
    %3944 = vmatpush1.msra.mxu0 %v3810
    %3945 = vmatprep.subr.mxu0 %v3807
    %3946 = vmatpush1.msra.mxu0 %v3806
    %3947 = vmatprep.subr.mxu0 %v3803
    %3948 = vmatpush1.msra.mxu0 %v3802
    %3949 = vmatprep.subr.mxu0 %v3799
    %3950 = vmatpush1.msra.mxu0 %v3798
    %3951 = vmatprep.subr.mxu0 %v3795
    %3952 = vmatpush1.msra.mxu0 %v3794
    %3953 = vmatprep.subr.mxu0 %v3791
    %3954 = vmatpush1.msra.mxu0 %v3790
    %3955 = vmatprep.subr.mxu0 0.0
    %3956 = vmatpush2.msra.mxu0 0.0
    %3957 = vmatprep.subr.mxu0 0.0
    %3958 = vmatpush2.msra.mxu0 0.0
    %3959 = vmatprep.subr.mxu0 0.0
    %3960 = vmatpush2.msra.mxu0 0.0
    %3961 = vmatprep.subr.mxu0 0.0
    %3962 = vmatpush2.msra.mxu0 0.0
    %3963 = vmatprep.subr.mxu0 0.0
    %3964 = vmatpush2.msra.mxu0 0.0
    %3965 = vmatprep.subr.mxu0 0.0
    %3966 = vmatpush2.msra.mxu0 0.0
    %3967 = vmatprep.subr.mxu0 0.0
    %3968 = vmatpush2.msra.mxu0 0.0
    %3969 = vmatprep.subr.mxu0 0.0
    %3970 = vmatpush2.msra.mxu0 0.0
    %3971 = vmatprep.subr.mxu0 0.0
    %3972 = vmatpush2.msra.mxu0 0.0
    %3973 = vmatprep.subr.mxu0 0.0
    %3974 = vmatpush2.msra.mxu0 0.0
    %3975 = vmatprep.subr.mxu0 0.0
    %3976 = vmatpush2.msra.mxu0 0.0
    %3977 = vmatprep.subr.mxu0 0.0
    %3978 = vmatpush2.msra.mxu0 0.0
    %3979 = vmatprep.subr.mxu0 0.0
    %3980 = vmatpush2.msra.mxu0 0.0
    %3981 = vmatprep.subr.mxu0 0.0
    %3982 = vmatpush2.msra.mxu0 0.0
    %3983 = vmatprep.subr.mxu0 0.0
    %3984 = vmatpush2.msra.mxu0 0.0
    %3985 = vmatprep.subr.mxu0 0.0
    %3986 = vmatpush2.msra.mxu0 0.0
    %3987 = vmatprep.mubr.f32.mxu0 0.0
    %3988 = vmatmul.mubr.f32.gmra.mxu0 %v3781
    %v3989 = vpop.f32.mrf.mxu0
    %v3990 = vadd.f32 0.0, %v3989
    %v3991 = vpop.f32.mrf.mxu0
    %v3992 = vadd.f32 0.0, %v3991
    %3993 = vdwg.mxu0
    %v3994 = vadd.f32 %v3784, %v3919
    %v3995 = vadd.f32 %v3785, %v3921
    %v3996 = vadd.f32 %v3786, %v3990
    %v3997 = vadd.f32 %v3787, %v3992
    %v3998 = vmul.f32 %v3994, 0.5
    %v3999 = vmul.f32 %v3995, 0.5
    %v4000 = vmul.f32 %v3996, 0.5
    %v4001 = vtanh.pop %v3998
    %v4002 = vtanh.pop %v3999
    %v4003 = vtanh.pop %v4000
    %v4004 = vadd.f32 %v4001, 1.0
    %v4005 = vadd.f32 %v4002, 1.0
    %v4006 = vadd.f32 %v4003, 1.0
    %v4007 = vmul.f32 %v4004, 0.5
    %v4008 = vmul.f32 %v4005, 0.5
    %v4009 = vmul.f32 %v4006, 0.5
    %v4010 = vtanh.pop %v3997
    %v4011 = vmul.f32 %v4008, %v3779
    %v4012 = vmul.f32 %v4007, %v4010
    %v4013 = vadd.f32 %v4011, %v4012
    %v4014 = vtanh.pop %v4013
    %v4015 = vmul.f32 %v4009, %v4014
    %s4016 = scalar_lea.vmem [#allocation11], 40
    %4017 = vst [vmem:[%s4016] sm:$0xff] %v4015
    %v4018 = vld [vmem:[%s1807] sm:$0xff]
    %v4019 = vld [vmem:[%s1807 + $0x8] sm:$0xff]
    %v4020 = vld [vmem:[%s1807 + $0x10] sm:$0xff]
    %v4021 = vld [vmem:[%s1807 + $0x18] sm:$0xff]
    %v4022 = vld [vmem:[#allocation9] sm:$0xff]
    %v4023 = vld [vmem:[#allocation9 + $0x8] sm:$0xff]
    %v4024 = vld [vmem:[#allocation9 + $0x10] sm:$0xff]
    %v4025 = vld [vmem:[#allocation9 + $0x18] sm:$0xff]
    %v4026 = vld [vmem:[#allocation9 + $0x20] sm:$0xff]
    %v4027 = vld [vmem:[#allocation9 + $0x28] sm:$0xff]
    %v4028 = vld [vmem:[#allocation9 + $0x30] sm:$0xff]
    %v4029 = vld [vmem:[#allocation9 + $0x38] sm:$0xff]
    %v4030 = vld [vmem:[#allocation9 + $0x40] sm:$0xff]
    %v4031 = vld [vmem:[#allocation9 + $0x48] sm:$0xff]
    %v4032 = vld [vmem:[#allocation9 + $0x50] sm:$0xff]
    %v4033 = vld [vmem:[#allocation9 + $0x58] sm:$0xff]
    %v4034 = vld [vmem:[#allocation9 + $0x60] sm:$0xff]
    %v4035 = vld [vmem:[#allocation9 + $0x68] sm:$0xff]
    %v4036 = vld [vmem:[#allocation9 + $0x70] sm:$0xff]
    %v4037 = vld [vmem:[#allocation9 + $0x78] sm:$0xff]
    %v4038 = vld [vmem:[#allocation9 + $0x80] sm:$0xff]
    %v4039 = vld [vmem:[#allocation9 + $0x88] sm:$0xff]
    %v4040 = vld [vmem:[#allocation9 + $0x90] sm:$0xff]
    %v4041 = vld [vmem:[#allocation9 + $0x98] sm:$0xff]
    %v4042 = vld [vmem:[#allocation9 + $0xa0] sm:$0xff]
    %v4043 = vld [vmem:[#allocation9 + $0xa8] sm:$0xff]
    %v4044 = vld [vmem:[#allocation9 + $0xb0] sm:$0xff]
    %v4045 = vld [vmem:[#allocation9 + $0xb8] sm:$0xff]
    %v4046 = vld [vmem:[#allocation9 + $0xc0] sm:$0xff]
    %v4047 = vld [vmem:[#allocation9 + $0xc8] sm:$0xff]
    %v4048 = vld [vmem:[#allocation9 + $0xd0] sm:$0xff]
    %v4049 = vld [vmem:[#allocation9 + $0xd8] sm:$0xff]
    %v4050 = vld [vmem:[#allocation9 + $0xe0] sm:$0xff]
    %v4051 = vld [vmem:[#allocation9 + $0xe8] sm:$0xff]
    %v4052 = vld [vmem:[#allocation9 + $0xf0] sm:$0xff]
    %v4053 = vld [vmem:[#allocation9 + $0xf8] sm:$0xff]
    %v4054 = vld [vmem:[#allocation9 + $0x100] sm:$0xff]
    %v4055 = vld [vmem:[#allocation9 + $0x108] sm:$0xff]
    %v4056 = vld [vmem:[#allocation9 + $0x110] sm:$0xff]
    %v4057 = vld [vmem:[#allocation9 + $0x118] sm:$0xff]
    %v4058 = vld [vmem:[#allocation9 + $0x120] sm:$0xff]
    %v4059 = vld [vmem:[#allocation9 + $0x128] sm:$0xff]
    %v4060 = vld [vmem:[#allocation9 + $0x130] sm:$0xff]
    %v4061 = vld [vmem:[#allocation9 + $0x138] sm:$0xff]
    %v4062 = vld [vmem:[#allocation9 + $0x140] sm:$0xff]
    %v4063 = vld [vmem:[#allocation9 + $0x148] sm:$0xff]
    %v4064 = vld [vmem:[#allocation9 + $0x150] sm:$0xff]
    %v4065 = vld [vmem:[#allocation9 + $0x158] sm:$0xff]
    %v4066 = vld [vmem:[#allocation9 + $0x160] sm:$0xff]
    %v4067 = vld [vmem:[#allocation9 + $0x168] sm:$0xff]
    %v4068 = vld [vmem:[#allocation9 + $0x170] sm:$0xff]
    %v4069 = vld [vmem:[#allocation9 + $0x178] sm:$0xff]
    %v4070 = vld [vmem:[#allocation9 + $0x180] sm:$0xff]
    %v4071 = vld [vmem:[#allocation9 + $0x188] sm:$0xff]
    %v4072 = vld [vmem:[#allocation9 + $0x190] sm:$0xff]
    %v4073 = vld [vmem:[#allocation9 + $0x198] sm:$0xff]
    %v4074 = vld [vmem:[#allocation9 + $0x1a0] sm:$0xff]
    %v4075 = vld [vmem:[#allocation9 + $0x1a8] sm:$0xff]
    %v4076 = vld [vmem:[#allocation9 + $0x1b0] sm:$0xff]
    %v4077 = vld [vmem:[#allocation9 + $0x1b8] sm:$0xff]
    %v4078 = vld [vmem:[#allocation9 + $0x1c0] sm:$0xff]
    %v4079 = vld [vmem:[#allocation9 + $0x1c8] sm:$0xff]
    %v4080 = vld [vmem:[#allocation9 + $0x1d0] sm:$0xff]
    %v4081 = vld [vmem:[#allocation9 + $0x1d8] sm:$0xff]
    %v4082 = vld [vmem:[#allocation9 + $0x1e0] sm:$0xff]
    %v4083 = vld [vmem:[#allocation9 + $0x1e8] sm:$0xff]
    %v4084 = vld [vmem:[#allocation9 + $0x1f0] sm:$0xff]
    %v4085 = vld [vmem:[#allocation9 + $0x1f8] sm:$0xff]
    %4086 = vmatprep.subr.mxu0 %v4083
    %4087 = vmatpush1.msra.mxu0 %v4082
    %4088 = vmatprep.subr.mxu0 %v4079
    %4089 = vmatpush1.msra.mxu0 %v4078
    %4090 = vmatprep.subr.mxu0 %v4075
    %4091 = vmatpush1.msra.mxu0 %v4074
    %4092 = vmatprep.subr.mxu0 %v4071
    %4093 = vmatpush1.msra.mxu0 %v4070
    %4094 = vmatprep.subr.mxu0 %v4067
    %4095 = vmatpush1.msra.mxu0 %v4066
    %4096 = vmatprep.subr.mxu0 %v4063
    %4097 = vmatpush1.msra.mxu0 %v4062
    %4098 = vmatprep.subr.mxu0 %v4059
    %4099 = vmatpush1.msra.mxu0 %v4058
    %4100 = vmatprep.subr.mxu0 %v4055
    %4101 = vmatpush1.msra.mxu0 %v4054
    %4102 = vmatprep.subr.mxu0 %v4051
    %4103 = vmatpush1.msra.mxu0 %v4050
    %4104 = vmatprep.subr.mxu0 %v4047
    %4105 = vmatpush1.msra.mxu0 %v4046
    %4106 = vmatprep.subr.mxu0 %v4043
    %4107 = vmatpush1.msra.mxu0 %v4042
    %4108 = vmatprep.subr.mxu0 %v4039
    %4109 = vmatpush1.msra.mxu0 %v4038
    %4110 = vmatprep.subr.mxu0 %v4035
    %4111 = vmatpush1.msra.mxu0 %v4034
    %4112 = vmatprep.subr.mxu0 %v4031
    %4113 = vmatpush1.msra.mxu0 %v4030
    %4114 = vmatprep.subr.mxu0 %v4027
    %4115 = vmatpush1.msra.mxu0 %v4026
    %4116 = vmatprep.subr.mxu0 %v4023
    %4117 = vmatpush1.msra.mxu0 %v4022
    %4118 = vmatprep.subr.mxu0 0.0
    %4119 = vmatpush2.msra.mxu0 0.0
    %4120 = vmatprep.subr.mxu0 0.0
    %4121 = vmatpush2.msra.mxu0 0.0
    %4122 = vmatprep.subr.mxu0 0.0
    %4123 = vmatpush2.msra.mxu0 0.0
    %4124 = vmatprep.subr.mxu0 0.0
    %4125 = vmatpush2.msra.mxu0 0.0
    %4126 = vmatprep.subr.mxu0 0.0
    %4127 = vmatpush2.msra.mxu0 0.0
    %4128 = vmatprep.subr.mxu0 0.0
    %4129 = vmatpush2.msra.mxu0 0.0
    %4130 = vmatprep.subr.mxu0 0.0
    %4131 = vmatpush2.msra.mxu0 0.0
    %4132 = vmatprep.subr.mxu0 0.0
    %4133 = vmatpush2.msra.mxu0 0.0
    %4134 = vmatprep.subr.mxu0 0.0
    %4135 = vmatpush2.msra.mxu0 0.0
    %4136 = vmatprep.subr.mxu0 0.0
    %4137 = vmatpush2.msra.mxu0 0.0
    %4138 = vmatprep.subr.mxu0 0.0
    %4139 = vmatpush2.msra.mxu0 0.0
    %4140 = vmatprep.subr.mxu0 0.0
    %4141 = vmatpush2.msra.mxu0 0.0
    %4142 = vmatprep.subr.mxu0 0.0
    %4143 = vmatpush2.msra.mxu0 0.0
    %4144 = vmatprep.subr.mxu0 0.0
    %4145 = vmatpush2.msra.mxu0 0.0
    %4146 = vmatprep.subr.mxu0 0.0
    %4147 = vmatpush2.msra.mxu0 0.0
    %4148 = vmatprep.subr.mxu0 0.0
    %4149 = vmatpush2.msra.mxu0 0.0
    %4150 = vmatprep.mubr.f32.mxu0 0.0
    %4151 = vmatmul.mubr.f32.gmra.mxu0 %v4015
    %v4152 = vpop.f32.mrf.mxu0
    %v4153 = vadd.f32 0.0, %v4152
    %v4154 = vpop.f32.mrf.mxu0
    %v4155 = vadd.f32 0.0, %v4154
    %4156 = vdwg.mxu0
    %4157 = vmatprep.subr.mxu0 %v4085
    %4158 = vmatpush1.msra.mxu0 %v4084
    %4159 = vmatprep.subr.mxu0 %v4081
    %4160 = vmatpush1.msra.mxu0 %v4080
    %4161 = vmatprep.subr.mxu0 %v4077
    %4162 = vmatpush1.msra.mxu0 %v4076
    %4163 = vmatprep.subr.mxu0 %v4073
    %4164 = vmatpush1.msra.mxu0 %v4072
    %4165 = vmatprep.subr.mxu0 %v4069
    %4166 = vmatpush1.msra.mxu0 %v4068
    %4167 = vmatprep.subr.mxu0 %v4065
    %4168 = vmatpush1.msra.mxu0 %v4064
    %4169 = vmatprep.subr.mxu0 %v4061
    %4170 = vmatpush1.msra.mxu0 %v4060
    %4171 = vmatprep.subr.mxu0 %v4057
    %4172 = vmatpush1.msra.mxu0 %v4056
    %4173 = vmatprep.subr.mxu0 %v4053
    %4174 = vmatpush1.msra.mxu0 %v4052
    %4175 = vmatprep.subr.mxu0 %v4049
    %4176 = vmatpush1.msra.mxu0 %v4048
    %4177 = vmatprep.subr.mxu0 %v4045
    %4178 = vmatpush1.msra.mxu0 %v4044
    %4179 = vmatprep.subr.mxu0 %v4041
    %4180 = vmatpush1.msra.mxu0 %v4040
    %4181 = vmatprep.subr.mxu0 %v4037
    %4182 = vmatpush1.msra.mxu0 %v4036
    %4183 = vmatprep.subr.mxu0 %v4033
    %4184 = vmatpush1.msra.mxu0 %v4032
    %4185 = vmatprep.subr.mxu0 %v4029
    %4186 = vmatpush1.msra.mxu0 %v4028
    %4187 = vmatprep.subr.mxu0 %v4025
    %4188 = vmatpush1.msra.mxu0 %v4024
    %4189 = vmatprep.subr.mxu0 0.0
    %4190 = vmatpush2.msra.mxu0 0.0
    %4191 = vmatprep.subr.mxu0 0.0
    %4192 = vmatpush2.msra.mxu0 0.0
    %4193 = vmatprep.subr.mxu0 0.0
    %4194 = vmatpush2.msra.mxu0 0.0
    %4195 = vmatprep.subr.mxu0 0.0
    %4196 = vmatpush2.msra.mxu0 0.0
    %4197 = vmatprep.subr.mxu0 0.0
    %4198 = vmatpush2.msra.mxu0 0.0
    %4199 = vmatprep.subr.mxu0 0.0
    %4200 = vmatpush2.msra.mxu0 0.0
    %4201 = vmatprep.subr.mxu0 0.0
    %4202 = vmatpush2.msra.mxu0 0.0
    %4203 = vmatprep.subr.mxu0 0.0
    %4204 = vmatpush2.msra.mxu0 0.0
    %4205 = vmatprep.subr.mxu0 0.0
    %4206 = vmatpush2.msra.mxu0 0.0
    %4207 = vmatprep.subr.mxu0 0.0
    %4208 = vmatpush2.msra.mxu0 0.0
    %4209 = vmatprep.subr.mxu0 0.0
    %4210 = vmatpush2.msra.mxu0 0.0
    %4211 = vmatprep.subr.mxu0 0.0
    %4212 = vmatpush2.msra.mxu0 0.0
    %4213 = vmatprep.subr.mxu0 0.0
    %4214 = vmatpush2.msra.mxu0 0.0
    %4215 = vmatprep.subr.mxu0 0.0
    %4216 = vmatpush2.msra.mxu0 0.0
    %4217 = vmatprep.subr.mxu0 0.0
    %4218 = vmatpush2.msra.mxu0 0.0
    %4219 = vmatprep.subr.mxu0 0.0
    %4220 = vmatpush2.msra.mxu0 0.0
    %4221 = vmatprep.mubr.f32.mxu0 0.0
    %4222 = vmatmul.mubr.f32.gmra.mxu0 %v4015
    %v4223 = vpop.f32.mrf.mxu0
    %v4224 = vadd.f32 0.0, %v4223
    %v4225 = vpop.f32.mrf.mxu0
    %v4226 = vadd.f32 0.0, %v4225
    %4227 = vdwg.mxu0
    %v4228 = vadd.f32 %v4018, %v4153
    %v4229 = vadd.f32 %v4019, %v4155
    %v4230 = vadd.f32 %v4020, %v4224
    %v4231 = vadd.f32 %v4021, %v4226
    %v4232 = vmul.f32 %v4228, 0.5
    %v4233 = vmul.f32 %v4229, 0.5
    %v4234 = vmul.f32 %v4230, 0.5
    %v4235 = vtanh.pop %v4232
    %v4236 = vtanh.pop %v4233
    %v4237 = vtanh.pop %v4234
    %v4238 = vadd.f32 %v4235, 1.0
    %v4239 = vadd.f32 %v4236, 1.0
    %v4240 = vadd.f32 %v4237, 1.0
    %v4241 = vmul.f32 %v4238, 0.5
    %v4242 = vmul.f32 %v4239, 0.5
    %v4243 = vmul.f32 %v4240, 0.5
    %v4244 = vtanh.pop %v4231
    %v4245 = vmul.f32 %v4242, %v4013
    %v4246 = vmul.f32 %v4241, %v4244
    %v4247 = vadd.f32 %v4245, %v4246
    %v4248 = vtanh.pop %v4247
    %v4249 = vmul.f32 %v4243, %v4248
    %s4250 = scalar_lea.vmem [#allocation11], 48
    %4251 = vst [vmem:[%s4250] sm:$0xff] %v4249
    %v4252 = vld [vmem:[%s2044] sm:$0xff]
    %v4253 = vld [vmem:[%s2044 + $0x8] sm:$0xff]
    %v4254 = vld [vmem:[%s2044 + $0x10] sm:$0xff]
    %v4255 = vld [vmem:[%s2044 + $0x18] sm:$0xff]
    %v4256 = vld [vmem:[#allocation9] sm:$0xff]
    %v4257 = vld [vmem:[#allocation9 + $0x8] sm:$0xff]
    %v4258 = vld [vmem:[#allocation9 + $0x10] sm:$0xff]
    %v4259 = vld [vmem:[#allocation9 + $0x18] sm:$0xff]
    %v4260 = vld [vmem:[#allocation9 + $0x20] sm:$0xff]
    %v4261 = vld [vmem:[#allocation9 + $0x28] sm:$0xff]
    %v4262 = vld [vmem:[#allocation9 + $0x30] sm:$0xff]
    %v4263 = vld [vmem:[#allocation9 + $0x38] sm:$0xff]
    %v4264 = vld [vmem:[#allocation9 + $0x40] sm:$0xff]
    %v4265 = vld [vmem:[#allocation9 + $0x48] sm:$0xff]
    %v4266 = vld [vmem:[#allocation9 + $0x50] sm:$0xff]
    %v4267 = vld [vmem:[#allocation9 + $0x58] sm:$0xff]
    %v4268 = vld [vmem:[#allocation9 + $0x60] sm:$0xff]
    %v4269 = vld [vmem:[#allocation9 + $0x68] sm:$0xff]
    %v4270 = vld [vmem:[#allocation9 + $0x70] sm:$0xff]
    %v4271 = vld [vmem:[#allocation9 + $0x78] sm:$0xff]
    %v4272 = vld [vmem:[#allocation9 + $0x80] sm:$0xff]
    %v4273 = vld [vmem:[#allocation9 + $0x88] sm:$0xff]
    %v4274 = vld [vmem:[#allocation9 + $0x90] sm:$0xff]
    %v4275 = vld [vmem:[#allocation9 + $0x98] sm:$0xff]
    %v4276 = vld [vmem:[#allocation9 + $0xa0] sm:$0xff]
    %v4277 = vld [vmem:[#allocation9 + $0xa8] sm:$0xff]
    %v4278 = vld [vmem:[#allocation9 + $0xb0] sm:$0xff]
    %v4279 = vld [vmem:[#allocation9 + $0xb8] sm:$0xff]
    %v4280 = vld [vmem:[#allocation9 + $0xc0] sm:$0xff]
    %v4281 = vld [vmem:[#allocation9 + $0xc8] sm:$0xff]
    %v4282 = vld [vmem:[#allocation9 + $0xd0] sm:$0xff]
    %v4283 = vld [vmem:[#allocation9 + $0xd8] sm:$0xff]
    %v4284 = vld [vmem:[#allocation9 + $0xe0] sm:$0xff]
    %v4285 = vld [vmem:[#allocation9 + $0xe8] sm:$0xff]
    %v4286 = vld [vmem:[#allocation9 + $0xf0] sm:$0xff]
    %v4287 = vld [vmem:[#allocation9 + $0xf8] sm:$0xff]
    %v4288 = vld [vmem:[#allocation9 + $0x100] sm:$0xff]
    %v4289 = vld [vmem:[#allocation9 + $0x108] sm:$0xff]
    %v4290 = vld [vmem:[#allocation9 + $0x110] sm:$0xff]
    %v4291 = vld [vmem:[#allocation9 + $0x118] sm:$0xff]
    %v4292 = vld [vmem:[#allocation9 + $0x120] sm:$0xff]
    %v4293 = vld [vmem:[#allocation9 + $0x128] sm:$0xff]
    %v4294 = vld [vmem:[#allocation9 + $0x130] sm:$0xff]
    %v4295 = vld [vmem:[#allocation9 + $0x138] sm:$0xff]
    %v4296 = vld [vmem:[#allocation9 + $0x140] sm:$0xff]
    %v4297 = vld [vmem:[#allocation9 + $0x148] sm:$0xff]
    %v4298 = vld [vmem:[#allocation9 + $0x150] sm:$0xff]
    %v4299 = vld [vmem:[#allocation9 + $0x158] sm:$0xff]
    %v4300 = vld [vmem:[#allocation9 + $0x160] sm:$0xff]
    %v4301 = vld [vmem:[#allocation9 + $0x168] sm:$0xff]
    %v4302 = vld [vmem:[#allocation9 + $0x170] sm:$0xff]
    %v4303 = vld [vmem:[#allocation9 + $0x178] sm:$0xff]
    %v4304 = vld [vmem:[#allocation9 + $0x180] sm:$0xff]
    %v4305 = vld [vmem:[#allocation9 + $0x188] sm:$0xff]
    %v4306 = vld [vmem:[#allocation9 + $0x190] sm:$0xff]
    %v4307 = vld [vmem:[#allocation9 + $0x198] sm:$0xff]
    %v4308 = vld [vmem:[#allocation9 + $0x1a0] sm:$0xff]
    %v4309 = vld [vmem:[#allocation9 + $0x1a8] sm:$0xff]
    %v4310 = vld [vmem:[#allocation9 + $0x1b0] sm:$0xff]
    %v4311 = vld [vmem:[#allocation9 + $0x1b8] sm:$0xff]
    %v4312 = vld [vmem:[#allocation9 + $0x1c0] sm:$0xff]
    %v4313 = vld [vmem:[#allocation9 + $0x1c8] sm:$0xff]
    %v4314 = vld [vmem:[#allocation9 + $0x1d0] sm:$0xff]
    %v4315 = vld [vmem:[#allocation9 + $0x1d8] sm:$0xff]
    %v4316 = vld [vmem:[#allocation9 + $0x1e0] sm:$0xff]
    %v4317 = vld [vmem:[#allocation9 + $0x1e8] sm:$0xff]
    %v4318 = vld [vmem:[#allocation9 + $0x1f0] sm:$0xff]
    %v4319 = vld [vmem:[#allocation9 + $0x1f8] sm:$0xff]
    %4320 = vmatprep.subr.mxu0 %v4317
    %4321 = vmatpush1.msra.mxu0 %v4316
    %4322 = vmatprep.subr.mxu0 %v4313
    %4323 = vmatpush1.msra.mxu0 %v4312
    %4324 = vmatprep.subr.mxu0 %v4309
    %4325 = vmatpush1.msra.mxu0 %v4308
    %4326 = vmatprep.subr.mxu0 %v4305
    %4327 = vmatpush1.msra.mxu0 %v4304
    %4328 = vmatprep.subr.mxu0 %v4301
    %4329 = vmatpush1.msra.mxu0 %v4300
    %4330 = vmatprep.subr.mxu0 %v4297
    %4331 = vmatpush1.msra.mxu0 %v4296
    %4332 = vmatprep.subr.mxu0 %v4293
    %4333 = vmatpush1.msra.mxu0 %v4292
    %4334 = vmatprep.subr.mxu0 %v4289
    %4335 = vmatpush1.msra.mxu0 %v4288
    %4336 = vmatprep.subr.mxu0 %v4285
    %4337 = vmatpush1.msra.mxu0 %v4284
    %4338 = vmatprep.subr.mxu0 %v4281
    %4339 = vmatpush1.msra.mxu0 %v4280
    %4340 = vmatprep.subr.mxu0 %v4277
    %4341 = vmatpush1.msra.mxu0 %v4276
    %4342 = vmatprep.subr.mxu0 %v4273
    %4343 = vmatpush1.msra.mxu0 %v4272
    %4344 = vmatprep.subr.mxu0 %v4269
    %4345 = vmatpush1.msra.mxu0 %v4268
    %4346 = vmatprep.subr.mxu0 %v4265
    %4347 = vmatpush1.msra.mxu0 %v4264
    %4348 = vmatprep.subr.mxu0 %v4261
    %4349 = vmatpush1.msra.mxu0 %v4260
    %4350 = vmatprep.subr.mxu0 %v4257
    %4351 = vmatpush1.msra.mxu0 %v4256
    %4352 = vmatprep.subr.mxu0 0.0
    %4353 = vmatpush2.msra.mxu0 0.0
    %4354 = vmatprep.subr.mxu0 0.0
    %4355 = vmatpush2.msra.mxu0 0.0
    %4356 = vmatprep.subr.mxu0 0.0
    %4357 = vmatpush2.msra.mxu0 0.0
    %4358 = vmatprep.subr.mxu0 0.0
    %4359 = vmatpush2.msra.mxu0 0.0
    %4360 = vmatprep.subr.mxu0 0.0
    %4361 = vmatpush2.msra.mxu0 0.0
    %4362 = vmatprep.subr.mxu0 0.0
    %4363 = vmatpush2.msra.mxu0 0.0
    %4364 = vmatprep.subr.mxu0 0.0
    %4365 = vmatpush2.msra.mxu0 0.0
    %4366 = vmatprep.subr.mxu0 0.0
    %4367 = vmatpush2.msra.mxu0 0.0
    %4368 = vmatprep.subr.mxu0 0.0
    %4369 = vmatpush2.msra.mxu0 0.0
    %4370 = vmatprep.subr.mxu0 0.0
    %4371 = vmatpush2.msra.mxu0 0.0
    %4372 = vmatprep.subr.mxu0 0.0
    %4373 = vmatpush2.msra.mxu0 0.0
    %4374 = vmatprep.subr.mxu0 0.0
    %4375 = vmatpush2.msra.mxu0 0.0
    %4376 = vmatprep.subr.mxu0 0.0
    %4377 = vmatpush2.msra.mxu0 0.0
    %4378 = vmatprep.subr.mxu0 0.0
    %4379 = vmatpush2.msra.mxu0 0.0
    %4380 = vmatprep.subr.mxu0 0.0
    %4381 = vmatpush2.msra.mxu0 0.0
    %4382 = vmatprep.subr.mxu0 0.0
    %4383 = vmatpush2.msra.mxu0 0.0
    %4384 = vmatprep.mubr.f32.mxu0 0.0
    %4385 = vmatmul.mubr.f32.gmra.mxu0 %v4249
    %v4386 = vpop.f32.mrf.mxu0
    %v4387 = vadd.f32 0.0, %v4386
    %v4388 = vpop.f32.mrf.mxu0
    %v4389 = vadd.f32 0.0, %v4388
    %4390 = vdwg.mxu0
    %4391 = vmatprep.subr.mxu0 %v4319
    %4392 = vmatpush1.msra.mxu0 %v4318
    %4393 = vmatprep.subr.mxu0 %v4315
    %4394 = vmatpush1.msra.mxu0 %v4314
    %4395 = vmatprep.subr.mxu0 %v4311
    %4396 = vmatpush1.msra.mxu0 %v4310
    %4397 = vmatprep.subr.mxu0 %v4307
    %4398 = vmatpush1.msra.mxu0 %v4306
    %4399 = vmatprep.subr.mxu0 %v4303
    %4400 = vmatpush1.msra.mxu0 %v4302
    %4401 = vmatprep.subr.mxu0 %v4299
    %4402 = vmatpush1.msra.mxu0 %v4298
    %4403 = vmatprep.subr.mxu0 %v4295
    %4404 = vmatpush1.msra.mxu0 %v4294
    %4405 = vmatprep.subr.mxu0 %v4291
    %4406 = vmatpush1.msra.mxu0 %v4290
    %4407 = vmatprep.subr.mxu0 %v4287
    %4408 = vmatpush1.msra.mxu0 %v4286
    %4409 = vmatprep.subr.mxu0 %v4283
    %4410 = vmatpush1.msra.mxu0 %v4282
    %4411 = vmatprep.subr.mxu0 %v4279
    %4412 = vmatpush1.msra.mxu0 %v4278
    %4413 = vmatprep.subr.mxu0 %v4275
    %4414 = vmatpush1.msra.mxu0 %v4274
    %4415 = vmatprep.subr.mxu0 %v4271
    %4416 = vmatpush1.msra.mxu0 %v4270
    %4417 = vmatprep.subr.mxu0 %v4267
    %4418 = vmatpush1.msra.mxu0 %v4266
    %4419 = vmatprep.subr.mxu0 %v4263
    %4420 = vmatpush1.msra.mxu0 %v4262
    %4421 = vmatprep.subr.mxu0 %v4259
    %4422 = vmatpush1.msra.mxu0 %v4258
    %4423 = vmatprep.subr.mxu0 0.0
    %4424 = vmatpush2.msra.mxu0 0.0
    %4425 = vmatprep.subr.mxu0 0.0
    %4426 = vmatpush2.msra.mxu0 0.0
    %4427 = vmatprep.subr.mxu0 0.0
    %4428 = vmatpush2.msra.mxu0 0.0
    %4429 = vmatprep.subr.mxu0 0.0
    %4430 = vmatpush2.msra.mxu0 0.0
    %4431 = vmatprep.subr.mxu0 0.0
    %4432 = vmatpush2.msra.mxu0 0.0
    %4433 = vmatprep.subr.mxu0 0.0
    %4434 = vmatpush2.msra.mxu0 0.0
    %4435 = vmatprep.subr.mxu0 0.0
    %4436 = vmatpush2.msra.mxu0 0.0
    %4437 = vmatprep.subr.mxu0 0.0
    %4438 = vmatpush2.msra.mxu0 0.0
    %4439 = vmatprep.subr.mxu0 0.0
    %4440 = vmatpush2.msra.mxu0 0.0
    %4441 = vmatprep.subr.mxu0 0.0
    %4442 = vmatpush2.msra.mxu0 0.0
    %4443 = vmatprep.subr.mxu0 0.0
    %4444 = vmatpush2.msra.mxu0 0.0
    %4445 = vmatprep.subr.mxu0 0.0
    %4446 = vmatpush2.msra.mxu0 0.0
    %4447 = vmatprep.subr.mxu0 0.0
    %4448 = vmatpush2.msra.mxu0 0.0
    %4449 = vmatprep.subr.mxu0 0.0
    %4450 = vmatpush2.msra.mxu0 0.0
    %4451 = vmatprep.subr.mxu0 0.0
    %4452 = vmatpush2.msra.mxu0 0.0
    %4453 = vmatprep.subr.mxu0 0.0
    %4454 = vmatpush2.msra.mxu0 0.0
    %4455 = vmatprep.mubr.f32.mxu0 0.0
    %4456 = vmatmul.mubr.f32.gmra.mxu0 %v4249
    %v4457 = vpop.f32.mrf.mxu0
    %v4458 = vadd.f32 0.0, %v4457
    %v4459 = vpop.f32.mrf.mxu0
    %v4460 = vadd.f32 0.0, %v4459
    %4461 = vdwg.mxu0
    %v4462 = vadd.f32 %v4252, %v4387
    %v4463 = vadd.f32 %v4253, %v4389
    %v4464 = vadd.f32 %v4254, %v4458
    %v4465 = vadd.f32 %v4255, %v4460
    %v4466 = vmul.f32 %v4462, 0.5
    %v4467 = vmul.f32 %v4463, 0.5
    %v4468 = vmul.f32 %v4464, 0.5
    %v4469 = vtanh.pop %v4466
    %v4470 = vtanh.pop %v4467
    %v4471 = vtanh.pop %v4468
    %v4472 = vadd.f32 %v4469, 1.0
    %v4473 = vadd.f32 %v4470, 1.0
    %v4474 = vadd.f32 %v4471, 1.0
    %v4475 = vmul.f32 %v4472, 0.5
    %v4476 = vmul.f32 %v4473, 0.5
    %v4477 = vmul.f32 %v4474, 0.5
    %v4478 = vtanh.pop %v4465
    %v4479 = vmul.f32 %v4476, %v4247
    %v4480 = vmul.f32 %v4475, %v4478
    %v4481 = vadd.f32 %v4479, %v4480
    %v4482 = vtanh.pop %v4481
    %v4483 = vmul.f32 %v4477, %v4482
    %s4484 = scalar_lea.vmem [#allocation11], 56
    %4485 = vst [vmem:[%s4484] sm:$0xff] %v4483
    %4486 = vst [vmem:[%s2611] sm:$0xff] %v4483
    %4487 = vst [vmem:[%s2613] sm:$0xff] %v4481
    %v4488 = vld [vmem:[%s2611] sm:$0xff]
    %4489 = vst [vmem:[#allocation12] sm:$0xff] %v4488
    %v4490 = vld [vmem:[%s2613] sm:$0xff]
    %4491 = vst [vmem:[#allocation14] sm:$0xff] %v4490
    // Predicated region
    $region34: #{tpu_custom_call.1} parent=1 // pred_check
      _
    $region35: #{tpu_custom_call.1} parent=1 // pred_check_branch
      %4493 = sbr.rel (0) target = $region37
    $region36: #{tpu_custom_call.1} parent=1 // pred_region
      %s4495 = ssub.s32 1024, 1024
      %4496 = vsyncadd [#allocation8], %s4495
      %s4497 = sshll.u32 [#allocation11], 4
      %s4498 = int_to_ptr.vmem [resolvable:$true] %s4497
      %4503 = dma.vmem_to_hbm [thread:$0]  %s4498, 1024, %s5, [#allocation8], 128, 128, 8
    $region37: #{tpu_custom_call.1} parent=1 // pred_fallthru
      _
    // Predicated region
    $region38: #{tpu_custom_call.1} parent=1 // pred_check
      _
    $region39: #{tpu_custom_call.1} parent=1 // pred_check_branch
      %4505 = sbr.rel (0) target = $region41
    $region40: #{tpu_custom_call.1} parent=1 // pred_region
      %s4507 = ssub.s32 128, 128
      %4508 = vsyncadd [#allocation13], %s4507
      %s4510 = sshll.u32 [#allocation12], 4
      %s4511 = int_to_ptr.vmem [resolvable:$true] %s4510
      %4513 = dma.vmem_to_hbm [thread:$0]  %s4511, 128, %s6, [#allocation13]
    $region41: #{tpu_custom_call.1} parent=1 // pred_fallthru
      _
    // Predicated region
    $region42: #{tpu_custom_call.1} parent=1 // pred_check
      _
    $region43: #{tpu_custom_call.1} parent=1 // pred_check_branch
      %4515 = sbr.rel (0) target = $region45
    $region44: #{tpu_custom_call.1} parent=1 // pred_region
      %s4517 = ssub.s32 128, 128
      %4518 = vsyncadd [#allocation13], %s4517
      %s4520 = sshll.u32 [#allocation14], 4
      %s4521 = int_to_ptr.vmem [resolvable:$true] %s4520
      %4523 = dma.vmem_to_hbm [thread:$0]  %s4521, 128, %s7, [#allocation13]
    $region45: #{tpu_custom_call.1} parent=1 // pred_fallthru
      _
    // Predicated region
    $region46: #{tpu_custom_call.1} parent=1 // pred_check
      _
    $region47: #{tpu_custom_call.1} parent=1 // pred_check_branch
      %4525 = sbr.rel (0) target = $region49
    $region48: #{tpu_custom_call.1} parent=1 // pred_region
      %4526 = dma.done [#allocation8], 1024
    $region49: #{tpu_custom_call.1} parent=1 // pred_fallthru
      _
    // Predicated region
    $region50: #{tpu_custom_call.1} parent=1 // pred_check
      _
    $region51: #{tpu_custom_call.1} parent=1 // pred_check_branch
      %4528 = sbr.rel (0) target = $region53
    $region52: #{tpu_custom_call.1} parent=1 // pred_region
      %4529 = dma.done [#allocation13], 128
    $region53: #{tpu_custom_call.1} parent=1 // pred_fallthru
      _
    // Predicated region
    $region54: #{tpu_custom_call.1} parent=1 // pred_check
      _
    $region55: #{tpu_custom_call.1} parent=1 // pred_check_branch
      %4531 = sbr.rel (0) target = $region57
    $region56: #{tpu_custom_call.1} parent=1 // pred_region
      %4532 = dma.done [#allocation13], 128
    $region57: #{tpu_custom_call.1} parent=1 // pred_fallthru
      _
    %4533 = vsyncpa [#allocation7], 1
    %4534 = vsyncpa [#allocation10], 1
    %4535 = vsyncpa [#allocation8], 1
    %4536 = vsyncpa [#allocation13], 1

</llo_original>
